<compile_context>
chip_gen: v7x
topology: tpu7x:2x2x1
jax: 0.10.0
libtpu: 0.0.40
codegen_flags: <defaults>
</compile_context>

<pallas_src>
import jax
import jax.numpy as jnp
from jax import lax
from jax.experimental import pallas as pl
from jax.experimental.pallas import tpu as pltpu


# ----------------------------- Pallas kernel --------------------------------
def _fold_kernel(sp_ref,            # (TN, Hp)   f32  seed @ w1a + b1 (batch-invariant)
                 xb_ref,            # (1, 2, Hp) f32  [x@w1b ; x@w4b + b4] per batch
                 w2_ref, b2_ref,    # (Hp, H2p) bf16, (1, H2p) f32
                 w3_ref, b3_ref,    # (H2p, 3) f32,   (1, 3)   f32
                 w4a_ref,           # (3, Hp)  f32
                 w5_ref, b5_ref,    # (Hp, H2p) bf16, (1, H2p) f32
                 w6t_ref, b6t_ref,  # (3, H2p) f32,   (3, 1)   f32
                 out_ref):          # (1, 3, TN) f32
    f32 = jnp.float32
    bf16 = jnp.bfloat16

    xb = xb_ref[0]                       # (2, Hp)
    xb1 = xb[0:1, :]                     # (1, Hp)  x @ w1b
    xb4 = xb[1:2, :]                     # (1, Hp)  x @ w4b + b4

    # ---- folding1 ----
    h = jnp.maximum(sp_ref[...] + xb1, 0.0)                                 # (TN, Hp)
    h = jnp.dot(h.astype(bf16), w2_ref[...], preferred_element_type=f32)
    h = jnp.maximum(h + b2_ref[...], 0.0)                                   # (TN, H2p)
    fd1 = jnp.dot(h, w3_ref[...], preferred_element_type=f32) + b3_ref[...]  # (TN, 3)

    # ---- folding2 ----
    # K=3 contraction done as VPU rank-1 updates (keeps it off the MXU slot).
    w4a = w4a_ref[...]                                                      # (3, Hp)
    g = (fd1[:, 0:1] * w4a[0:1, :]
         + fd1[:, 1:2] * w4a[1:2, :]
         + fd1[:, 2:3] * w4a[2:3, :]
         + xb4)
    g = jnp.maximum(g, 0.0)                                                 # (TN, Hp)
    g = jnp.dot(g.astype(bf16), w5_ref[...], preferred_element_type=f32)
    g = jnp.maximum(g + b5_ref[...], 0.0)                                   # (TN, H2p)

    # Final layer computed transposed so the output lane axis is the point dim:
    # out[c, n] = sum_k w6t[c, k] * g[n, k]  -> (3, TN), unmasked lane-dense store.
    fd2_t = lax.dot_general(w6t_ref[...], g, (((1,), (1,)), ((), ())),
                            preferred_element_type=f32)                     # (3, TN)
    out_ref[0] = fd2_t + b6t_ref[...]


# ------------------------------- Wrapper -------------------------------------
def _round_up(x, m):
    return ((x + m - 1) // m) * m


def _pad_to(a, shape):
    return jnp.pad(a, [(0, t - s) for s, t in zip(a.shape, shape)])


def fold_forward(x, seed, params, *, step):
    """x: (B, C) float32.  Returns (B, 3, step*step), matching the torch module."""
    B, C = x.shape
    N = step * step
    (w1a, w1b, b1, w2, b2, w3, b3,
     w4a, w4b, b4, w5, b5, w6, b6) = params
    H = w1a.shape[1]
    H2 = w2.shape[1]

    # ---- lane-align hidden dims (zero-padded so pad lanes stay 0 thru ReLU) ----
    Hp = _round_up(H, 128)
    H2p = _round_up(H2, 128)
    w1a_p = _pad_to(w1a, (2, Hp))
    w1b_p = _pad_to(w1b, (C, Hp))
    b1_p = _pad_to(b1, (1, Hp))
    w2_p = _pad_to(w2, (Hp, H2p))
    b2_p = _pad_to(b2, (1, H2p))
    w3_p = _pad_to(w3, (H2p, 3))
    w4a_p = _pad_to(w4a, (3, Hp))
    w4b_p = _pad_to(w4b, (C, Hp))
    b4_p = _pad_to(b4, (1, Hp))
    w5_p = _pad_to(w5, (Hp, H2p))
    b5_p = _pad_to(b5, (1, H2p))
    w6t = _pad_to(w6, (H2p, 3)).T               # (3, H2p): minor-dim contraction
    b6t = b6.reshape(3, 1)

    # bf16 MXU operands for the two dominant matmuls (f32 accumulation in-kernel)
    w2_bf = w2_p.astype(jnp.bfloat16)
    w5_bf = w5_p.astype(jnp.bfloat16)

    # ---- generation-aware point-tile selection + explicit VMEM limit ----
    try:
        vmem_cap = int(pltpu.get_tpu_info().vmem_capacity_bytes)
    except Exception:
        vmem_cap = 64 << 20                     # conservative (v7x-sized) fallback
    budget = (vmem_cap * 3) // 5                # ~60% of physical VMEM

    def footprint(tn):
        seed_db = 2 * tn * Hp * 4               # double-buffered seed projection
        out_db = 2 * 3 * tn * 4                 # double-buffered output tile
        temps = 5 * tn * max(Hp, H2p) * 4       # live f32/bf16 intermediates
        wts = 2 * (2 * Hp * H2p * 2 + (3 * Hp + 3 * H2p + 4 * H2p) * 4)
        misc = 4 * 2 * Hp * 4                   # xb tiles, biases
        return seed_db + out_db + temps + wts + misc

    TN = 128
    for cand in (2048, 1024, 512, 256, 128):
        if footprint(cand) <= budget:
            TN = cand
            break
    TN = min(TN, _round_up(N, 128))
    if B == 1:                                  # keep >=2 grid steps for 2-TC chips
        while TN > 128 and pl.cdiv(N, TN) < 2:
            TN -= 128
    N_pad = _round_up(N, TN)
    n_tiles = N_pad // TN
    vmem_limit = int(min((vmem_cap * 3) // 4, 100 << 20))

    # TODO(synk): small-problem path folding batch into the matmul M dimension
    # (stack B point tiles into one (B*TN, Hp) LHS) when N_pad <= TN.

    # ---- hoisted, cheap precomputation (plain XLA) ----
    seed_pad = jnp.zeros((N_pad, 2), jnp.float32).at[:N].set(seed)
    seed_proj = seed_pad @ w1a_p + b1_p                       # (N_pad, Hp)
    xb = jnp.stack([x @ w1b_p, x @ w4b_p + b4_p], axis=1)     # (B, 2, Hp)

    def run(single_buffer_weights):
        const_kw = {}
        if single_buffer_weights and hasattr(pl, "Buffered"):
            const_kw = dict(pipeline_mode=pl.Buffered(1))

        def const_spec(arr):
            nd = arr.ndim
            return pl.BlockSpec(arr.shape, lambda n, b: (0,) * nd, **const_kw)

        return pl.pallas_call(
            _fold_kernel,
            out_shape=jax.ShapeDtypeStruct((B, 3, N_pad), jnp.float32),
            grid_spec=pltpu.PrefetchScalarGridSpec(
                num_scalar_prefetch=0,
                # inner (minor) axis = batch: seed_proj tile stays resident across it
                grid=(n_tiles, B),
                in_specs=[
                    pl.BlockSpec((TN, Hp), lambda n, b: (n, 0)),       # seed_proj
                    pl.BlockSpec((1, 2, Hp), lambda n, b: (b, 0, 0)),  # xb per batch
                    const_spec(w2_bf), const_spec(b2_p),
                    const_spec(w3_p), const_spec(b3),
                    const_spec(w4a_p),
                    const_spec(w5_bf), const_spec(b5_p),
                    const_spec(w6t), const_spec(b6t),
                ],
                out_specs=pl.BlockSpec((1, 3, TN), lambda n, b: (b, 0, n)),
            ),
            compiler_params=pltpu.CompilerParams(
                dimension_semantics=("parallel", "parallel"),
                vmem_limit_bytes=vmem_limit),
        )(seed_proj, xb, w2_bf, b2_p, w3_p, b3, w4a_p, w5_bf, b5_p, w6t, b6t)

    try:
        out = run(True)                 # single-buffered constant weights
    except Exception:
        out = run(False)                # fallback: default double-buffering

    # drop point padding; already in PyTorch layout (B, 3, N)
    return out[:, :, :N]


# ------------------------- Parameter construction ----------------------------
def _conv_init(key, c_in, c_out):
    """PyTorch Conv1d(kernel=1) default init (kaiming-uniform-ish)."""
    kw, kb = jax.random.split(key)
    bound = 1.0 / jnp.sqrt(jnp.float32(c_in))
    w = jax.random.uniform(kw, (c_in, c_out), jnp.float32, -bound, bound)
    b = jax.random.uniform(kb, (c_out,), jnp.float32, -bound, bound)
    return w, b


def _bn_init(key, c):
    k1, k2, k3, k4 = jax.random.split(key, 4)
    gamma = jax.random.uniform(k1, (c,), jnp.float32, 0.5, 1.5)
    beta = 0.1 * jax.random.normal(k2, (c,), jnp.float32)
    mean = 0.1 * jax.random.normal(k3, (c,), jnp.float32)
    var = jax.random.uniform(k4, (c,), jnp.float32, 0.5, 1.5)
    return gamma, beta, mean, var


def _fold_bn_into_conv(w, b, bn, eps=1e-5):
    gamma, beta, mean, var = bn
    scale = gamma / jnp.sqrt(var + eps)
    return w * scale[None, :], (b - mean) * scale + beta


def make_params(key, in_channel, hidden_dim):
    H, H2 = hidden_dim, hidden_dim // 2
    keys = jax.random.split(key, 10)
    # folding1
    w1, b1 = _conv_init(keys[0], in_channel + 2, H)
    bn1 = _bn_init(keys[1], H)
    w2, b2 = _conv_init(keys[2], H, H2)
    bn2 = _bn_init(keys[3], H2)
    w3, b3 = _conv_init(keys[4], H2, 3)
    # folding2
    w4, b4 = _conv_init(keys[5], in_channel + 3, H)
    bn4 = _bn_init(keys[6], H)
    w5, b5 = _conv_init(keys[7], H, H2)
    bn5 = _bn_init(keys[8], H2)
    w6, b6 = _conv_init(keys[9], H2, 3)

    # fold BN (eval mode) into preceding convs
    w1f, b1f = _fold_bn_into_conv(w1, b1, bn1)
    w2f, b2f = _fold_bn_into_conv(w2, b2, bn2)
    w4f, b4f = _fold_bn_into_conv(w4, b4, bn4)
    w5f, b5f = _fold_bn_into_conv(w5, b5, bn5)

    # split the concat dims:  x1 = [seed(2) | feat(C)],  x2 = [fd1(3) | feat(C)]
    w1a, w1b = w1f[:2], w1f[2:]
    w4a, w4b = w4f[:3], w4f[3:]

    def row(v):  # biases as (1, C_out) for 2-D broadcasting
        return v.reshape(1, -1)

    return (w1a, w1b, row(b1f), w2f, row(b2f), w3, row(b3),
            w4a, w4b, row(b4f), w5f, row(b5f), w6, row(b6))


def make_seed(step):
    """Matches torch: a varies fast (columns), b varies slow (rows); (N, 2)."""
    lin = jnp.linspace(-1.0, 1.0, step, dtype=jnp.float32)
    a = jnp.broadcast_to(lin[None, :], (step, step)).reshape(-1)  # fast axis
    b = jnp.broadcast_to(lin[:, None], (step, step)).reshape(-1)  # slow axis
    return jnp.stack([a, b], axis=1)  # (N, 2)


# ---------------------------- Pure-JAX reference ------------------------------
def fold_reference(x, seed, params):
    (w1a, w1b, b1, w2, b2, w3, b3,
     w4a, w4b, b4, w5, b5, w6, b6) = params
    B, C = x.shape
    N = seed.shape[0]
    feat = jnp.broadcast_to(x[:, None, :], (B, N, C))
    seed_b = jnp.broadcast_to(seed[None], (B, N, 2))
    h = jax.nn.relu(seed_b @ w1a + feat @ w1b + b1)
    h = jax.nn.relu(h @ w2 + b2)
    fd1 = h @ w3 + b3
    g = jax.nn.relu(fd1 @ w4a + feat @ w4b + b4)
    g = jax.nn.relu(g @ w5 + b5)
    fd2 = g @ w6 + b6
    return jnp.transpose(fd2, (0, 2, 1))  # (B, 3, N)


if __name__ == "__main__":
    B, C, STEP, HIDDEN = 2, 4, 4, 32  # num_sample = 16
    key = jax.random.PRNGKey(0)
    kx, kp = jax.random.split(key)

    x = jax.random.normal(kx, (B, C), jnp.float32)
    seed = make_seed(STEP)
    params = make_params(kp, C, HIDDEN)

    out = fold_forward(x, seed, params, step=STEP)
    out = jax.block_until_ready(out)

    ref = fold_reference(x, seed, params)
    assert out.shape == (B, 3, STEP * STEP), out.shape
    # bf16 MXU operands in the two hot matmuls -> loosened tolerance vs f32 ref.
    assert jnp.allclose(out, ref, atol=3e-2, rtol=3e-2), "mismatch vs reference"

    print("KERNEL_OK")
</pallas_src>

<mosaic_0001>
module attributes {stable_mosaic.version = 11 : i64} {
  func.func @_fold_kernel(%arg0: i32, %arg1: i32, %arg2: memref<128x128xf32, #tpu.memory_space<vmem>>, %arg3: memref<1x2x128xf32, #tpu.memory_space<vmem>>, %arg4: memref<128x128xbf16, #tpu.memory_space<vmem>>, %arg5: memref<1x128xf32, #tpu.memory_space<vmem>>, %arg6: memref<128x3xf32, #tpu.memory_space<vmem>>, %arg7: memref<1x3xf32, #tpu.memory_space<vmem>>, %arg8: memref<3x128xf32, #tpu.memory_space<vmem>>, %arg9: memref<128x128xbf16, #tpu.memory_space<vmem>>, %arg10: memref<1x128xf32, #tpu.memory_space<vmem>>, %arg11: memref<3x128xf32, #tpu.memory_space<vmem>>, %arg12: memref<3x1xf32, #tpu.memory_space<vmem>>, %arg13: memref<1x3x128xf32, #tpu.memory_space<vmem>>) attributes {dimension_semantics = [#tpu.dimension_semantics<parallel>, #tpu.dimension_semantics<parallel>], iteration_bounds = array<i64: 1, 2>, scalar_prefetch = 0 : i64, scratch_operands = 0 : i64, tpu.core_type = #tpu.core_type<tc>, window_params = [{transform_indices = @transform_0, window_bounds = array<i64: 128, 128>}, {transform_indices = @transform_1, window_bounds = array<i64: 1, 2, 128>}, {pipeline_mode = #tpu.pipeline_mode<synchronous>, transform_indices = @transform_2, window_bounds = array<i64: 128, 128>}, {pipeline_mode = #tpu.pipeline_mode<synchronous>, transform_indices = @transform_3, window_bounds = array<i64: 1, 128>}, {pipeline_mode = #tpu.pipeline_mode<synchronous>, transform_indices = @transform_4, window_bounds = array<i64: 128, 3>}, {pipeline_mode = #tpu.pipeline_mode<synchronous>, transform_indices = @transform_5, window_bounds = array<i64: 1, 3>}, {pipeline_mode = #tpu.pipeline_mode<synchronous>, transform_indices = @transform_6, window_bounds = array<i64: 3, 128>}, {pipeline_mode = #tpu.pipeline_mode<synchronous>, transform_indices = @transform_7, window_bounds = array<i64: 128, 128>}, {pipeline_mode = #tpu.pipeline_mode<synchronous>, transform_indices = @transform_8, window_bounds = array<i64: 1, 128>}, {pipeline_mode = #tpu.pipeline_mode<synchronous>, transform_indices = @transform_9, window_bounds = array<i64: 3, 128>}, {pipeline_mode = #tpu.pipeline_mode<synchronous>, transform_indices = @transform_10, window_bounds = array<i64: 3, 1>}, {transform_indices = @transform_11, window_bounds = array<i64: 1, 3, 128>}]} {
    %c0 = arith.constant 0 : index
    %c0_0 = arith.constant 0 : index
    %c0_1 = arith.constant 0 : index
    %0 = vector.load %arg3[%c0, %c0_0, %c0_1] : memref<1x2x128xf32, #tpu.memory_space<vmem>>, vector<1x2x128xf32>
    %1 = vector.shape_cast %0 : vector<1x2x128xf32> to vector<2x128xf32>
    %2 = vector.extract_strided_slice %1 {offsets = [0, 0], sizes = [1, 128], strides = [1, 1]} : vector<2x128xf32> to vector<1x128xf32>
    %3 = vector.extract_strided_slice %1 {offsets = [1, 0], sizes = [1, 128], strides = [1, 1]} : vector<2x128xf32> to vector<1x128xf32>
    %c0_2 = arith.constant 0 : index
    %c0_3 = arith.constant 0 : index
    %4 = vector.load %arg2[%c0_2, %c0_3] : memref<128x128xf32, #tpu.memory_space<vmem>>, vector<128x128xf32>
    %5 = vector.broadcast %2 : vector<1x128xf32> to vector<128x128xf32>
    %6 = arith.addf %4, %5 : vector<128x128xf32>
    %cst = arith.constant 0.000000e+00 : f32
    %7 = vector.broadcast %cst : f32 to vector<128x128xf32>
    %8 = arith.maximumf %6, %7 : vector<128x128xf32>
    %9 = arith.truncf %8 : vector<128x128xf32> to vector<128x128xbf16>
    %c0_4 = arith.constant 0 : index
    %c0_5 = arith.constant 0 : index
    %10 = vector.load %arg4[%c0_4, %c0_5] : memref<128x128xbf16, #tpu.memory_space<vmem>>, vector<128x128xbf16>
    %cst_6 = arith.constant dense<0.000000e+00> : vector<128x128xf32>
    %11 = tpu.matmul %9, %10, %cst_6 {dimension_numbers = #tpu.dot_dimension_numbers<[1], [0], [0], [1], [0, 0, 1, 1], [], []>} : vector<128x128xbf16>, vector<128x128xbf16>, vector<128x128xf32> -> vector<128x128xf32>
    %c0_7 = arith.constant 0 : index
    %c0_8 = arith.constant 0 : index
    %12 = vector.load %arg5[%c0_7, %c0_8] : memref<1x128xf32, #tpu.memory_space<vmem>>, vector<1x128xf32>
    %13 = vector.broadcast %12 : vector<1x128xf32> to vector<128x128xf32>
    %14 = arith.addf %11, %13 : vector<128x128xf32>
    %cst_9 = arith.constant 0.000000e+00 : f32
    %15 = vector.broadcast %cst_9 : f32 to vector<128x128xf32>
    %16 = arith.maximumf %14, %15 : vector<128x128xf32>
    %c0_10 = arith.constant 0 : index
    %c0_11 = arith.constant 0 : index
    %17 = vector.load %arg6[%c0_10, %c0_11] : memref<128x3xf32, #tpu.memory_space<vmem>>, vector<128x3xf32>
    %cst_12 = arith.constant dense<0.000000e+00> : vector<128x3xf32>
    %18 = tpu.matmul %16, %17, %cst_12 {dimension_numbers = #tpu.dot_dimension_numbers<[1], [0], [0], [1], [0, 0, 1, 1], [], []>} : vector<128x128xf32>, vector<128x3xf32>, vector<128x3xf32> -> vector<128x3xf32>
    %c0_13 = arith.constant 0 : index
    %c0_14 = arith.constant 0 : index
    %19 = vector.load %arg7[%c0_13, %c0_14] : memref<1x3xf32, #tpu.memory_space<vmem>>, vector<1x3xf32>
    %20 = vector.broadcast %19 : vector<1x3xf32> to vector<128x3xf32>
    %21 = arith.addf %18, %20 : vector<128x3xf32>
    %c0_15 = arith.constant 0 : index
    %c0_16 = arith.constant 0 : index
    %22 = vector.load %arg8[%c0_15, %c0_16] : memref<3x128xf32, #tpu.memory_space<vmem>>, vector<3x128xf32>
    %23 = vector.extract_strided_slice %21 {offsets = [0, 0], sizes = [128, 1], strides = [1, 1]} : vector<128x3xf32> to vector<128x1xf32>
    %24 = vector.extract_strided_slice %22 {offsets = [0, 0], sizes = [1, 128], strides = [1, 1]} : vector<3x128xf32> to vector<1x128xf32>
    %25 = vector.broadcast %23 : vector<128x1xf32> to vector<128x128xf32>
    %26 = vector.broadcast %24 : vector<1x128xf32> to vector<128x128xf32>
    %27 = arith.mulf %25, %26 : vector<128x128xf32>
    %28 = vector.extract_strided_slice %21 {offsets = [0, 1], sizes = [128, 1], strides = [1, 1]} : vector<128x3xf32> to vector<128x1xf32>
    %29 = vector.extract_strided_slice %22 {offsets = [1, 0], sizes = [1, 128], strides = [1, 1]} : vector<3x128xf32> to vector<1x128xf32>
    %30 = vector.broadcast %28 : vector<128x1xf32> to vector<128x128xf32>
    %31 = vector.broadcast %29 : vector<1x128xf32> to vector<128x128xf32>
    %32 = arith.mulf %30, %31 : vector<128x128xf32>
    %33 = arith.addf %27, %32 : vector<128x128xf32>
    %34 = vector.extract_strided_slice %21 {offsets = [0, 2], sizes = [128, 1], strides = [1, 1]} : vector<128x3xf32> to vector<128x1xf32>
    %35 = vector.extract_strided_slice %22 {offsets = [2, 0], sizes = [1, 128], strides = [1, 1]} : vector<3x128xf32> to vector<1x128xf32>
    %36 = vector.broadcast %34 : vector<128x1xf32> to vector<128x128xf32>
    %37 = vector.broadcast %35 : vector<1x128xf32> to vector<128x128xf32>
    %38 = arith.mulf %36, %37 : vector<128x128xf32>
    %39 = arith.addf %33, %38 : vector<128x128xf32>
    %40 = vector.broadcast %3 : vector<1x128xf32> to vector<128x128xf32>
    %41 = arith.addf %39, %40 : vector<128x128xf32>
    %cst_17 = arith.constant 0.000000e+00 : f32
    %42 = vector.broadcast %cst_17 : f32 to vector<128x128xf32>
    %43 = arith.maximumf %41, %42 : vector<128x128xf32>
    %44 = arith.truncf %43 : vector<128x128xf32> to vector<128x128xbf16>
    %c0_18 = arith.constant 0 : index
    %c0_19 = arith.constant 0 : index
    %45 = vector.load %arg9[%c0_18, %c0_19] : memref<128x128xbf16, #tpu.memory_space<vmem>>, vector<128x128xbf16>
    %cst_20 = arith.constant dense<0.000000e+00> : vector<128x128xf32>
    %46 = tpu.matmul %44, %45, %cst_20 {dimension_numbers = #tpu.dot_dimension_numbers<[1], [0], [0], [1], [0, 0, 1, 1], [], []>} : vector<128x128xbf16>, vector<128x128xbf16>, vector<128x128xf32> -> vector<128x128xf32>
    %c0_21 = arith.constant 0 : index
    %c0_22 = arith.constant 0 : index
    %47 = vector.load %arg10[%c0_21, %c0_22] : memref<1x128xf32, #tpu.memory_space<vmem>>, vector<1x128xf32>
    %48 = vector.broadcast %47 : vector<1x128xf32> to vector<128x128xf32>
    %49 = arith.addf %46, %48 : vector<128x128xf32>
    %cst_23 = arith.constant 0.000000e+00 : f32
    %50 = vector.broadcast %cst_23 : f32 to vector<128x128xf32>
    %51 = arith.maximumf %49, %50 : vector<128x128xf32>
    %c0_24 = arith.constant 0 : index
    %c0_25 = arith.constant 0 : index
    %52 = vector.load %arg11[%c0_24, %c0_25] : memref<3x128xf32, #tpu.memory_space<vmem>>, vector<3x128xf32>
    %cst_26 = arith.constant dense<0.000000e+00> : vector<3x128xf32>
    %53 = tpu.matmul %52, %51, %cst_26 {dimension_numbers = #tpu.dot_dimension_numbers<[1], [1], [0], [0], [0, 0, 1, 0], [], []>} : vector<3x128xf32>, vector<128x128xf32>, vector<3x128xf32> -> vector<3x128xf32>
    %c0_27 = arith.constant 0 : index
    %c0_28 = arith.constant 0 : index
    %54 = vector.load %arg12[%c0_27, %c0_28] : memref<3x1xf32, #tpu.memory_space<vmem>>, vector<3x1xf32>
    %55 = vector.broadcast %54 : vector<3x1xf32> to vector<3x128xf32>
    %56 = arith.addf %53, %55 : vector<3x128xf32>
    %c0_29 = arith.constant 0 : index
    %c0_30 = arith.constant 0 : index
    %c0_31 = arith.constant 0 : index
    %57 = vector.load %arg13[%c0_29, %c0_30, %c0_31] : memref<1x3x128xf32, #tpu.memory_space<vmem>>, vector<1x3x128xf32>
    %58 = vector.shape_cast %57 : vector<1x3x128xf32> to vector<3x128xf32>
    %59 = vector.shape_cast %56 : vector<3x128xf32> to vector<1x3x128xf32>
    tpu.vector_store %arg13[%c0_29, %c0_30, %c0_31], %59 {strides = array<i32>} : memref<1x3x128xf32, #tpu.memory_space<vmem>>, vector<1x3x128xf32>,
    return
  }
  func.func @transform_0(%arg0: i32, %arg1: i32) -> (i32, i32) {
    %c0_i32 = arith.constant 0 : i32
    %c0_i32_0 = arith.constant 0 : i32
    return %arg0, %c0_i32 : i32, i32
  }
  func.func @transform_1(%arg0: i32, %arg1: i32) -> (i32, i32, i32) {
    %c0_i32 = arith.constant 0 : i32
    %c0_i32_0 = arith.constant 0 : i32
    %c0_i32_1 = arith.constant 0 : i32
    return %arg1, %c0_i32, %c0_i32_0 : i32, i32, i32
  }
  func.func @transform_2(%arg0: i32, %arg1: i32) -> (i32, i32) {
    %c0_i32 = arith.constant 0 : i32
    %c0_i32_0 = arith.constant 0 : i32
    %c0_i32_1 = arith.constant 0 : i32
    return %c0_i32, %c0_i32_0 : i32, i32
  }
  func.func @transform_3(%arg0: i32, %arg1: i32) -> (i32, i32) {
    %c0_i32 = arith.constant 0 : i32
    %c0_i32_0 = arith.constant 0 : i32
    %c0_i32_1 = arith.constant 0 : i32
    return %c0_i32, %c0_i32_0 : i32, i32
  }
  func.func @transform_4(%arg0: i32, %arg1: i32) -> (i32, i32) {
    %c0_i32 = arith.constant 0 : i32
    %c0_i32_0 = arith.constant 0 : i32
    %c0_i32_1 = arith.constant 0 : i32
    return %c0_i32, %c0_i32_0 : i32, i32
  }
  func.func @transform_5(%arg0: i32, %arg1: i32) -> (i32, i32) {
    %c0_i32 = arith.constant 0 : i32
    %c0_i32_0 = arith.constant 0 : i32
    %c0_i32_1 = arith.constant 0 : i32
    return %c0_i32, %c0_i32_0 : i32, i32
  }
  func.func @transform_6(%arg0: i32, %arg1: i32) -> (i32, i32) {
    %c0_i32 = arith.constant 0 : i32
    %c0_i32_0 = arith.constant 0 : i32
    %c0_i32_1 = arith.constant 0 : i32
    return %c0_i32, %c0_i32_0 : i32, i32
  }
  func.func @transform_7(%arg0: i32, %arg1: i32) -> (i32, i32) {
    %c0_i32 = arith.constant 0 : i32
    %c0_i32_0 = arith.constant 0 : i32
    %c0_i32_1 = arith.constant 0 : i32
    return %c0_i32, %c0_i32_0 : i32, i32
  }
  func.func @transform_8(%arg0: i32, %arg1: i32) -> (i32, i32) {
    %c0_i32 = arith.constant 0 : i32
    %c0_i32_0 = arith.constant 0 : i32
    %c0_i32_1 = arith.constant 0 : i32
    return %c0_i32, %c0_i32_0 : i32, i32
  }
  func.func @transform_9(%arg0: i32, %arg1: i32) -> (i32, i32) {
    %c0_i32 = arith.constant 0 : i32
    %c0_i32_0 = arith.constant 0 : i32
    %c0_i32_1 = arith.constant 0 : i32
    return %c0_i32, %c0_i32_0 : i32, i32
  }
  func.func @transform_10(%arg0: i32, %arg1: i32) -> (i32, i32) {
    %c0_i32 = arith.constant 0 : i32
    %c0_i32_0 = arith.constant 0 : i32
    %c0_i32_1 = arith.constant 0 : i32
    return %c0_i32, %c0_i32_0 : i32, i32
  }
  func.func @transform_11(%arg0: i32, %arg1: i32) -> (i32, i32, i32) {
    %c0_i32 = arith.constant 0 : i32
    %c0_i32_0 = arith.constant 0 : i32
    return %arg1, %c0_i32, %arg0 : i32, i32, i32
  }
}

module attributes {stable_mosaic.version = 11 : i64} {
  func.func @_fold_kernel(%arg0: i32, %arg1: i32, %arg2: memref<128x128xf32, #tpu.memory_space<vmem>>, %arg3: memref<1x2x128xf32, #tpu.memory_space<vmem>>, %arg4: memref<128x128xbf16, #tpu.memory_space<vmem>>, %arg5: memref<1x128xf32, #tpu.memory_space<vmem>>, %arg6: memref<128x3xf32, #tpu.memory_space<vmem>>, %arg7: memref<1x3xf32, #tpu.memory_space<vmem>>, %arg8: memref<3x128xf32, #tpu.memory_space<vmem>>, %arg9: memref<128x128xbf16, #tpu.memory_space<vmem>>, %arg10: memref<1x128xf32, #tpu.memory_space<vmem>>, %arg11: memref<3x128xf32, #tpu.memory_space<vmem>>, %arg12: memref<3x1xf32, #tpu.memory_space<vmem>>, %arg13: memref<1x3x128xf32, #tpu.memory_space<vmem>>) attributes {dimension_semantics = [#tpu.dimension_semantics<parallel>, #tpu.dimension_semantics<parallel>], iteration_bounds = array<i64: 1, 2>, scalar_prefetch = 0 : i64, scratch_operands = 0 : i64, tpu.core_type = #tpu.core_type<tc>, window_params = [{transform_indices = @transform_0, window_bounds = array<i64: 128, 128>}, {transform_indices = @transform_1, window_bounds = array<i64: 1, 2, 128>}, {pipeline_mode = #tpu.pipeline_mode<synchronous>, transform_indices = @transform_2, window_bounds = array<i64: 128, 128>}, {pipeline_mode = #tpu.pipeline_mode<synchronous>, transform_indices = @transform_3, window_bounds = array<i64: 1, 128>}, {pipeline_mode = #tpu.pipeline_mode<synchronous>, transform_indices = @transform_4, window_bounds = array<i64: 128, 3>}, {pipeline_mode = #tpu.pipeline_mode<synchronous>, transform_indices = @transform_5, window_bounds = array<i64: 1, 3>}, {pipeline_mode = #tpu.pipeline_mode<synchronous>, transform_indices = @transform_6, window_bounds = array<i64: 3, 128>}, {pipeline_mode = #tpu.pipeline_mode<synchronous>, transform_indices = @transform_7, window_bounds = array<i64: 128, 128>}, {pipeline_mode = #tpu.pipeline_mode<synchronous>, transform_indices = @transform_8, window_bounds = array<i64: 1, 128>}, {pipeline_mode = #tpu.pipeline_mode<synchronous>, transform_indices = @transform_9, window_bounds = array<i64: 3, 128>}, {pipeline_mode = #tpu.pipeline_mode<synchronous>, transform_indices = @transform_10, window_bounds = array<i64: 3, 1>}, {transform_indices = @transform_11, window_bounds = array<i64: 1, 3, 128>}]} {
    %c0 = arith.constant 0 : index
    %c0_0 = arith.constant 0 : index
    %c0_1 = arith.constant 0 : index
    %0 = vector.load %arg3[%c0, %c0_0, %c0_1] : memref<1x2x128xf32, #tpu.memory_space<vmem>>, vector<1x2x128xf32>
    %1 = vector.shape_cast %0 : vector<1x2x128xf32> to vector<2x128xf32>
    %2 = vector.extract_strided_slice %1 {offsets = [0, 0], sizes = [1, 128], strides = [1, 1]} : vector<2x128xf32> to vector<1x128xf32>
    %3 = vector.extract_strided_slice %1 {offsets = [1, 0], sizes = [1, 128], strides = [1, 1]} : vector<2x128xf32> to vector<1x128xf32>
    %c0_2 = arith.constant 0 : index
    %c0_3 = arith.constant 0 : index
    %4 = vector.load %arg2[%c0_2, %c0_3] : memref<128x128xf32, #tpu.memory_space<vmem>>, vector<128x128xf32>
    %5 = vector.broadcast %2 : vector<1x128xf32> to vector<128x128xf32>
    %6 = arith.addf %4, %5 : vector<128x128xf32>
    %cst = arith.constant 0.000000e+00 : f32
    %7 = vector.broadcast %cst : f32 to vector<128x128xf32>
    %8 = arith.maximumf %6, %7 : vector<128x128xf32>
    %9 = arith.truncf %8 : vector<128x128xf32> to vector<128x128xbf16>
    %c0_4 = arith.constant 0 : index
    %c0_5 = arith.constant 0 : index
    %10 = vector.load %arg4[%c0_4, %c0_5] : memref<128x128xbf16, #tpu.memory_space<vmem>>, vector<128x128xbf16>
    %cst_6 = arith.constant dense<0.000000e+00> : vector<128x128xf32>
    %11 = tpu.matmul %9, %10, %cst_6 {dimension_numbers = #tpu.dot_dimension_numbers<[1], [0], [0], [1], [0, 0, 1, 1], [], []>} : vector<128x128xbf16>, vector<128x128xbf16>, vector<128x128xf32> -> vector<128x128xf32>
    %c0_7 = arith.constant 0 : index
    %c0_8 = arith.constant 0 : index
    %12 = vector.load %arg5[%c0_7, %c0_8] : memref<1x128xf32, #tpu.memory_space<vmem>>, vector<1x128xf32>
    %13 = vector.broadcast %12 : vector<1x128xf32> to vector<128x128xf32>
    %14 = arith.addf %11, %13 : vector<128x128xf32>
    %cst_9 = arith.constant 0.000000e+00 : f32
    %15 = vector.broadcast %cst_9 : f32 to vector<128x128xf32>
    %16 = arith.maximumf %14, %15 : vector<128x128xf32>
    %c0_10 = arith.constant 0 : index
    %c0_11 = arith.constant 0 : index
    %17 = vector.load %arg6[%c0_10, %c0_11] : memref<128x3xf32, #tpu.memory_space<vmem>>, vector<128x3xf32>
    %cst_12 = arith.constant dense<0.000000e+00> : vector<128x3xf32>
    %18 = tpu.matmul %16, %17, %cst_12 {dimension_numbers = #tpu.dot_dimension_numbers<[1], [0], [0], [1], [0, 0, 1, 1], [], []>} : vector<128x128xf32>, vector<128x3xf32>, vector<128x3xf32> -> vector<128x3xf32>
    %c0_13 = arith.constant 0 : index
    %c0_14 = arith.constant 0 : index
    %19 = vector.load %arg7[%c0_13, %c0_14] : memref<1x3xf32, #tpu.memory_space<vmem>>, vector<1x3xf32>
    %20 = vector.broadcast %19 : vector<1x3xf32> to vector<128x3xf32>
    %21 = arith.addf %18, %20 : vector<128x3xf32>
    %c0_15 = arith.constant 0 : index
    %c0_16 = arith.constant 0 : index
    %22 = vector.load %arg8[%c0_15, %c0_16] : memref<3x128xf32, #tpu.memory_space<vmem>>, vector<3x128xf32>
    %23 = vector.extract_strided_slice %21 {offsets = [0, 0], sizes = [128, 1], strides = [1, 1]} : vector<128x3xf32> to vector<128x1xf32>
    %24 = vector.extract_strided_slice %22 {offsets = [0, 0], sizes = [1, 128], strides = [1, 1]} : vector<3x128xf32> to vector<1x128xf32>
    %25 = vector.broadcast %23 : vector<128x1xf32> to vector<128x128xf32>
    %26 = vector.broadcast %24 : vector<1x128xf32> to vector<128x128xf32>
    %27 = arith.mulf %25, %26 : vector<128x128xf32>
    %28 = vector.extract_strided_slice %21 {offsets = [0, 1], sizes = [128, 1], strides = [1, 1]} : vector<128x3xf32> to vector<128x1xf32>
    %29 = vector.extract_strided_slice %22 {offsets = [1, 0], sizes = [1, 128], strides = [1, 1]} : vector<3x128xf32> to vector<1x128xf32>
    %30 = vector.broadcast %28 : vector<128x1xf32> to vector<128x128xf32>
    %31 = vector.broadcast %29 : vector<1x128xf32> to vector<128x128xf32>
    %32 = arith.mulf %30, %31 : vector<128x128xf32>
    %33 = arith.addf %27, %32 : vector<128x128xf32>
    %34 = vector.extract_strided_slice %21 {offsets = [0, 2], sizes = [128, 1], strides = [1, 1]} : vector<128x3xf32> to vector<128x1xf32>
    %35 = vector.extract_strided_slice %22 {offsets = [2, 0], sizes = [1, 128], strides = [1, 1]} : vector<3x128xf32> to vector<1x128xf32>
    %36 = vector.broadcast %34 : vector<128x1xf32> to vector<128x128xf32>
    %37 = vector.broadcast %35 : vector<1x128xf32> to vector<128x128xf32>
    %38 = arith.mulf %36, %37 : vector<128x128xf32>
    %39 = arith.addf %33, %38 : vector<128x128xf32>
    %40 = vector.broadcast %3 : vector<1x128xf32> to vector<128x128xf32>
    %41 = arith.addf %39, %40 : vector<128x128xf32>
    %cst_17 = arith.constant 0.000000e+00 : f32
    %42 = vector.broadcast %cst_17 : f32 to vector<128x128xf32>
    %43 = arith.maximumf %41, %42 : vector<128x128xf32>
    %44 = arith.truncf %43 : vector<128x128xf32> to vector<128x128xbf16>
    %c0_18 = arith.constant 0 : index
    %c0_19 = arith.constant 0 : index
    %45 = vector.load %arg9[%c0_18, %c0_19] : memref<128x128xbf16, #tpu.memory_space<vmem>>, vector<128x128xbf16>
    %cst_20 = arith.constant dense<0.000000e+00> : vector<128x128xf32>
    %46 = tpu.matmul %44, %45, %cst_20 {dimension_numbers = #tpu.dot_dimension_numbers<[1], [0], [0], [1], [0, 0, 1, 1], [], []>} : vector<128x128xbf16>, vector<128x128xbf16>, vector<128x128xf32> -> vector<128x128xf32>
    %c0_21 = arith.constant 0 : index
    %c0_22 = arith.constant 0 : index
    %47 = vector.load %arg10[%c0_21, %c0_22] : memref<1x128xf32, #tpu.memory_space<vmem>>, vector<1x128xf32>
    %48 = vector.broadcast %47 : vector<1x128xf32> to vector<128x128xf32>
    %49 = arith.addf %46, %48 : vector<128x128xf32>
    %cst_23 = arith.constant 0.000000e+00 : f32
    %50 = vector.broadcast %cst_23 : f32 to vector<128x128xf32>
    %51 = arith.maximumf %49, %50 : vector<128x128xf32>
    %c0_24 = arith.constant 0 : index
    %c0_25 = arith.constant 0 : index
    %52 = vector.load %arg11[%c0_24, %c0_25] : memref<3x128xf32, #tpu.memory_space<vmem>>, vector<3x128xf32>
    %cst_26 = arith.constant dense<0.000000e+00> : vector<3x128xf32>
    %53 = tpu.matmul %52, %51, %cst_26 {dimension_numbers = #tpu.dot_dimension_numbers<[1], [1], [0], [0], [0, 0, 1, 0], [], []>} : vector<3x128xf32>, vector<128x128xf32>, vector<3x128xf32> -> vector<3x128xf32>
    %c0_27 = arith.constant 0 : index
    %c0_28 = arith.constant 0 : index
    %54 = vector.load %arg12[%c0_27, %c0_28] : memref<3x1xf32, #tpu.memory_space<vmem>>, vector<3x1xf32>
    %55 = vector.broadcast %54 : vector<3x1xf32> to vector<3x128xf32>
    %56 = arith.addf %53, %55 : vector<3x128xf32>
    %c0_29 = arith.constant 0 : index
    %c0_30 = arith.constant 0 : index
    %c0_31 = arith.constant 0 : index
    %57 = vector.load %arg13[%c0_29, %c0_30, %c0_31] : memref<1x3x128xf32, #tpu.memory_space<vmem>>, vector<1x3x128xf32>
    %58 = vector.shape_cast %57 : vector<1x3x128xf32> to vector<3x128xf32>
    %59 = vector.shape_cast %56 : vector<3x128xf32> to vector<1x3x128xf32>
    tpu.vector_store %arg13[%c0_29, %c0_30, %c0_31], %59 {strides = array<i32>} : memref<1x3x128xf32, #tpu.memory_space<vmem>>, vector<1x3x128xf32>,
    return
  }
  func.func @transform_0(%arg0: i32, %arg1: i32) -> (i32, i32) {
    %c0_i32 = arith.constant 0 : i32
    %c0_i32_0 = arith.constant 0 : i32
    return %arg0, %c0_i32 : i32, i32
  }
  func.func @transform_1(%arg0: i32, %arg1: i32) -> (i32, i32, i32) {
    %c0_i32 = arith.constant 0 : i32
    %c0_i32_0 = arith.constant 0 : i32
    %c0_i32_1 = arith.constant 0 : i32
    return %arg1, %c0_i32, %c0_i32_0 : i32, i32, i32
  }
  func.func @transform_2(%arg0: i32, %arg1: i32) -> (i32, i32) {
    %c0_i32 = arith.constant 0 : i32
    %c0_i32_0 = arith.constant 0 : i32
    %c0_i32_1 = arith.constant 0 : i32
    return %c0_i32, %c0_i32_0 : i32, i32
  }
  func.func @transform_3(%arg0: i32, %arg1: i32) -> (i32, i32) {
    %c0_i32 = arith.constant 0 : i32
    %c0_i32_0 = arith.constant 0 : i32
    %c0_i32_1 = arith.constant 0 : i32
    return %c0_i32, %c0_i32_0 : i32, i32
  }
  func.func @transform_4(%arg0: i32, %arg1: i32) -> (i32, i32) {
    %c0_i32 = arith.constant 0 : i32
    %c0_i32_0 = arith.constant 0 : i32
    %c0_i32_1 = arith.constant 0 : i32
    return %c0_i32, %c0_i32_0 : i32, i32
  }
  func.func @transform_5(%arg0: i32, %arg1: i32) -> (i32, i32) {
    %c0_i32 = arith.constant 0 : i32
    %c0_i32_0 = arith.constant 0 : i32
    %c0_i32_1 = arith.constant 0 : i32
    return %c0_i32, %c0_i32_0 : i32, i32
  }
  func.func @transform_6(%arg0: i32, %arg1: i32) -> (i32, i32) {
    %c0_i32 = arith.constant 0 : i32
    %c0_i32_0 = arith.constant 0 : i32
    %c0_i32_1 = arith.constant 0 : i32
    return %c0_i32, %c0_i32_0 : i32, i32
  }
  func.func @transform_7(%arg0: i32, %arg1: i32) -> (i32, i32) {
    %c0_i32 = arith.constant 0 : i32
    %c0_i32_0 = arith.constant 0 : i32
    %c0_i32_1 = arith.constant 0 : i32
    return %c0_i32, %c0_i32_0 : i32, i32
  }
  func.func @transform_8(%arg0: i32, %arg1: i32) -> (i32, i32) {
    %c0_i32 = arith.constant 0 : i32
    %c0_i32_0 = arith.constant 0 : i32
    %c0_i32_1 = arith.constant 0 : i32
    return %c0_i32, %c0_i32_0 : i32, i32
  }
  func.func @transform_9(%arg0: i32, %arg1: i32) -> (i32, i32) {
    %c0_i32 = arith.constant 0 : i32
    %c0_i32_0 = arith.constant 0 : i32
    %c0_i32_1 = arith.constant 0 : i32
    return %c0_i32, %c0_i32_0 : i32, i32
  }
  func.func @transform_10(%arg0: i32, %arg1: i32) -> (i32, i32) {
    %c0_i32 = arith.constant 0 : i32
    %c0_i32_0 = arith.constant 0 : i32
    %c0_i32_1 = arith.constant 0 : i32
    return %c0_i32, %c0_i32_0 : i32, i32
  }
  func.func @transform_11(%arg0: i32, %arg1: i32) -> (i32, i32, i32) {
    %c0_i32 = arith.constant 0 : i32
    %c0_i32_0 = arith.constant 0 : i32
    return %arg1, %c0_i32, %arg0 : i32, i32, i32
  }
}

</mosaic_0001>

<llo_original>
// kernel: tpu_custom_call.1
$region0: #{tpu_custom_call.1}
  #allocation0 [shape = 'u32[]', space=smem, size = 0x4, offset = 0x4, fixed_abs, tag = 'smem constant byte address 0x4 - core index']
  #allocation1 [shape = 'u32[144,128]{1,0:T(1,128)}', space=vmem, size = 0x12000, scoped, tag = 'internal scratch']
  %s0 = inlined_call_operand.vmem [shape: f32[128,128], index: 0, kind: input, shape index: {}]
  %s1 = inlined_call_operand.vmem [shape: f32[2,2,128], index: 1, kind: input, shape index: {}]
  %s2 = inlined_call_operand.hbm [shape: bf16[128,128], index: 2, kind: input, shape index: {}]
  %s3 = inlined_call_operand.vmem [shape: f32[1,128], index: 3, kind: input, shape index: {}]
  %s4 = inlined_call_operand.vmem [shape: f32[128,3], index: 4, kind: input, shape index: {}]
  %s5 = inlined_call_operand.vmem [shape: f32[1,3], index: 5, kind: input, shape index: {}]
  %s6 = inlined_call_operand.vmem [shape: f32[3,128], index: 6, kind: input, shape index: {}]
  %s7 = inlined_call_operand.hbm [shape: bf16[128,128], index: 7, kind: input, shape index: {}]
  %s8 = inlined_call_operand.vmem [shape: f32[1,128], index: 8, kind: input, shape index: {}]
  %s9 = inlined_call_operand.vmem [shape: f32[3,128], index: 9, kind: input, shape index: {}]
  %s10 = inlined_call_operand.vmem [shape: f32[3,1], index: 10, kind: input, shape index: {}]
  %s11 = inlined_call_operand.vmem [shape: f32[2,3,128], index: 11, kind: output, shape index: {}]
  %s12 = sld [smem:[#allocation0]]
  $region85: #{tpu_custom_call.1} parent=0
    _
  %s14 = ssub.s32 1, %s12
  %s15 = scalar_select 0, %s14, %s12
  $region1: #{tpu_custom_call.1} parent=0
    #allocation2 [shape = 'u8[32768]{0}', space=vmem, size = 0x8000, scoped, tag = 'input window, operand 2, single buffered']
    #allocation3 [shape = 's32[2]{0}', space=sflag, size = 0x8, scoped, tag = 'scoped memory for tpu_custom_call.1']
    #allocation4 [shape = 'u8[32768]{0}', space=vmem, size = 0x8000, scoped, tag = 'input window, operand 7, single buffered']
    #allocation5 [shape = 's32[1]{0}', space=sflag, size = 0x4, scoped, tag = 'scoped memory for tpu_custom_call.1']
    %16 = vsyncpa [#allocation3], 0
    %17 = vsyncpa [#allocation5], 0
    loop: start=0, step=1, limit=4
    $region2: #{tpu_custom_call.1} parent=1 // loop_pre_header
      _
    $region3: #{tpu_custom_call.1} parent=1 // loop_header
      %s19 = sphi 0, %s23
      %p20 = scmp.ge.s32.totalorder %s19, 4
      %s26 = sphi 0, %s38
      %s27 = sphi 0, %s34
      %s28 = sphi 0, %s26
      %s29 = sphi 0, %s27
      %s30 = sphi 0, %s28
      %s31 = sphi 0, %s29
      %s41 = sphi 0, %s43
      %s44 = sphi 0, %s41
      %s45 = sphi 0, %s44
      %s61 = sphi 0, %s45
      %s67 = sphi 0, %s69
      %s70 = sphi 0, %s67
      %s71 = sphi 0, %s70
      %s87 = sphi 0, %s71
      %s91 = sphi 0, %s91
      %s93 = sphi 0, %s91
      %s94 = sphi 0, %s93
      %s108 = sphi 0, %s94
      %s112 = sphi 0, %s112
      %s114 = sphi 0, %s112
      %s115 = sphi 0, %s114
      %s129 = sphi 0, %s115
      %s133 = sphi 0, %s133
      %s135 = sphi 0, %s133
      %s136 = sphi 0, %s135
      %s150 = sphi 0, %s136
      %s154 = sphi 0, %s154
      %s156 = sphi 0, %s154
      %s157 = sphi 0, %s156
      %s171 = sphi 0, %s157
      %s175 = sphi 0, %s175
      %s177 = sphi 0, %s175
      %s178 = sphi 0, %s177
      %s192 = sphi 0, %s178
      %s196 = sphi 0, %s196
      %s198 = sphi 0, %s196
      %s199 = sphi 0, %s198
      %s213 = sphi 0, %s199
      %s217 = sphi 0, %s217
      %s219 = sphi 0, %s217
      %s220 = sphi 0, %s219
      %s234 = sphi 0, %s220
      %s238 = sphi 0, %s238
      %s240 = sphi 0, %s238
      %s241 = sphi 0, %s240
      %s255 = sphi 0, %s241
      %s259 = sphi 0, %s259
      %s261 = sphi 0, %s259
      %s262 = sphi 0, %s261
      %s276 = sphi 0, %s262
      %s284 = sphi 0, %s286
      %s287 = sphi 0, %s284
      %s288 = sphi 0, %s287
      %s304 = sphi 0, %s288
    $region4: #{tpu_custom_call.1} parent=1 // loop_header_branch
      %22 = sbr.rel (%p20) target = $region8
    $region5: #{tpu_custom_call.1} parent=1 // loop_body
      %s24 = ssub.s32 %s19, 1
      %s25 = ssub.s32 %s19, 2
      %s32 = sadd.s32 1, %s27
      %p33 = scmp.ge.s32.totalorder %s32, 2
      %s34 = scalar_select %p33, 0, %s32
      %s35 = sadd.s32 1, %s26
      %s36 = scalar_select %p33, %s35, %s26
      %p37 = scmp.ge.s32.totalorder %s36, 1
      %s38 = scalar_select %p37, 0, %s36
      %s39 = ssub.s32 %s26, %s38
      %p40 = scmp.eq.s32.totalorder %s39, 0
      %s42 = sadd.s32 %s41, 1
      %s43 = scalar_select %p40, %s41, %s42
      %p46 = pneg %p40
      %p47 = scmp.eq.s32.totalorder %s19, 1
      %p48 = por %p46, %p47
      %p49 = scmp.ne.s32.totalorder %s41, %s44
      %p50 = scmp.eq.s32.totalorder %s19, 0
      %p51 = por %p49, %p50
      %p52 = scmp.ne.s32.totalorder %s41, %s44
      %p53 = scmp.eq.s32.totalorder %s24, 1
      %p54 = por %p52, %p53
      %p55 = scmp.ne.s32.totalorder %s44, %s45
      %p56 = scmp.eq.s32.totalorder %s24, 0
      %p57 = por %p55, %p56
      %p58 = scmp.ne.s32.totalorder %s44, %s45
      %p59 = scmp.eq.s32.totalorder %s25, 1
      %p60 = por %p58, %p59
      %p62 = scmp.ne.s32.totalorder %s45, %s61
      %p63 = scmp.eq.s32.totalorder %s25, 0
      %p64 = por %p62, %p63
      %s65 = ssub.s32 %s27, %s34
      %p66 = scmp.eq.s32.totalorder %s65, 0
      %s68 = sadd.s32 %s67, 1
      %s69 = scalar_select %p66, %s67, %s68
      %p72 = pneg %p66
      %p73 = scmp.eq.s32.totalorder %s19, 1
      %p74 = por %p72, %p73
      %p75 = scmp.ne.s32.totalorder %s67, %s70
      %p76 = scmp.eq.s32.totalorder %s19, 0
      %p77 = por %p75, %p76
      %p78 = scmp.ne.s32.totalorder %s67, %s70
      %p79 = scmp.eq.s32.totalorder %s24, 1
      %p80 = por %p78, %p79
      %p81 = scmp.ne.s32.totalorder %s70, %s71
      %p82 = scmp.eq.s32.totalorder %s24, 0
      %p83 = por %p81, %p82
      %p84 = scmp.ne.s32.totalorder %s70, %s71
      %p85 = scmp.eq.s32.totalorder %s25, 1
      %p86 = por %p84, %p85
      %p88 = scmp.ne.s32.totalorder %s71, %s87
      %p89 = scmp.eq.s32.totalorder %s25, 0
      %p90 = por %p88, %p89
      %s92 = sadd.s32 %s91, 1
      %p95 = scmp.eq.s32.totalorder %s19, 1
      %p96 = scmp.ne.s32.totalorder %s91, %s93
      %p97 = scmp.eq.s32.totalorder %s19, 0
      %p98 = por %p96, %p97
      %p99 = scmp.ne.s32.totalorder %s91, %s93
      %p100 = scmp.eq.s32.totalorder %s24, 1
      %p101 = por %p99, %p100
      %p102 = scmp.ne.s32.totalorder %s93, %s94
      %p103 = scmp.eq.s32.totalorder %s24, 0
      %p104 = por %p102, %p103
      %p105 = scmp.ne.s32.totalorder %s93, %s94
      %p106 = scmp.eq.s32.totalorder %s25, 1
      %p107 = por %p105, %p106
      %p109 = scmp.ne.s32.totalorder %s94, %s108
      %p110 = scmp.eq.s32.totalorder %s25, 0
      %p111 = por %p109, %p110
      %s113 = sadd.s32 %s112, 1
      %p116 = scmp.eq.s32.totalorder %s19, 1
      %p117 = scmp.ne.s32.totalorder %s112, %s114
      %p118 = scmp.eq.s32.totalorder %s19, 0
      %p119 = por %p117, %p118
      %p120 = scmp.ne.s32.totalorder %s112, %s114
      %p121 = scmp.eq.s32.totalorder %s24, 1
      %p122 = por %p120, %p121
      %p123 = scmp.ne.s32.totalorder %s114, %s115
      %p124 = scmp.eq.s32.totalorder %s24, 0
      %p125 = por %p123, %p124
      %p126 = scmp.ne.s32.totalorder %s114, %s115
      %p127 = scmp.eq.s32.totalorder %s25, 1
      %p128 = por %p126, %p127
      %p130 = scmp.ne.s32.totalorder %s115, %s129
      %p131 = scmp.eq.s32.totalorder %s25, 0
      %p132 = por %p130, %p131
      %s134 = sadd.s32 %s133, 1
      %p137 = scmp.eq.s32.totalorder %s19, 1
      %p138 = scmp.ne.s32.totalorder %s133, %s135
      %p139 = scmp.eq.s32.totalorder %s19, 0
      %p140 = por %p138, %p139
      %p141 = scmp.ne.s32.totalorder %s133, %s135
      %p142 = scmp.eq.s32.totalorder %s24, 1
      %p143 = por %p141, %p142
      %p144 = scmp.ne.s32.totalorder %s135, %s136
      %p145 = scmp.eq.s32.totalorder %s24, 0
      %p146 = por %p144, %p145
      %p147 = scmp.ne.s32.totalorder %s135, %s136
      %p148 = scmp.eq.s32.totalorder %s25, 1
      %p149 = por %p147, %p148
      %p151 = scmp.ne.s32.totalorder %s136, %s150
      %p152 = scmp.eq.s32.totalorder %s25, 0
      %p153 = por %p151, %p152
      %s155 = sadd.s32 %s154, 1
      %p158 = scmp.eq.s32.totalorder %s19, 1
      %p159 = scmp.ne.s32.totalorder %s154, %s156
      %p160 = scmp.eq.s32.totalorder %s19, 0
      %p161 = por %p159, %p160
      %p162 = scmp.ne.s32.totalorder %s154, %s156
      %p163 = scmp.eq.s32.totalorder %s24, 1
      %p164 = por %p162, %p163
      %p165 = scmp.ne.s32.totalorder %s156, %s157
      %p166 = scmp.eq.s32.totalorder %s24, 0
      %p167 = por %p165, %p166
      %p168 = scmp.ne.s32.totalorder %s156, %s157
      %p169 = scmp.eq.s32.totalorder %s25, 1
      %p170 = por %p168, %p169
      %p172 = scmp.ne.s32.totalorder %s157, %s171
      %p173 = scmp.eq.s32.totalorder %s25, 0
      %p174 = por %p172, %p173
      %s176 = sadd.s32 %s175, 1
      %p179 = scmp.eq.s32.totalorder %s19, 1
      %p180 = scmp.ne.s32.totalorder %s175, %s177
      %p181 = scmp.eq.s32.totalorder %s19, 0
      %p182 = por %p180, %p181
      %p183 = scmp.ne.s32.totalorder %s175, %s177
      %p184 = scmp.eq.s32.totalorder %s24, 1
      %p185 = por %p183, %p184
      %p186 = scmp.ne.s32.totalorder %s177, %s178
      %p187 = scmp.eq.s32.totalorder %s24, 0
      %p188 = por %p186, %p187
      %p189 = scmp.ne.s32.totalorder %s177, %s178
      %p190 = scmp.eq.s32.totalorder %s25, 1
      %p191 = por %p189, %p190
      %p193 = scmp.ne.s32.totalorder %s178, %s192
      %p194 = scmp.eq.s32.totalorder %s25, 0
      %p195 = por %p193, %p194
      %s197 = sadd.s32 %s196, 1
      %p200 = scmp.eq.s32.totalorder %s19, 1
      %p201 = scmp.ne.s32.totalorder %s196, %s198
      %p202 = scmp.eq.s32.totalorder %s19, 0
      %p203 = por %p201, %p202
      %p204 = scmp.ne.s32.totalorder %s196, %s198
      %p205 = scmp.eq.s32.totalorder %s24, 1
      %p206 = por %p204, %p205
      %p207 = scmp.ne.s32.totalorder %s198, %s199
      %p208 = scmp.eq.s32.totalorder %s24, 0
      %p209 = por %p207, %p208
      %p210 = scmp.ne.s32.totalorder %s198, %s199
      %p211 = scmp.eq.s32.totalorder %s25, 1
      %p212 = por %p210, %p211
      %p214 = scmp.ne.s32.totalorder %s199, %s213
      %p215 = scmp.eq.s32.totalorder %s25, 0
      %p216 = por %p214, %p215
      %s218 = sadd.s32 %s217, 1
      %p221 = scmp.eq.s32.totalorder %s19, 1
      %p222 = scmp.ne.s32.totalorder %s217, %s219
      %p223 = scmp.eq.s32.totalorder %s19, 0
      %p224 = por %p222, %p223
      %p225 = scmp.ne.s32.totalorder %s217, %s219
      %p226 = scmp.eq.s32.totalorder %s24, 1
      %p227 = por %p225, %p226
      %p228 = scmp.ne.s32.totalorder %s219, %s220
      %p229 = scmp.eq.s32.totalorder %s24, 0
      %p230 = por %p228, %p229
      %p231 = scmp.ne.s32.totalorder %s219, %s220
      %p232 = scmp.eq.s32.totalorder %s25, 1
      %p233 = por %p231, %p232
      %p235 = scmp.ne.s32.totalorder %s220, %s234
      %p236 = scmp.eq.s32.totalorder %s25, 0
      %p237 = por %p235, %p236
      %s239 = sadd.s32 %s238, 1
      %p242 = scmp.eq.s32.totalorder %s19, 1
      %p243 = scmp.ne.s32.totalorder %s238, %s240
      %p244 = scmp.eq.s32.totalorder %s19, 0
      %p245 = por %p243, %p244
      %p246 = scmp.ne.s32.totalorder %s238, %s240
      %p247 = scmp.eq.s32.totalorder %s24, 1
      %p248 = por %p246, %p247
      %p249 = scmp.ne.s32.totalorder %s240, %s241
      %p250 = scmp.eq.s32.totalorder %s24, 0
      %p251 = por %p249, %p250
      %p252 = scmp.ne.s32.totalorder %s240, %s241
      %p253 = scmp.eq.s32.totalorder %s25, 1
      %p254 = por %p252, %p253
      %p256 = scmp.ne.s32.totalorder %s241, %s255
      %p257 = scmp.eq.s32.totalorder %s25, 0
      %p258 = por %p256, %p257
      %s260 = sadd.s32 %s259, 1
      %p263 = scmp.eq.s32.totalorder %s19, 1
      %p264 = scmp.ne.s32.totalorder %s259, %s261
      %p265 = scmp.eq.s32.totalorder %s19, 0
      %p266 = por %p264, %p265
      %p267 = scmp.ne.s32.totalorder %s259, %s261
      %p268 = scmp.eq.s32.totalorder %s24, 1
      %p269 = por %p267, %p268
      %p270 = scmp.ne.s32.totalorder %s261, %s262
      %p271 = scmp.eq.s32.totalorder %s24, 0
      %p272 = por %p270, %p271
      %p273 = scmp.ne.s32.totalorder %s261, %s262
      %p274 = scmp.eq.s32.totalorder %s25, 1
      %p275 = por %p273, %p274
      %p277 = scmp.ne.s32.totalorder %s262, %s276
      %p278 = scmp.eq.s32.totalorder %s25, 0
      %p279 = por %p277, %p278
      %s280 = ssub.s32 %s27, %s34
      %s281 = ssub.s32 %s26, %s38
      %s282 = sor.u32 %s280, %s281
      %p283 = scmp.eq.s32.totalorder %s282, 0
      %s285 = sadd.s32 %s284, 1
      %s286 = scalar_select %p283, %s284, %s285
      %p289 = pneg %p283
      %p290 = scmp.eq.s32.totalorder %s19, 1
      %p291 = por %p289, %p290
      %p292 = scmp.ne.s32.totalorder %s284, %s287
      %p293 = scmp.eq.s32.totalorder %s19, 0
      %p294 = por %p292, %p293
      %p295 = scmp.ne.s32.totalorder %s284, %s287
      %p296 = scmp.eq.s32.totalorder %s24, 1
      %p297 = por %p295, %p296
      %p298 = scmp.ne.s32.totalorder %s287, %s288
      %p299 = scmp.eq.s32.totalorder %s24, 0
      %p300 = por %p298, %p299
      %p301 = scmp.ne.s32.totalorder %s287, %s288
      %p302 = scmp.eq.s32.totalorder %s25, 1
      %p303 = por %p301, %p302
      %p305 = scmp.ne.s32.totalorder %s288, %s304
      %p306 = scmp.eq.s32.totalorder %s25, 0
      %p307 = por %p305, %p306
      %p308 = scmp.le.s32.totalorder 1, %s19
      %p309 = scmp.lt.s32.totalorder %s19, 3
      %p310 = pnand %p308, %p309
      %p311 = pneg %p310
      // Predicated region
      $region9: #{tpu_custom_call.1} parent=5 // pred_check
        _
      $region10: #{tpu_custom_call.1} parent=5 // pred_check_branch
        %313 = sbr.rel (%p310) target = $region12
      $region11: #{tpu_custom_call.1} parent=5 // pred_region
        %s314 = ssub.s32 %s19, 1
        // Predicated region
        $region13: #{tpu_custom_call.1} parent=11 // pred_check
          %p315 = pneg %p57
        $region14: #{tpu_custom_call.1} parent=11 // pred_check_branch
          %317 = sbr.rel (%p315) target = $region16
        $region15: #{tpu_custom_call.1} parent=11 // pred_region
          %s318 = smul.u32 16, %s28
          %p319 = scmp.lt.s32.totalorder %s318, 15
          %s320 = scalar_select %p319, %s318, 15
          %s321 = smul.addr %s320, 8
          %s322 = scalar_lea.vmem %s0, %s321
          %s323 = smul.u32 16, %s28
        $region16: #{tpu_custom_call.1} parent=11 // pred_fallthru
          _
        // Predicated region
        $region17: #{tpu_custom_call.1} parent=11 // pred_check
          %p324 = pneg %p104
        $region18: #{tpu_custom_call.1} parent=11 // pred_check_branch
          %326 = sbr.rel (%p324) target = $region20
        $region19: #{tpu_custom_call.1} parent=11 // pred_region
          %s328 = ssub.s32 1024, 1024
          %329 = vsyncadd [#allocation3], %s328
          %s330 = sshll.u32 [#allocation2], 4
          %s331 = int_to_ptr.vmem [resolvable:$true] %s330
          %336 = dma.hbm_to_vmem [thread:$0]  %s2, 1024, %s331, [#allocation3], 64, 64, 4
        $region20: #{tpu_custom_call.1} parent=11 // pred_fallthru
          _
        // Predicated region
        $region21: #{tpu_custom_call.1} parent=11 // pred_check
          %p337 = pneg %p125
        $region22: #{tpu_custom_call.1} parent=11 // pred_check_branch
          %339 = sbr.rel (%p337) target = $region24
        $region23: #{tpu_custom_call.1} parent=11 // pred_region
          _
        $region24: #{tpu_custom_call.1} parent=11 // pred_fallthru
          _
        // Predicated region
        $region25: #{tpu_custom_call.1} parent=11 // pred_check
          %p340 = pneg %p146
        $region26: #{tpu_custom_call.1} parent=11 // pred_check_branch
          %342 = sbr.rel (%p340) target = $region28
        $region27: #{tpu_custom_call.1} parent=11 // pred_region
          _
        $region28: #{tpu_custom_call.1} parent=11 // pred_fallthru
          _
        // Predicated region
        $region29: #{tpu_custom_call.1} parent=11 // pred_check
          %p343 = pneg %p167
        $region30: #{tpu_custom_call.1} parent=11 // pred_check_branch
          %345 = sbr.rel (%p343) target = $region32
        $region31: #{tpu_custom_call.1} parent=11 // pred_region
          _
        $region32: #{tpu_custom_call.1} parent=11 // pred_fallthru
          _
        // Predicated region
        $region33: #{tpu_custom_call.1} parent=11 // pred_check
          %p346 = pneg %p188
        $region34: #{tpu_custom_call.1} parent=11 // pred_check_branch
          %348 = sbr.rel (%p346) target = $region36
        $region35: #{tpu_custom_call.1} parent=11 // pred_region
          _
        $region36: #{tpu_custom_call.1} parent=11 // pred_fallthru
          _
        // Predicated region
        $region37: #{tpu_custom_call.1} parent=11 // pred_check
          %p349 = pneg %p209
        $region38: #{tpu_custom_call.1} parent=11 // pred_check_branch
          %351 = sbr.rel (%p349) target = $region40
        $region39: #{tpu_custom_call.1} parent=11 // pred_region
          %s353 = ssub.s32 1024, 1024
          %354 = vsyncadd [#allocation5], %s353
          %s355 = sshll.u32 [#allocation4], 4
          %s356 = int_to_ptr.vmem [resolvable:$true] %s355
          %361 = dma.hbm_to_vmem [thread:$0]  %s7, 1024, %s356, [#allocation5], 64, 64, 4
        $region40: #{tpu_custom_call.1} parent=11 // pred_fallthru
          _
        // Predicated region
        $region41: #{tpu_custom_call.1} parent=11 // pred_check
          %p362 = pneg %p230
        $region42: #{tpu_custom_call.1} parent=11 // pred_check_branch
          %364 = sbr.rel (%p362) target = $region44
        $region43: #{tpu_custom_call.1} parent=11 // pred_region
          _
        $region44: #{tpu_custom_call.1} parent=11 // pred_fallthru
          _
        // Predicated region
        $region45: #{tpu_custom_call.1} parent=11 // pred_check
          %p365 = pneg %p251
        $region46: #{tpu_custom_call.1} parent=11 // pred_check_branch
          %367 = sbr.rel (%p365) target = $region48
        $region47: #{tpu_custom_call.1} parent=11 // pred_region
          _
        $region48: #{tpu_custom_call.1} parent=11 // pred_fallthru
          _
        // Predicated region
        $region49: #{tpu_custom_call.1} parent=11 // pred_check
          %p368 = pneg %p272
        $region50: #{tpu_custom_call.1} parent=11 // pred_check_branch
          %370 = sbr.rel (%p368) target = $region52
        $region51: #{tpu_custom_call.1} parent=11 // pred_region
          _
        $region52: #{tpu_custom_call.1} parent=11 // pred_fallthru
          _
      $region12: #{tpu_custom_call.1} parent=5 // pred_fallthru
        _
      %p371 = scmp.lt.s32.totalorder %s19, 2
      // Predicated region
      $region53: #{tpu_custom_call.1} parent=5 // pred_check
        %p372 = pneg %p371
      $region54: #{tpu_custom_call.1} parent=5 // pred_check_branch
        %374 = sbr.rel (%p372) target = $region56
      $region55: #{tpu_custom_call.1} parent=5 // pred_region
        // Predicated region
        $region57: #{tpu_custom_call.1} parent=55 // pred_check
          %p375 = pneg %p77
        $region58: #{tpu_custom_call.1} parent=55 // pred_check_branch
          %377 = sbr.rel (%p375) target = $region60
        $region59: #{tpu_custom_call.1} parent=55 // pred_region
          %p378 = scmp.lt.s32.totalorder %s27, 1
          %s379 = scalar_select %p378, %s27, 1
          %s380 = smul.addr %s379, 2
          %s381 = scalar_lea.vmem %s1, %s380
        $region60: #{tpu_custom_call.1} parent=55 // pred_fallthru
          _
      $region56: #{tpu_custom_call.1} parent=5 // pred_fallthru
        _
      %p382 = scmp.le.s32.totalorder 1, %s19
      %p383 = scmp.lt.s32.totalorder %s19, 3
      %p384 = pnand %p382, %p383
      %p385 = pneg %p384
      // Predicated region
      $region61: #{tpu_custom_call.1} parent=5 // pred_check
        _
      $region62: #{tpu_custom_call.1} parent=5 // pred_check_branch
        %387 = sbr.rel (%p384) target = $region64
      $region63: #{tpu_custom_call.1} parent=5 // pred_region
        %s388 = ssub.s32 %s19, 1
        // Predicated region
        $region65: #{tpu_custom_call.1} parent=63 // pred_check
          %p389 = pneg %p104
        $region66: #{tpu_custom_call.1} parent=63 // pred_check_branch
          %391 = sbr.rel (%p389) target = $region68
        $region67: #{tpu_custom_call.1} parent=63 // pred_region
          %392 = dma.done [#allocation3], 1024
        $region68: #{tpu_custom_call.1} parent=63 // pred_fallthru
          _
        // Predicated region
        $region69: #{tpu_custom_call.1} parent=63 // pred_check
          %p393 = pneg %p209
        $region70: #{tpu_custom_call.1} parent=63 // pred_check_branch
          %395 = sbr.rel (%p393) target = $region72
        $region71: #{tpu_custom_call.1} parent=63 // pred_region
          %396 = dma.done [#allocation5], 1024
        $region72: #{tpu_custom_call.1} parent=63 // pred_fallthru
          _
        %s397 = smul.u32 16, %s28
        %p398 = scmp.lt.s32.totalorder %s397, 15
        %s399 = scalar_select %p398, %s397, 15
        %s400 = smul.addr %s399, 8
        %s401 = scalar_lea.vmem %s0, %s400
        %p402 = pneg %p57
        %p403 = pneg %p54
        %p404 = scmp.lt.s32.totalorder %s29, 1
        %s405 = scalar_select %p404, %s29, 1
        %s406 = smul.addr %s405, 2
        %s407 = scalar_lea.vmem %s1, %s406
        %p408 = pneg %p83
        %p409 = pneg %p80
        %p410 = pneg %p104
        %p411 = pneg %p101
        %p412 = pneg %p125
        %p413 = pneg %p122
        %p414 = pneg %p146
        %p415 = pneg %p143
        %p416 = pneg %p167
        %p417 = pneg %p164
        %p418 = pneg %p188
        %p419 = pneg %p185
        %p420 = pneg %p209
        %p421 = pneg %p206
        %p422 = pneg %p230
        %p423 = pneg %p227
        %p424 = pneg %p251
        %p425 = pneg %p248
        %p426 = pneg %p272
        %p427 = pneg %p269
        %p428 = pneg %p300
        %p429 = pneg %p297
        %p430 = scmp.lt.s32.totalorder %s29, 1
        %s431 = scalar_select %p430, %s29, 1
        %p432 = scmp.lt.s32.totalorder %s28, 0
        %s433 = scalar_select %p432, %s28, 0
        %s434 = sadd.s32 %s433, %s431
        %s435 = smul.addr %s434, 4
        %s436 = scalar_lea.vmem %s11, %s435
        %s437 = smul.u32 16, %s28
        %p438 = scmp.lt.s32.totalorder %s437, 15
        %s439 = scalar_select %p438, %s437, 15
        %s440 = smul.addr %s439, 8
        %s441 = scalar_lea.vmem %s0, %s440
        %s442 = smul.u32 16, %s28
        %p443 = scmp.lt.s32.totalorder %s29, 1
        %s444 = scalar_select %p443, %s29, 1
        %s445 = smul.addr %s444, 2
        %s446 = scalar_lea.vmem %s1, %s445
        %p447 = scmp.lt.s32.totalorder %s29, 1
        %s448 = scalar_select %p447, %s29, 1
        %p449 = scmp.lt.s32.totalorder %s28, 0
        %s450 = scalar_select %p449, %s28, 0
        %s451 = sadd.s32 %s450, %s448
        %s452 = smul.addr %s451, 4
        %s453 = scalar_lea.vmem %s11, %s452
        %v455 = vld [vmem:[%s446] sm:$0x3]
        %v456 = vld [vmem:[%s441] sm:$0xff]
        %v457 = vld [vmem:[%s441 + $0x8] sm:$0xff]
        %v458 = vld [vmem:[%s441 + $0x10] sm:$0xff]
        %v459 = vld [vmem:[%s441 + $0x18] sm:$0xff]
        %v460 = vld [vmem:[%s441 + $0x20] sm:$0xff]
        %v461 = vld [vmem:[%s441 + $0x28] sm:$0xff]
        %v462 = vld [vmem:[%s441 + $0x30] sm:$0xff]
        %v463 = vld [vmem:[%s441 + $0x38] sm:$0xff]
        %v464 = vld [vmem:[%s441 + $0x40] sm:$0xff]
        %v465 = vld [vmem:[%s441 + $0x48] sm:$0xff]
        %v466 = vld [vmem:[%s441 + $0x50] sm:$0xff]
        %v467 = vld [vmem:[%s441 + $0x58] sm:$0xff]
        %v468 = vld [vmem:[%s441 + $0x60] sm:$0xff]
        %v469 = vld [vmem:[%s441 + $0x68] sm:$0xff]
        %v470 = vld [vmem:[%s441 + $0x70] sm:$0xff]
        %v471 = vld [vmem:[%s441 + $0x78] sm:$0xff]
        %v472 = vlaneseq
        %v473 = vshrl.u32 %v472, 7
        %v474 = vsub.s32 0, %v473
        %v475 = vrot.slane %v455, %v474
        %v476 = vadd.f32 %v456, %v475
        %v477 = vadd.f32 %v457, %v475
        %v478 = vadd.f32 %v458, %v475
        %v479 = vadd.f32 %v459, %v475
        %v480 = vadd.f32 %v460, %v475
        %v481 = vadd.f32 %v461, %v475
        %v482 = vadd.f32 %v462, %v475
        %v483 = vadd.f32 %v463, %v475
        %v484 = vadd.f32 %v464, %v475
        %v485 = vadd.f32 %v465, %v475
        %v486 = vadd.f32 %v466, %v475
        %v487 = vadd.f32 %v467, %v475
        %v488 = vadd.f32 %v468, %v475
        %v489 = vadd.f32 %v469, %v475
        %v490 = vadd.f32 %v470, %v475
        %v491 = vadd.f32 %v471, %v475
        %v492 = vmax.f32 %v476, 0.0
        %v493 = vmax.f32 %v477, 0.0
        %v494 = vmax.f32 %v478, 0.0
        %v495 = vmax.f32 %v479, 0.0
        %v496 = vmax.f32 %v480, 0.0
        %v497 = vmax.f32 %v481, 0.0
        %v498 = vmax.f32 %v482, 0.0
        %v499 = vmax.f32 %v483, 0.0
        %v500 = vmax.f32 %v484, 0.0
        %v501 = vmax.f32 %v485, 0.0
        %v502 = vmax.f32 %v486, 0.0
        %v503 = vmax.f32 %v487, 0.0
        %v504 = vmax.f32 %v488, 0.0
        %v505 = vmax.f32 %v489, 0.0
        %v506 = vmax.f32 %v490, 0.0
        %v507 = vmax.f32 %v491, 0.0
        %v508 = vpack.c.bf16 %v493, %v492
        %v509 = vpack.c.bf16 %v495, %v494
        %v510 = vpack.c.bf16 %v497, %v496
        %v511 = vpack.c.bf16 %v499, %v498
        %v512 = vpack.c.bf16 %v501, %v500
        %v513 = vpack.c.bf16 %v503, %v502
        %v514 = vpack.c.bf16 %v505, %v504
        %v515 = vpack.c.bf16 %v507, %v506
        %v516 = vld [vmem:[#allocation2] sm:$0xf]
        %v517 = vld [vmem:[#allocation2 + $0x4] sm:$0xf]
        %v518 = vld [vmem:[#allocation2 + $0x8] sm:$0xf]
        %v519 = vld [vmem:[#allocation2 + $0xc] sm:$0xf]
        %v520 = vld [vmem:[#allocation2 + $0x10] sm:$0xf]
        %v521 = vld [vmem:[#allocation2 + $0x14] sm:$0xf]
        %v522 = vld [vmem:[#allocation2 + $0x18] sm:$0xf]
        %v523 = vld [vmem:[#allocation2 + $0x1c] sm:$0xf]
        %v524 = vld [vmem:[#allocation2 + $0x20] sm:$0xf]
        %v525 = vld [vmem:[#allocation2 + $0x24] sm:$0xf]
        %v526 = vld [vmem:[#allocation2 + $0x28] sm:$0xf]
        %v527 = vld [vmem:[#allocation2 + $0x2c] sm:$0xf]
        %v528 = vld [vmem:[#allocation2 + $0x30] sm:$0xf]
        %v529 = vld [vmem:[#allocation2 + $0x34] sm:$0xf]
        %v530 = vld [vmem:[#allocation2 + $0x38] sm:$0xf]
        %v531 = vld [vmem:[#allocation2 + $0x3c] sm:$0xf]
        %v532 = vld [vmem:[%s3] sm:$0x1]
        %v534 = vlaneseq
        %v535 = vshrl.u32 %v534, 7
        %v536 = vsub.s32 0, %v535
        %v537 = vrot.slane %v532, %v536
        %v555 = vunpack.c.l.b16 %v516
        %v556 = vunpack.c.l.b16 %v517
        %v557 = vunpack.c.l.b16 %v518
        %v558 = vunpack.c.l.b16 %v519
        %v559 = vunpack.c.l.b16 %v520
        %v560 = vunpack.c.l.b16 %v521
        %v561 = vunpack.c.l.b16 %v522
        %v562 = vunpack.c.l.b16 %v523
        %v563 = vunpack.c.l.b16 %v524
        %v564 = vunpack.c.l.b16 %v525
        %v565 = vunpack.c.l.b16 %v526
        %v566 = vunpack.c.l.b16 %v527
        %v567 = vunpack.c.l.b16 %v528
        %v568 = vunpack.c.l.b16 %v529
        %v569 = vunpack.c.l.b16 %v530
        %v570 = vunpack.c.l.b16 %v531
        %v571 = vpack.c.b16 %v556, %v555
        %v572 = vpack.c.b16 %v558, %v557
        %v573 = vpack.c.b16 %v560, %v559
        %v574 = vpack.c.b16 %v562, %v561
        %v575 = vpack.c.b16 %v564, %v563
        %v576 = vpack.c.b16 %v566, %v565
        %v577 = vpack.c.b16 %v568, %v567
        %v578 = vpack.c.b16 %v570, %v569
        %587 = vmatprep.subr.bf16.mxu0 0
        %588 = vmatpush1.bf16.msra.mxu0 %v571
        %589 = vmatprep.subr.bf16.mxu0 0
        %590 = vmatpush1.bf16.msra.mxu0 %v572
        %591 = vmatprep.subr.bf16.mxu0 0
        %592 = vmatpush1.bf16.msra.mxu0 %v573
        %593 = vmatprep.subr.bf16.mxu0 0
        %594 = vmatpush1.bf16.msra.mxu0 %v574
        %595 = vmatprep.subr.bf16.mxu0 0
        %596 = vmatpush1.bf16.msra.mxu0 %v575
        %597 = vmatprep.subr.bf16.mxu0 0
        %598 = vmatpush1.bf16.msra.mxu0 %v576
        %599 = vmatprep.subr.bf16.mxu0 0
        %600 = vmatpush1.bf16.msra.mxu0 %v577
        %601 = vmatprep.subr.bf16.mxu0 0
        %602 = vmatpush1.bf16.msra.mxu0 %v578
        %603 = vmatprep.subr.bf16.mxu0 0
        %604 = vmatpush1.bf16.msra.mxu0 0
        %605 = vmatprep.subr.bf16.mxu0 0
        %606 = vmatpush1.bf16.msra.mxu0 0
        %607 = vmatprep.subr.bf16.mxu0 0
        %608 = vmatpush1.bf16.msra.mxu0 0
        %609 = vmatprep.subr.bf16.mxu0 0
        %610 = vmatpush1.bf16.msra.mxu0 0
        %611 = vmatprep.subr.bf16.mxu0 0
        %612 = vmatpush1.bf16.msra.mxu0 0
        %613 = vmatprep.subr.bf16.mxu0 0
        %614 = vmatpush1.bf16.msra.mxu0 0
        %615 = vmatprep.subr.bf16.mxu0 0
        %616 = vmatpush1.bf16.msra.mxu0 0
        %617 = vmatprep.subr.bf16.mxu0 0
        %618 = vmatpush1.bf16.msra.mxu0 0
        %619 = vmatprep.mubr.bf16.mxu0 0
        %620 = vmatmul.mubr.bf16.gmra.mrb[0].mxu0 %v508
        %v621 = vpop.f32.mrb[0].mxu0
        %v622 = vadd.f32 %v537, %v621
        %v623 = vpop.f32.mrb[0].mxu0
        %v624 = vpop.f32.mrb[0].mxu0
        %v625 = vadd.f32 %v537, %v624
        %v626 = vpop.f32.mrb[0].mxu0
        %627 = vmatprep.mubr.bf16.mxu0 0
        %628 = vmatmul.mubr.bf16.gmra.mrb[0].mxu0 %v509
        %v629 = vpop.f32.mrb[0].mxu0
        %v630 = vadd.f32 %v537, %v629
        %v631 = vpop.f32.mrb[0].mxu0
        %v632 = vpop.f32.mrb[0].mxu0
        %v633 = vadd.f32 %v537, %v632
        %v634 = vpop.f32.mrb[0].mxu0
        %635 = vmatprep.mubr.bf16.mxu0 0
        %636 = vmatmul.mubr.bf16.gmra.mrb[0].mxu0 %v510
        %v637 = vpop.f32.mrb[0].mxu0
        %v638 = vadd.f32 %v537, %v637
        %v639 = vpop.f32.mrb[0].mxu0
        %v640 = vpop.f32.mrb[0].mxu0
        %v641 = vadd.f32 %v537, %v640
        %v642 = vpop.f32.mrb[0].mxu0
        %643 = vmatprep.mubr.bf16.mxu0 0
        %644 = vmatmul.mubr.bf16.gmra.mrb[0].mxu0 %v511
        %v645 = vpop.f32.mrb[0].mxu0
        %v646 = vadd.f32 %v537, %v645
        %v647 = vpop.f32.mrb[0].mxu0
        %v648 = vpop.f32.mrb[0].mxu0
        %v649 = vadd.f32 %v537, %v648
        %v650 = vpop.f32.mrb[0].mxu0
        %651 = vmatprep.mubr.bf16.mxu0 0
        %652 = vmatmul.mubr.bf16.gmra.mrb[0].mxu0 %v512
        %v653 = vpop.f32.mrb[0].mxu0
        %v654 = vadd.f32 %v537, %v653
        %v655 = vpop.f32.mrb[0].mxu0
        %v656 = vpop.f32.mrb[0].mxu0
        %v657 = vadd.f32 %v537, %v656
        %v658 = vpop.f32.mrb[0].mxu0
        %659 = vmatprep.mubr.bf16.mxu0 0
        %660 = vmatmul.mubr.bf16.gmra.mrb[0].mxu0 %v513
        %v661 = vpop.f32.mrb[0].mxu0
        %v662 = vadd.f32 %v537, %v661
        %v663 = vpop.f32.mrb[0].mxu0
        %v664 = vpop.f32.mrb[0].mxu0
        %v665 = vadd.f32 %v537, %v664
        %v666 = vpop.f32.mrb[0].mxu0
        %667 = vmatprep.mubr.bf16.mxu0 0
        %668 = vmatmul.mubr.bf16.gmra.mrb[0].mxu0 %v514
        %v669 = vpop.f32.mrb[0].mxu0
        %v670 = vadd.f32 %v537, %v669
        %v671 = vpop.f32.mrb[0].mxu0
        %v672 = vpop.f32.mrb[0].mxu0
        %v673 = vadd.f32 %v537, %v672
        %v674 = vpop.f32.mrb[0].mxu0
        %675 = vmatprep.mubr.bf16.mxu0 0
        %676 = vmatmul.mubr.bf16.gmra.mrb[0].mxu0 %v515
        %v677 = vpop.f32.mrb[0].mxu0
        %v678 = vadd.f32 %v537, %v677
        %v679 = vpop.f32.mrb[0].mxu0
        %v680 = vpop.f32.mrb[0].mxu0
        %v681 = vadd.f32 %v537, %v680
        %v682 = vpop.f32.mrb[0].mxu0
        %683 = vdwg.mxu0
        %v684 = vmax.f32 %v622, 0.0
        %v685 = vmax.f32 %v625, 0.0
        %v686 = vmax.f32 %v630, 0.0
        %v687 = vmax.f32 %v633, 0.0
        %v688 = vmax.f32 %v638, 0.0
        %v689 = vmax.f32 %v641, 0.0
        %v690 = vmax.f32 %v646, 0.0
        %v691 = vmax.f32 %v649, 0.0
        %v692 = vmax.f32 %v654, 0.0
        %v693 = vmax.f32 %v657, 0.0
        %v694 = vmax.f32 %v662, 0.0
        %v695 = vmax.f32 %v665, 0.0
        %v696 = vmax.f32 %v670, 0.0
        %v697 = vmax.f32 %v673, 0.0
        %v698 = vmax.f32 %v678, 0.0
        %v699 = vmax.f32 %v681, 0.0
        %v700 = vld [vmem:[%s4] sm:$0xff]
        %v701 = vld [vmem:[%s4 + $0x8] sm:$0xff]
        %v702 = vld [vmem:[%s4 + $0x10] sm:$0xff]
        %v703 = vld [vmem:[%s4 + $0x18] sm:$0xff]
        %v704 = vld [vmem:[%s4 + $0x20] sm:$0xff]
        %v705 = vld [vmem:[%s4 + $0x28] sm:$0xff]
        %v706 = vld [vmem:[%s4 + $0x30] sm:$0xff]
        %v707 = vld [vmem:[%s4 + $0x38] sm:$0xff]
        %v708 = vld [vmem:[%s4 + $0x40] sm:$0xff]
        %v709 = vld [vmem:[%s4 + $0x48] sm:$0xff]
        %v710 = vld [vmem:[%s4 + $0x50] sm:$0xff]
        %v711 = vld [vmem:[%s4 + $0x58] sm:$0xff]
        %v712 = vld [vmem:[%s4 + $0x60] sm:$0xff]
        %v713 = vld [vmem:[%s4 + $0x68] sm:$0xff]
        %v714 = vld [vmem:[%s4 + $0x70] sm:$0xff]
        %v715 = vld [vmem:[%s4 + $0x78] sm:$0xff]
        %v716 = vld [vmem:[%s5] sm:$0x1]
        %v718 = vlaneseq
        %v719 = vshrl.u32 %v718, 7
        %v720 = vsub.s32 0, %v719
        %v721 = vrot.slane %v716, %v720
        %723 = vmatprep.subr.mxu0 0.0
        %724 = vmatpush1.msra.mxu0 %v700
        %725 = vmatprep.subr.mxu0 0.0
        %726 = vmatpush1.msra.mxu0 %v701
        %727 = vmatprep.subr.mxu0 0.0
        %728 = vmatpush1.msra.mxu0 %v702
        %729 = vmatprep.subr.mxu0 0.0
        %730 = vmatpush1.msra.mxu0 %v703
        %731 = vmatprep.subr.mxu0 0.0
        %732 = vmatpush1.msra.mxu0 %v704
        %733 = vmatprep.subr.mxu0 0.0
        %734 = vmatpush1.msra.mxu0 %v705
        %735 = vmatprep.subr.mxu0 0.0
        %736 = vmatpush1.msra.mxu0 %v706
        %737 = vmatprep.subr.mxu0 0.0
        %738 = vmatpush1.msra.mxu0 %v707
        %739 = vmatprep.subr.mxu0 0.0
        %740 = vmatpush1.msra.mxu0 %v708
        %741 = vmatprep.subr.mxu0 0.0
        %742 = vmatpush1.msra.mxu0 %v709
        %743 = vmatprep.subr.mxu0 0.0
        %744 = vmatpush1.msra.mxu0 %v710
        %745 = vmatprep.subr.mxu0 0.0
        %746 = vmatpush1.msra.mxu0 %v711
        %747 = vmatprep.subr.mxu0 0.0
        %748 = vmatpush1.msra.mxu0 %v712
        %749 = vmatprep.subr.mxu0 0.0
        %750 = vmatpush1.msra.mxu0 %v713
        %751 = vmatprep.subr.mxu0 0.0
        %752 = vmatpush1.msra.mxu0 %v714
        %753 = vmatprep.subr.mxu0 0.0
        %754 = vmatpush1.msra.mxu0 %v715
        %755 = vmatprep.subr.mxu0 0.0
        %756 = vmatpush1.msra.mxu0 0.0
        %757 = vmatprep.subr.mxu0 0.0
        %758 = vmatpush1.msra.mxu0 0.0
        %759 = vmatprep.subr.mxu0 0.0
        %760 = vmatpush1.msra.mxu0 0.0
        %761 = vmatprep.subr.mxu0 0.0
        %762 = vmatpush1.msra.mxu0 0.0
        %763 = vmatprep.subr.mxu0 0.0
        %764 = vmatpush1.msra.mxu0 0.0
        %765 = vmatprep.subr.mxu0 0.0
        %766 = vmatpush1.msra.mxu0 0.0
        %767 = vmatprep.subr.mxu0 0.0
        %768 = vmatpush1.msra.mxu0 0.0
        %769 = vmatprep.subr.mxu0 0.0
        %770 = vmatpush1.msra.mxu0 0.0
        %771 = vmatprep.subr.mxu0 0.0
        %772 = vmatpush1.msra.mxu0 0.0
        %773 = vmatprep.subr.mxu0 0.0
        %774 = vmatpush1.msra.mxu0 0.0
        %775 = vmatprep.subr.mxu0 0.0
        %776 = vmatpush1.msra.mxu0 0.0
        %777 = vmatprep.subr.mxu0 0.0
        %778 = vmatpush1.msra.mxu0 0.0
        %779 = vmatprep.subr.mxu0 0.0
        %780 = vmatpush1.msra.mxu0 0.0
        %781 = vmatprep.subr.mxu0 0.0
        %782 = vmatpush1.msra.mxu0 0.0
        %783 = vmatprep.subr.mxu0 0.0
        %784 = vmatpush1.msra.mxu0 0.0
        %785 = vmatprep.subr.mxu0 0.0
        %786 = vmatpush1.msra.mxu0 0.0
        %787 = vmatprep.mubr.f32.mxu0 0.0
        %788 = vmatmul.mubr.f32.gmra.mrb[0].mxu0 %v684
        %v789 = vpop.f32.mrb[0].mxu0
        %v790 = vadd.f32 %v721, %v789
        %v791 = vpop.f32.mrb[0].mxu0
        %792 = vmatprep.mubr.f32.mxu0 0.0
        %793 = vmatmul.mubr.f32.gmra.mrb[0].mxu0 %v685
        %v794 = vpop.f32.mrb[0].mxu0
        %v795 = vadd.f32 %v721, %v794
        %v796 = vpop.f32.mrb[0].mxu0
        %797 = vmatprep.mubr.f32.mxu0 0.0
        %798 = vmatmul.mubr.f32.gmra.mrb[0].mxu0 %v686
        %v799 = vpop.f32.mrb[0].mxu0
        %v800 = vadd.f32 %v721, %v799
        %v801 = vpop.f32.mrb[0].mxu0
        %802 = vmatprep.mubr.f32.mxu0 0.0
        %803 = vmatmul.mubr.f32.gmra.mrb[0].mxu0 %v687
        %v804 = vpop.f32.mrb[0].mxu0
        %v805 = vadd.f32 %v721, %v804
        %v806 = vpop.f32.mrb[0].mxu0
        %807 = vmatprep.mubr.f32.mxu0 0.0
        %808 = vmatmul.mubr.f32.gmra.mrb[0].mxu0 %v688
        %v809 = vpop.f32.mrb[0].mxu0
        %v810 = vadd.f32 %v721, %v809
        %v811 = vpop.f32.mrb[0].mxu0
        %812 = vmatprep.mubr.f32.mxu0 0.0
        %813 = vmatmul.mubr.f32.gmra.mrb[0].mxu0 %v689
        %v814 = vpop.f32.mrb[0].mxu0
        %v815 = vadd.f32 %v721, %v814
        %v816 = vpop.f32.mrb[0].mxu0
        %817 = vmatprep.mubr.f32.mxu0 0.0
        %818 = vmatmul.mubr.f32.gmra.mrb[0].mxu0 %v690
        %v819 = vpop.f32.mrb[0].mxu0
        %v820 = vadd.f32 %v721, %v819
        %v821 = vpop.f32.mrb[0].mxu0
        %822 = vmatprep.mubr.f32.mxu0 0.0
        %823 = vmatmul.mubr.f32.gmra.mrb[0].mxu0 %v691
        %v824 = vpop.f32.mrb[0].mxu0
        %v825 = vadd.f32 %v721, %v824
        %v826 = vpop.f32.mrb[0].mxu0
        %827 = vmatprep.mubr.f32.mxu0 0.0
        %828 = vmatmul.mubr.f32.gmra.mrb[0].mxu0 %v692
        %v829 = vpop.f32.mrb[0].mxu0
        %v830 = vadd.f32 %v721, %v829
        %v831 = vpop.f32.mrb[0].mxu0
        %832 = vmatprep.mubr.f32.mxu0 0.0
        %833 = vmatmul.mubr.f32.gmra.mrb[0].mxu0 %v693
        %v834 = vpop.f32.mrb[0].mxu0
        %v835 = vadd.f32 %v721, %v834
        %v836 = vpop.f32.mrb[0].mxu0
        %837 = vmatprep.mubr.f32.mxu0 0.0
        %838 = vmatmul.mubr.f32.gmra.mrb[0].mxu0 %v694
        %v839 = vpop.f32.mrb[0].mxu0
        %v840 = vadd.f32 %v721, %v839
        %v841 = vpop.f32.mrb[0].mxu0
        %842 = vmatprep.mubr.f32.mxu0 0.0
        %843 = vmatmul.mubr.f32.gmra.mrb[0].mxu0 %v695
        %v844 = vpop.f32.mrb[0].mxu0
        %v845 = vadd.f32 %v721, %v844
        %v846 = vpop.f32.mrb[0].mxu0
        %847 = vmatprep.mubr.f32.mxu0 0.0
        %848 = vmatmul.mubr.f32.gmra.mrb[0].mxu0 %v696
        %v849 = vpop.f32.mrb[0].mxu0
        %v850 = vadd.f32 %v721, %v849
        %v851 = vpop.f32.mrb[0].mxu0
        %852 = vmatprep.mubr.f32.mxu0 0.0
        %853 = vmatmul.mubr.f32.gmra.mrb[0].mxu0 %v697
        %v854 = vpop.f32.mrb[0].mxu0
        %v855 = vadd.f32 %v721, %v854
        %v856 = vpop.f32.mrb[0].mxu0
        %857 = vmatprep.mubr.f32.mxu0 0.0
        %858 = vmatmul.mubr.f32.gmra.mrb[0].mxu0 %v698
        %v859 = vpop.f32.mrb[0].mxu0
        %v860 = vadd.f32 %v721, %v859
        %v861 = vpop.f32.mrb[0].mxu0
        %862 = vmatprep.mubr.f32.mxu0 0.0
        %863 = vmatmul.mubr.f32.gmra.mrb[0].mxu0 %v699
        %v864 = vpop.f32.mrb[0].mxu0
        %v865 = vadd.f32 %v721, %v864
        %v866 = vpop.f32.mrb[0].mxu0
        %867 = vdwg.mxu0
        %v868 = vld [vmem:[%s6] sm:$0x7]
        %870 = vset.pattern.permute.xlu0 0
        %871 = vperm.xlu0 %870, %v790
        %v872 = vpop.permute.xlu0 %871
        %875 = vset.pattern.permute.xlu0 0
        %876 = vperm.xlu0 %875, %v795
        %v877 = vpop.permute.xlu0 %876
        %880 = vset.pattern.permute.xlu0 0
        %881 = vperm.xlu0 %880, %v800
        %v882 = vpop.permute.xlu0 %881
        %885 = vset.pattern.permute.xlu0 0
        %886 = vperm.xlu0 %885, %v805
        %v887 = vpop.permute.xlu0 %886
        %890 = vset.pattern.permute.xlu0 0
        %891 = vperm.xlu0 %890, %v810
        %v892 = vpop.permute.xlu0 %891
        %895 = vset.pattern.permute.xlu0 0
        %896 = vperm.xlu0 %895, %v815
        %v897 = vpop.permute.xlu0 %896
        %900 = vset.pattern.permute.xlu0 0
        %901 = vperm.xlu0 %900, %v820
        %v902 = vpop.permute.xlu0 %901
        %905 = vset.pattern.permute.xlu0 0
        %906 = vperm.xlu0 %905, %v825
        %v907 = vpop.permute.xlu0 %906
        %910 = vset.pattern.permute.xlu0 0
        %911 = vperm.xlu0 %910, %v830
        %v912 = vpop.permute.xlu0 %911
        %915 = vset.pattern.permute.xlu0 0
        %916 = vperm.xlu0 %915, %v835
        %v917 = vpop.permute.xlu0 %916
        %920 = vset.pattern.permute.xlu0 0
        %921 = vperm.xlu0 %920, %v840
        %v922 = vpop.permute.xlu0 %921
        %925 = vset.pattern.permute.xlu0 0
        %926 = vperm.xlu0 %925, %v845
        %v927 = vpop.permute.xlu0 %926
        %930 = vset.pattern.permute.xlu0 0
        %931 = vperm.xlu0 %930, %v850
        %v932 = vpop.permute.xlu0 %931
        %935 = vset.pattern.permute.xlu0 0
        %936 = vperm.xlu0 %935, %v855
        %v937 = vpop.permute.xlu0 %936
        %940 = vset.pattern.permute.xlu0 0
        %941 = vperm.xlu0 %940, %v860
        %v942 = vpop.permute.xlu0 %941
        %945 = vset.pattern.permute.xlu0 0
        %946 = vperm.xlu0 %945, %v865
        %v947 = vpop.permute.xlu0 %946
        %v949 = vlaneseq
        %v950 = vshrl.u32 %v949, 7
        %v951 = vsub.s32 0, %v950
        %v952 = vrot.slane %v868, %v951
        %v953 = vmul.f32 %v872, %v952
        %v954 = vmul.f32 %v877, %v952
        %v955 = vmul.f32 %v882, %v952
        %v956 = vmul.f32 %v887, %v952
        %v957 = vmul.f32 %v892, %v952
        %v958 = vmul.f32 %v897, %v952
        %v959 = vmul.f32 %v902, %v952
        %v960 = vmul.f32 %v907, %v952
        %v961 = vmul.f32 %v912, %v952
        %v962 = vmul.f32 %v917, %v952
        %v963 = vmul.f32 %v922, %v952
        %v964 = vmul.f32 %v927, %v952
        %v965 = vmul.f32 %v932, %v952
        %v966 = vmul.f32 %v937, %v952
        %v967 = vmul.f32 %v942, %v952
        %v968 = vmul.f32 %v947, %v952
        %969 = vset.pattern.permute.xlu0 1
        %970 = vperm.xlu0 %969, %v790
        %v971 = vpop.permute.xlu0 %970
        %973 = vset.pattern.permute.xlu0 1
        %974 = vperm.xlu0 %973, %v795
        %v975 = vpop.permute.xlu0 %974
        %977 = vset.pattern.permute.xlu0 1
        %978 = vperm.xlu0 %977, %v800
        %v979 = vpop.permute.xlu0 %978
        %981 = vset.pattern.permute.xlu0 1
        %982 = vperm.xlu0 %981, %v805
        %v983 = vpop.permute.xlu0 %982
        %985 = vset.pattern.permute.xlu0 1
        %986 = vperm.xlu0 %985, %v810
        %v987 = vpop.permute.xlu0 %986
        %989 = vset.pattern.permute.xlu0 1
        %990 = vperm.xlu0 %989, %v815
        %v991 = vpop.permute.xlu0 %990
        %993 = vset.pattern.permute.xlu0 1
        %994 = vperm.xlu0 %993, %v820
        %v995 = vpop.permute.xlu0 %994
        %997 = vset.pattern.permute.xlu0 1
        %998 = vperm.xlu0 %997, %v825
        %v999 = vpop.permute.xlu0 %998
        %1001 = vset.pattern.permute.xlu0 1
        %1002 = vperm.xlu0 %1001, %v830
        %v1003 = vpop.permute.xlu0 %1002
        %1005 = vset.pattern.permute.xlu0 1
        %1006 = vperm.xlu0 %1005, %v835
        %v1007 = vpop.permute.xlu0 %1006
        %1009 = vset.pattern.permute.xlu0 1
        %1010 = vperm.xlu0 %1009, %v840
        %v1011 = vpop.permute.xlu0 %1010
        %1013 = vset.pattern.permute.xlu0 1
        %1014 = vperm.xlu0 %1013, %v845
        %v1015 = vpop.permute.xlu0 %1014
        %1017 = vset.pattern.permute.xlu0 1
        %1018 = vperm.xlu0 %1017, %v850
        %v1019 = vpop.permute.xlu0 %1018
        %1021 = vset.pattern.permute.xlu0 1
        %1022 = vperm.xlu0 %1021, %v855
        %v1023 = vpop.permute.xlu0 %1022
        %1025 = vset.pattern.permute.xlu0 1
        %1026 = vperm.xlu0 %1025, %v860
        %v1027 = vpop.permute.xlu0 %1026
        %1029 = vset.pattern.permute.xlu0 1
        %1030 = vperm.xlu0 %1029, %v865
        %v1031 = vpop.permute.xlu0 %1030
        %v1033 = vlaneseq
        %v1034 = vshrl.u32 %v1033, 7
        %v1035 = vsub.s32 1, %v1034
        %v1036 = vrot.slane %v868, %v1035
        %v1037 = vmul.f32 %v971, %v1036
        %v1038 = vmul.f32 %v975, %v1036
        %v1039 = vmul.f32 %v979, %v1036
        %v1040 = vmul.f32 %v983, %v1036
        %v1041 = vmul.f32 %v987, %v1036
        %v1042 = vmul.f32 %v991, %v1036
        %v1043 = vmul.f32 %v995, %v1036
        %v1044 = vmul.f32 %v999, %v1036
        %v1045 = vmul.f32 %v1003, %v1036
        %v1046 = vmul.f32 %v1007, %v1036
        %v1047 = vmul.f32 %v1011, %v1036
        %v1048 = vmul.f32 %v1015, %v1036
        %v1049 = vmul.f32 %v1019, %v1036
        %v1050 = vmul.f32 %v1023, %v1036
        %v1051 = vmul.f32 %v1027, %v1036
        %v1052 = vmul.f32 %v1031, %v1036
        %v1053 = vadd.f32 %v953, %v1037
        %v1054 = vadd.f32 %v954, %v1038
        %v1055 = vadd.f32 %v955, %v1039
        %v1056 = vadd.f32 %v956, %v1040
        %v1057 = vadd.f32 %v957, %v1041
        %v1058 = vadd.f32 %v958, %v1042
        %v1059 = vadd.f32 %v959, %v1043
        %v1060 = vadd.f32 %v960, %v1044
        %v1061 = vadd.f32 %v961, %v1045
        %v1062 = vadd.f32 %v962, %v1046
        %v1063 = vadd.f32 %v963, %v1047
        %v1064 = vadd.f32 %v964, %v1048
        %v1065 = vadd.f32 %v965, %v1049
        %v1066 = vadd.f32 %v966, %v1050
        %v1067 = vadd.f32 %v967, %v1051
        %v1068 = vadd.f32 %v968, %v1052
        %1069 = vset.pattern.permute.xlu0 2
        %1070 = vperm.xlu0 %1069, %v790
        %v1071 = vpop.permute.xlu0 %1070
        %1073 = vset.pattern.permute.xlu0 2
        %1074 = vperm.xlu0 %1073, %v795
        %v1075 = vpop.permute.xlu0 %1074
        %1077 = vset.pattern.permute.xlu0 2
        %1078 = vperm.xlu0 %1077, %v800
        %v1079 = vpop.permute.xlu0 %1078
        %1081 = vset.pattern.permute.xlu0 2
        %1082 = vperm.xlu0 %1081, %v805
        %v1083 = vpop.permute.xlu0 %1082
        %1085 = vset.pattern.permute.xlu0 2
        %1086 = vperm.xlu0 %1085, %v810
        %v1087 = vpop.permute.xlu0 %1086
        %1089 = vset.pattern.permute.xlu0 2
        %1090 = vperm.xlu0 %1089, %v815
        %v1091 = vpop.permute.xlu0 %1090
        %1093 = vset.pattern.permute.xlu0 2
        %1094 = vperm.xlu0 %1093, %v820
        %v1095 = vpop.permute.xlu0 %1094
        %1097 = vset.pattern.permute.xlu0 2
        %1098 = vperm.xlu0 %1097, %v825
        %v1099 = vpop.permute.xlu0 %1098
        %1101 = vset.pattern.permute.xlu0 2
        %1102 = vperm.xlu0 %1101, %v830
        %v1103 = vpop.permute.xlu0 %1102
        %1105 = vset.pattern.permute.xlu0 2
        %1106 = vperm.xlu0 %1105, %v835
        %v1107 = vpop.permute.xlu0 %1106
        %1109 = vset.pattern.permute.xlu0 2
        %1110 = vperm.xlu0 %1109, %v840
        %v1111 = vpop.permute.xlu0 %1110
        %1113 = vset.pattern.permute.xlu0 2
        %1114 = vperm.xlu0 %1113, %v845
        %v1115 = vpop.permute.xlu0 %1114
        %1117 = vset.pattern.permute.xlu0 2
        %1118 = vperm.xlu0 %1117, %v850
        %v1119 = vpop.permute.xlu0 %1118
        %1121 = vset.pattern.permute.xlu0 2
        %1122 = vperm.xlu0 %1121, %v855
        %v1123 = vpop.permute.xlu0 %1122
        %1125 = vset.pattern.permute.xlu0 2
        %1126 = vperm.xlu0 %1125, %v860
        %v1127 = vpop.permute.xlu0 %1126
        %1129 = vset.pattern.permute.xlu0 2
        %1130 = vperm.xlu0 %1129, %v865
        %v1131 = vpop.permute.xlu0 %1130
        %v1133 = vlaneseq
        %v1134 = vshrl.u32 %v1133, 7
        %v1135 = vsub.s32 2, %v1134
        %v1136 = vrot.slane %v868, %v1135
        %v1137 = vmul.f32 %v1071, %v1136
        %v1138 = vmul.f32 %v1075, %v1136
        %v1139 = vmul.f32 %v1079, %v1136
        %v1140 = vmul.f32 %v1083, %v1136
        %v1141 = vmul.f32 %v1087, %v1136
        %v1142 = vmul.f32 %v1091, %v1136
        %v1143 = vmul.f32 %v1095, %v1136
        %v1144 = vmul.f32 %v1099, %v1136
        %v1145 = vmul.f32 %v1103, %v1136
        %v1146 = vmul.f32 %v1107, %v1136
        %v1147 = vmul.f32 %v1111, %v1136
        %v1148 = vmul.f32 %v1115, %v1136
        %v1149 = vmul.f32 %v1119, %v1136
        %v1150 = vmul.f32 %v1123, %v1136
        %v1151 = vmul.f32 %v1127, %v1136
        %v1152 = vmul.f32 %v1131, %v1136
        %v1153 = vadd.f32 %v1053, %v1137
        %v1154 = vadd.f32 %v1054, %v1138
        %v1155 = vadd.f32 %v1055, %v1139
        %v1156 = vadd.f32 %v1056, %v1140
        %v1157 = vadd.f32 %v1057, %v1141
        %v1158 = vadd.f32 %v1058, %v1142
        %v1159 = vadd.f32 %v1059, %v1143
        %v1160 = vadd.f32 %v1060, %v1144
        %v1161 = vadd.f32 %v1061, %v1145
        %v1162 = vadd.f32 %v1062, %v1146
        %v1163 = vadd.f32 %v1063, %v1147
        %v1164 = vadd.f32 %v1064, %v1148
        %v1165 = vadd.f32 %v1065, %v1149
        %v1166 = vadd.f32 %v1066, %v1150
        %v1167 = vadd.f32 %v1067, %v1151
        %v1168 = vadd.f32 %v1068, %v1152
        %v1169 = vlaneseq
        %v1170 = vshrl.u32 %v1169, 7
        %v1171 = vsub.s32 1, %v1170
        %v1172 = vrot.slane %v455, %v1171
        %v1173 = vadd.f32 %v1153, %v1172
        %v1174 = vadd.f32 %v1154, %v1172
        %v1175 = vadd.f32 %v1155, %v1172
        %v1176 = vadd.f32 %v1156, %v1172
        %v1177 = vadd.f32 %v1157, %v1172
        %v1178 = vadd.f32 %v1158, %v1172
        %v1179 = vadd.f32 %v1159, %v1172
        %v1180 = vadd.f32 %v1160, %v1172
        %v1181 = vadd.f32 %v1161, %v1172
        %v1182 = vadd.f32 %v1162, %v1172
        %v1183 = vadd.f32 %v1163, %v1172
        %v1184 = vadd.f32 %v1164, %v1172
        %v1185 = vadd.f32 %v1165, %v1172
        %v1186 = vadd.f32 %v1166, %v1172
        %v1187 = vadd.f32 %v1167, %v1172
        %v1188 = vadd.f32 %v1168, %v1172
        %v1189 = vmax.f32 %v1173, 0.0
        %v1190 = vmax.f32 %v1174, 0.0
        %v1191 = vmax.f32 %v1175, 0.0
        %v1192 = vmax.f32 %v1176, 0.0
        %v1193 = vmax.f32 %v1177, 0.0
        %v1194 = vmax.f32 %v1178, 0.0
        %v1195 = vmax.f32 %v1179, 0.0
        %v1196 = vmax.f32 %v1180, 0.0
        %v1197 = vmax.f32 %v1181, 0.0
        %v1198 = vmax.f32 %v1182, 0.0
        %v1199 = vmax.f32 %v1183, 0.0
        %v1200 = vmax.f32 %v1184, 0.0
        %v1201 = vmax.f32 %v1185, 0.0
        %v1202 = vmax.f32 %v1186, 0.0
        %v1203 = vmax.f32 %v1187, 0.0
        %v1204 = vmax.f32 %v1188, 0.0
        %v1205 = vpack.c.bf16 %v1190, %v1189
        %v1206 = vpack.c.bf16 %v1192, %v1191
        %v1207 = vpack.c.bf16 %v1194, %v1193
        %v1208 = vpack.c.bf16 %v1196, %v1195
        %v1209 = vpack.c.bf16 %v1198, %v1197
        %v1210 = vpack.c.bf16 %v1200, %v1199
        %v1211 = vpack.c.bf16 %v1202, %v1201
        %v1212 = vpack.c.bf16 %v1204, %v1203
        %v1213 = vld [vmem:[#allocation4] sm:$0xf]
        %v1214 = vld [vmem:[#allocation4 + $0x4] sm:$0xf]
        %v1215 = vld [vmem:[#allocation4 + $0x8] sm:$0xf]
        %v1216 = vld [vmem:[#allocation4 + $0xc] sm:$0xf]
        %v1217 = vld [vmem:[#allocation4 + $0x10] sm:$0xf]
        %v1218 = vld [vmem:[#allocation4 + $0x14] sm:$0xf]
        %v1219 = vld [vmem:[#allocation4 + $0x18] sm:$0xf]
        %v1220 = vld [vmem:[#allocation4 + $0x1c] sm:$0xf]
        %v1221 = vld [vmem:[#allocation4 + $0x20] sm:$0xf]
        %v1222 = vld [vmem:[#allocation4 + $0x24] sm:$0xf]
        %v1223 = vld [vmem:[#allocation4 + $0x28] sm:$0xf]
        %v1224 = vld [vmem:[#allocation4 + $0x2c] sm:$0xf]
        %v1225 = vld [vmem:[#allocation4 + $0x30] sm:$0xf]
        %v1226 = vld [vmem:[#allocation4 + $0x34] sm:$0xf]
        %v1227 = vld [vmem:[#allocation4 + $0x38] sm:$0xf]
        %v1228 = vld [vmem:[#allocation4 + $0x3c] sm:$0xf]
        %v1229 = vld [vmem:[%s8] sm:$0x1]
        %v1231 = vlaneseq
        %v1232 = vshrl.u32 %v1231, 7
        %v1233 = vsub.s32 0, %v1232
        %v1234 = vrot.slane %v1229, %v1233
        %v1252 = vunpack.c.l.b16 %v1213
        %v1253 = vunpack.c.l.b16 %v1214
        %v1254 = vunpack.c.l.b16 %v1215
        %v1255 = vunpack.c.l.b16 %v1216
        %v1256 = vunpack.c.l.b16 %v1217
        %v1257 = vunpack.c.l.b16 %v1218
        %v1258 = vunpack.c.l.b16 %v1219
        %v1259 = vunpack.c.l.b16 %v1220
        %v1260 = vunpack.c.l.b16 %v1221
        %v1261 = vunpack.c.l.b16 %v1222
        %v1262 = vunpack.c.l.b16 %v1223
        %v1263 = vunpack.c.l.b16 %v1224
        %v1264 = vunpack.c.l.b16 %v1225
        %v1265 = vunpack.c.l.b16 %v1226
        %v1266 = vunpack.c.l.b16 %v1227
        %v1267 = vunpack.c.l.b16 %v1228
        %v1268 = vpack.c.b16 %v1253, %v1252
        %v1269 = vpack.c.b16 %v1255, %v1254
        %v1270 = vpack.c.b16 %v1257, %v1256
        %v1271 = vpack.c.b16 %v1259, %v1258
        %v1272 = vpack.c.b16 %v1261, %v1260
        %v1273 = vpack.c.b16 %v1263, %v1262
        %v1274 = vpack.c.b16 %v1265, %v1264
        %v1275 = vpack.c.b16 %v1267, %v1266
        %1284 = vmatprep.subr.bf16.mxu0 0
        %1285 = vmatpush1.bf16.msra.mxu0 %v1268
        %1286 = vmatprep.subr.bf16.mxu0 0
        %1287 = vmatpush1.bf16.msra.mxu0 %v1269
        %1288 = vmatprep.subr.bf16.mxu0 0
        %1289 = vmatpush1.bf16.msra.mxu0 %v1270
        %1290 = vmatprep.subr.bf16.mxu0 0
        %1291 = vmatpush1.bf16.msra.mxu0 %v1271
        %1292 = vmatprep.subr.bf16.mxu0 0
        %1293 = vmatpush1.bf16.msra.mxu0 %v1272
        %1294 = vmatprep.subr.bf16.mxu0 0
        %1295 = vmatpush1.bf16.msra.mxu0 %v1273
        %1296 = vmatprep.subr.bf16.mxu0 0
        %1297 = vmatpush1.bf16.msra.mxu0 %v1274
        %1298 = vmatprep.subr.bf16.mxu0 0
        %1299 = vmatpush1.bf16.msra.mxu0 %v1275
        %1300 = vmatprep.subr.bf16.mxu0 0
        %1301 = vmatpush1.bf16.msra.mxu0 0
        %1302 = vmatprep.subr.bf16.mxu0 0
        %1303 = vmatpush1.bf16.msra.mxu0 0
        %1304 = vmatprep.subr.bf16.mxu0 0
        %1305 = vmatpush1.bf16.msra.mxu0 0
        %1306 = vmatprep.subr.bf16.mxu0 0
        %1307 = vmatpush1.bf16.msra.mxu0 0
        %1308 = vmatprep.subr.bf16.mxu0 0
        %1309 = vmatpush1.bf16.msra.mxu0 0
        %1310 = vmatprep.subr.bf16.mxu0 0
        %1311 = vmatpush1.bf16.msra.mxu0 0
        %1312 = vmatprep.subr.bf16.mxu0 0
        %1313 = vmatpush1.bf16.msra.mxu0 0
        %1314 = vmatprep.subr.bf16.mxu0 0
        %1315 = vmatpush1.bf16.msra.mxu0 0
        %1316 = vmatprep.mubr.bf16.mxu0 0
        %1317 = vmatmul.mubr.bf16.gmra.mrb[0].mxu0 %v1205
        %v1318 = vpop.f32.mrb[0].mxu0
        %v1319 = vadd.f32 %v1234, %v1318
        %v1320 = vpop.f32.mrb[0].mxu0
        %v1321 = vpop.f32.mrb[0].mxu0
        %v1322 = vadd.f32 %v1234, %v1321
        %v1323 = vpop.f32.mrb[0].mxu0
        %1324 = vmatprep.mubr.bf16.mxu0 0
        %1325 = vmatmul.mubr.bf16.gmra.mrb[0].mxu0 %v1206
        %v1326 = vpop.f32.mrb[0].mxu0
        %v1327 = vadd.f32 %v1234, %v1326
        %v1328 = vpop.f32.mrb[0].mxu0
        %v1329 = vpop.f32.mrb[0].mxu0
        %v1330 = vadd.f32 %v1234, %v1329
        %v1331 = vpop.f32.mrb[0].mxu0
        %1332 = vmatprep.mubr.bf16.mxu0 0
        %1333 = vmatmul.mubr.bf16.gmra.mrb[0].mxu0 %v1207
        %v1334 = vpop.f32.mrb[0].mxu0
        %v1335 = vadd.f32 %v1234, %v1334
        %v1336 = vpop.f32.mrb[0].mxu0
        %v1337 = vpop.f32.mrb[0].mxu0
        %v1338 = vadd.f32 %v1234, %v1337
        %v1339 = vpop.f32.mrb[0].mxu0
        %1340 = vmatprep.mubr.bf16.mxu0 0
        %1341 = vmatmul.mubr.bf16.gmra.mrb[0].mxu0 %v1208
        %v1342 = vpop.f32.mrb[0].mxu0
        %v1343 = vadd.f32 %v1234, %v1342
        %v1344 = vpop.f32.mrb[0].mxu0
        %v1345 = vpop.f32.mrb[0].mxu0
        %v1346 = vadd.f32 %v1234, %v1345
        %v1347 = vpop.f32.mrb[0].mxu0
        %1348 = vmatprep.mubr.bf16.mxu0 0
        %1349 = vmatmul.mubr.bf16.gmra.mrb[0].mxu0 %v1209
        %v1350 = vpop.f32.mrb[0].mxu0
        %v1351 = vadd.f32 %v1234, %v1350
        %v1352 = vpop.f32.mrb[0].mxu0
        %v1353 = vpop.f32.mrb[0].mxu0
        %v1354 = vadd.f32 %v1234, %v1353
        %v1355 = vpop.f32.mrb[0].mxu0
        %1356 = vmatprep.mubr.bf16.mxu0 0
        %1357 = vmatmul.mubr.bf16.gmra.mrb[0].mxu0 %v1210
        %v1358 = vpop.f32.mrb[0].mxu0
        %v1359 = vadd.f32 %v1234, %v1358
        %v1360 = vpop.f32.mrb[0].mxu0
        %v1361 = vpop.f32.mrb[0].mxu0
        %v1362 = vadd.f32 %v1234, %v1361
        %v1363 = vpop.f32.mrb[0].mxu0
        %1364 = vmatprep.mubr.bf16.mxu0 0
        %1365 = vmatmul.mubr.bf16.gmra.mrb[0].mxu0 %v1211
        %v1366 = vpop.f32.mrb[0].mxu0
        %v1367 = vadd.f32 %v1234, %v1366
        %v1368 = vpop.f32.mrb[0].mxu0
        %v1369 = vpop.f32.mrb[0].mxu0
        %v1370 = vadd.f32 %v1234, %v1369
        %v1371 = vpop.f32.mrb[0].mxu0
        %1372 = vmatprep.mubr.bf16.mxu0 0
        %1373 = vmatmul.mubr.bf16.gmra.mrb[0].mxu0 %v1212
        %v1374 = vpop.f32.mrb[0].mxu0
        %v1375 = vadd.f32 %v1234, %v1374
        %v1376 = vpop.f32.mrb[0].mxu0
        %v1377 = vpop.f32.mrb[0].mxu0
        %v1378 = vadd.f32 %v1234, %v1377
        %v1379 = vpop.f32.mrb[0].mxu0
        %1380 = vdwg.mxu0
        %v1381 = vmax.f32 %v1319, 0.0
        %v1382 = vmax.f32 %v1322, 0.0
        %v1383 = vmax.f32 %v1327, 0.0
        %v1384 = vmax.f32 %v1330, 0.0
        %v1385 = vmax.f32 %v1335, 0.0
        %v1386 = vmax.f32 %v1338, 0.0
        %v1387 = vmax.f32 %v1343, 0.0
        %v1388 = vmax.f32 %v1346, 0.0
        %v1389 = vmax.f32 %v1351, 0.0
        %v1390 = vmax.f32 %v1354, 0.0
        %v1391 = vmax.f32 %v1359, 0.0
        %v1392 = vmax.f32 %v1362, 0.0
        %v1393 = vmax.f32 %v1367, 0.0
        %v1394 = vmax.f32 %v1370, 0.0
        %v1395 = vmax.f32 %v1375, 0.0
        %v1396 = vmax.f32 %v1378, 0.0
        %v1397 = vld [vmem:[%s9] sm:$0x7]
        %v1398 = vld [vmem:[%s10] sm:$0x7]
        %1400 = vset.pattern.permute.xlu0 0
        %1401 = vperm.xlu0 %1400, %v1398
        %v1402 = vpop.permute.xlu0 %1401
        %1404 = vmatprep.subr.mxu0 0.0
        %1405 = vmatpush1.xpose.msra.mxu0 %v1381
        %1406 = vmatprep.subr.mxu0 0.0
        %1407 = vmatpush1.xpose.msra.mxu0 %v1382
        %1408 = vmatprep.subr.mxu0 0.0
        %1409 = vmatpush1.xpose.msra.mxu0 %v1383
        %1410 = vmatprep.subr.mxu0 0.0
        %1411 = vmatpush1.xpose.msra.mxu0 %v1384
        %1412 = vmatprep.subr.mxu0 0.0
        %1413 = vmatpush1.xpose.msra.mxu0 %v1385
        %1414 = vmatprep.subr.mxu0 0.0
        %1415 = vmatpush1.xpose.msra.mxu0 %v1386
        %1416 = vmatprep.subr.mxu0 0.0
        %1417 = vmatpush1.xpose.msra.mxu0 %v1387
        %1418 = vmatprep.subr.mxu0 0.0
        %1419 = vmatpush1.xpose.msra.mxu0 %v1388
        %1420 = vmatprep.subr.mxu0 0.0
        %1421 = vmatpush1.xpose.msra.mxu0 %v1389
        %1422 = vmatprep.subr.mxu0 0.0
        %1423 = vmatpush1.xpose.msra.mxu0 %v1390
        %1424 = vmatprep.subr.mxu0 0.0
        %1425 = vmatpush1.xpose.msra.mxu0 %v1391
        %1426 = vmatprep.subr.mxu0 0.0
        %1427 = vmatpush1.xpose.msra.mxu0 %v1392
        %1428 = vmatprep.subr.mxu0 0.0
        %1429 = vmatpush1.xpose.msra.mxu0 %v1393
        %1430 = vmatprep.subr.mxu0 0.0
        %1431 = vmatpush1.xpose.msra.mxu0 %v1394
        %1432 = vmatprep.subr.mxu0 0.0
        %1433 = vmatpush1.xpose.msra.mxu0 %v1395
        %1434 = vmatprep.subr.mxu0 0.0
        %1435 = vmatpush1.xpose.msra.mxu0 %v1396
        %1436 = vmatprep.subr.mxu0 0.0
        %1437 = vmatpush1.xpose.msra.mxu0 0.0
        %1438 = vmatprep.subr.mxu0 0.0
        %1439 = vmatpush1.xpose.msra.mxu0 0.0
        %1440 = vmatprep.subr.mxu0 0.0
        %1441 = vmatpush1.xpose.msra.mxu0 0.0
        %1442 = vmatprep.subr.mxu0 0.0
        %1443 = vmatpush1.xpose.msra.mxu0 0.0
        %1444 = vmatprep.subr.mxu0 0.0
        %1445 = vmatpush1.xpose.msra.mxu0 0.0
        %1446 = vmatprep.subr.mxu0 0.0
        %1447 = vmatpush1.xpose.msra.mxu0 0.0
        %1448 = vmatprep.subr.mxu0 0.0
        %1449 = vmatpush1.xpose.msra.mxu0 0.0
        %1450 = vmatprep.subr.mxu0 0.0
        %1451 = vmatpush1.xpose.msra.mxu0 0.0
        %1452 = vmatprep.subr.mxu0 0.0
        %1453 = vmatpush1.xpose.msra.mxu0 0.0
        %1454 = vmatprep.subr.mxu0 0.0
        %1455 = vmatpush1.xpose.msra.mxu0 0.0
        %1456 = vmatprep.subr.mxu0 0.0
        %1457 = vmatpush1.xpose.msra.mxu0 0.0
        %1458 = vmatprep.subr.mxu0 0.0
        %1459 = vmatpush1.xpose.msra.mxu0 0.0
        %1460 = vmatprep.subr.mxu0 0.0
        %1461 = vmatpush1.xpose.msra.mxu0 0.0
        %1462 = vmatprep.subr.mxu0 0.0
        %1463 = vmatpush1.xpose.msra.mxu0 0.0
        %1464 = vmatprep.subr.mxu0 0.0
        %1465 = vmatpush1.xpose.msra.mxu0 0.0
        %1466 = vmatprep.subr.mxu0 0.0
        %1467 = vmatpush1.xpose.msra.mxu0 0.0
        %1468 = vmatprep.mubr.f32.mxu0 0.0
        %1469 = vmatmul.mubr.f32.gmra.mrb[0].mxu0 %v1397
        %v1470 = vpop.f32.mrb[0].mxu0
        %v1471 = vadd.f32 %v1402, %v1470
        %v1472 = vpop.f32.mrb[0].mxu0
        %1473 = vdwg.mxu0
        %1474 = vst [vmem:[%s453] sm:$0x7] %v1471
        %p1475 = scmp.lt.s32.totalorder %s29, 1
        %s1476 = scalar_select %p1475, %s29, 1
        %p1477 = scmp.lt.s32.totalorder %s28, 0
        %s1478 = scalar_select %p1477, %s28, 0
        %s1479 = sadd.s32 %s1478, %s1476
        %s1480 = smul.addr %s1479, 4
        %s1481 = scalar_lea.vmem %s11, %s1480
        // Predicated region
        $region73: #{tpu_custom_call.1} parent=63 // pred_check
          %p1482 = pneg %p297
        $region74: #{tpu_custom_call.1} parent=63 // pred_check_branch
          %1484 = sbr.rel (%p1482) target = $region76
        $region75: #{tpu_custom_call.1} parent=63 // pred_region
          _
        $region76: #{tpu_custom_call.1} parent=63 // pred_fallthru
          _
      $region64: #{tpu_custom_call.1} parent=5 // pred_fallthru
        _
      %p1485 = scmp.le.s32.totalorder 2, %s19
      // Predicated region
      $region77: #{tpu_custom_call.1} parent=5 // pred_check
        %p1486 = pneg %p1485
      $region78: #{tpu_custom_call.1} parent=5 // pred_check_branch
        %1488 = sbr.rel (%p1486) target = $region80
      $region79: #{tpu_custom_call.1} parent=5 // pred_region
        %s1489 = ssub.s32 %s19, 2
        // Predicated region
        $region81: #{tpu_custom_call.1} parent=79 // pred_check
          %p1490 = pneg %p303
        $region82: #{tpu_custom_call.1} parent=79 // pred_check_branch
          %1492 = sbr.rel (%p1490) target = $region84
        $region83: #{tpu_custom_call.1} parent=79 // pred_region
          %p1493 = scmp.lt.s32.totalorder %s31, 1
          %s1494 = scalar_select %p1493, %s31, 1
          %p1495 = scmp.lt.s32.totalorder %s30, 0
          %s1496 = scalar_select %p1495, %s30, 0
          %s1497 = sadd.s32 %s1496, %s1494
          %s1498 = smul.addr %s1497, 4
          %s1499 = scalar_lea.vmem %s11, %s1498
        $region84: #{tpu_custom_call.1} parent=79 // pred_fallthru
          _
      $region80: #{tpu_custom_call.1} parent=5 // pred_fallthru
        _
    $region6: #{tpu_custom_call.1} parent=1 // loop_footer
      %s23 = sadd.s32 1, %s19
    $region7: #{tpu_custom_call.1} parent=1 // loop_footer_branch
      %18 = sbr.rel target = $region3
    $region8: #{tpu_custom_call.1} parent=1 // loop_exit
      _
    %1500 = vsyncpa [#allocation3], 1
    %s1501 = scalar_lea.sflag [#allocation3], 1
    %1502 = vsyncpa %s1501, 1
    %1503 = vsyncpa [#allocation5], 1

// kernel: tpu_custom_call.1
$region0: #{tpu_custom_call.1}
  #allocation0 [shape = 'u32[]', space=smem, size = 0x4, offset = 0x4, fixed_abs, tag = 'smem constant byte address 0x4 - core index']
  #allocation1 [shape = 'u32[144,128]{1,0:T(1,128)}', space=vmem, size = 0x12000, scoped, tag = 'internal scratch']
  %s0 = inlined_call_operand.vmem [shape: f32[128,128], index: 0, kind: input, shape index: {}]
  %s1 = inlined_call_operand.vmem [shape: f32[2,2,128], index: 1, kind: input, shape index: {}]
  %s2 = inlined_call_operand.hbm [shape: bf16[128,128], index: 2, kind: input, shape index: {}]
  %s3 = inlined_call_operand.vmem [shape: f32[1,128], index: 3, kind: input, shape index: {}]
  %s4 = inlined_call_operand.vmem [shape: f32[128,3], index: 4, kind: input, shape index: {}]
  %s5 = inlined_call_operand.vmem [shape: f32[1,3], index: 5, kind: input, shape index: {}]
  %s6 = inlined_call_operand.vmem [shape: f32[3,128], index: 6, kind: input, shape index: {}]
  %s7 = inlined_call_operand.hbm [shape: bf16[128,128], index: 7, kind: input, shape index: {}]
  %s8 = inlined_call_operand.vmem [shape: f32[1,128], index: 8, kind: input, shape index: {}]
  %s9 = inlined_call_operand.vmem [shape: f32[3,128], index: 9, kind: input, shape index: {}]
  %s10 = inlined_call_operand.vmem [shape: f32[3,1], index: 10, kind: input, shape index: {}]
  %s11 = inlined_call_operand.vmem [shape: f32[2,3,128], index: 11, kind: output, shape index: {}]
  %s12 = sld [smem:[#allocation0]]
  $region85: #{tpu_custom_call.1} parent=0
    _
  %s14 = ssub.s32 1, %s12
  %s15 = scalar_select 0, %s14, %s12
  $region1: #{tpu_custom_call.1} parent=0
    #allocation2 [shape = 'u8[32768]{0}', space=vmem, size = 0x8000, scoped, tag = 'input window, operand 2, single buffered']
    #allocation3 [shape = 's32[2]{0}', space=sflag, size = 0x8, scoped, tag = 'scoped memory for tpu_custom_call.1']
    #allocation4 [shape = 'u8[32768]{0}', space=vmem, size = 0x8000, scoped, tag = 'input window, operand 7, single buffered']
    #allocation5 [shape = 's32[1]{0}', space=sflag, size = 0x4, scoped, tag = 'scoped memory for tpu_custom_call.1']
    %16 = vsyncpa [#allocation3], 0
    %17 = vsyncpa [#allocation5], 0
    loop: start=0, step=1, limit=4
    $region2: #{tpu_custom_call.1} parent=1 // loop_pre_header
      _
    $region3: #{tpu_custom_call.1} parent=1 // loop_header
      %s19 = sphi 0, %s23
      %p20 = scmp.ge.s32.totalorder %s19, 4
      %s26 = sphi 0, %s38
      %s27 = sphi 0, %s34
      %s28 = sphi 0, %s26
      %s29 = sphi 0, %s27
      %s30 = sphi 0, %s28
      %s31 = sphi 0, %s29
      %s41 = sphi 0, %s43
      %s44 = sphi 0, %s41
      %s45 = sphi 0, %s44
      %s61 = sphi 0, %s45
      %s67 = sphi 0, %s69
      %s70 = sphi 0, %s67
      %s71 = sphi 0, %s70
      %s87 = sphi 0, %s71
      %s91 = sphi 0, %s91
      %s93 = sphi 0, %s91
      %s94 = sphi 0, %s93
      %s108 = sphi 0, %s94
      %s112 = sphi 0, %s112
      %s114 = sphi 0, %s112
      %s115 = sphi 0, %s114
      %s129 = sphi 0, %s115
      %s133 = sphi 0, %s133
      %s135 = sphi 0, %s133
      %s136 = sphi 0, %s135
      %s150 = sphi 0, %s136
      %s154 = sphi 0, %s154
      %s156 = sphi 0, %s154
      %s157 = sphi 0, %s156
      %s171 = sphi 0, %s157
      %s175 = sphi 0, %s175
      %s177 = sphi 0, %s175
      %s178 = sphi 0, %s177
      %s192 = sphi 0, %s178
      %s196 = sphi 0, %s196
      %s198 = sphi 0, %s196
      %s199 = sphi 0, %s198
      %s213 = sphi 0, %s199
      %s217 = sphi 0, %s217
      %s219 = sphi 0, %s217
      %s220 = sphi 0, %s219
      %s234 = sphi 0, %s220
      %s238 = sphi 0, %s238
      %s240 = sphi 0, %s238
      %s241 = sphi 0, %s240
      %s255 = sphi 0, %s241
      %s259 = sphi 0, %s259
      %s261 = sphi 0, %s259
      %s262 = sphi 0, %s261
      %s276 = sphi 0, %s262
      %s284 = sphi 0, %s286
      %s287 = sphi 0, %s284
      %s288 = sphi 0, %s287
      %s304 = sphi 0, %s288
    $region4: #{tpu_custom_call.1} parent=1 // loop_header_branch
      %22 = sbr.rel (%p20) target = $region8
    $region5: #{tpu_custom_call.1} parent=1 // loop_body
      %s24 = ssub.s32 %s19, 1
      %s25 = ssub.s32 %s19, 2
      %s32 = sadd.s32 1, %s27
      %p33 = scmp.ge.s32.totalorder %s32, 2
      %s34 = scalar_select %p33, 0, %s32
      %s35 = sadd.s32 1, %s26
      %s36 = scalar_select %p33, %s35, %s26
      %p37 = scmp.ge.s32.totalorder %s36, 1
      %s38 = scalar_select %p37, 0, %s36
      %s39 = ssub.s32 %s26, %s38
      %p40 = scmp.eq.s32.totalorder %s39, 0
      %s42 = sadd.s32 %s41, 1
      %s43 = scalar_select %p40, %s41, %s42
      %p46 = pneg %p40
      %p47 = scmp.eq.s32.totalorder %s19, 1
      %p48 = por %p46, %p47
      %p49 = scmp.ne.s32.totalorder %s41, %s44
      %p50 = scmp.eq.s32.totalorder %s19, 0
      %p51 = por %p49, %p50
      %p52 = scmp.ne.s32.totalorder %s41, %s44
      %p53 = scmp.eq.s32.totalorder %s24, 1
      %p54 = por %p52, %p53
      %p55 = scmp.ne.s32.totalorder %s44, %s45
      %p56 = scmp.eq.s32.totalorder %s24, 0
      %p57 = por %p55, %p56
      %p58 = scmp.ne.s32.totalorder %s44, %s45
      %p59 = scmp.eq.s32.totalorder %s25, 1
      %p60 = por %p58, %p59
      %p62 = scmp.ne.s32.totalorder %s45, %s61
      %p63 = scmp.eq.s32.totalorder %s25, 0
      %p64 = por %p62, %p63
      %s65 = ssub.s32 %s27, %s34
      %p66 = scmp.eq.s32.totalorder %s65, 0
      %s68 = sadd.s32 %s67, 1
      %s69 = scalar_select %p66, %s67, %s68
      %p72 = pneg %p66
      %p73 = scmp.eq.s32.totalorder %s19, 1
      %p74 = por %p72, %p73
      %p75 = scmp.ne.s32.totalorder %s67, %s70
      %p76 = scmp.eq.s32.totalorder %s19, 0
      %p77 = por %p75, %p76
      %p78 = scmp.ne.s32.totalorder %s67, %s70
      %p79 = scmp.eq.s32.totalorder %s24, 1
      %p80 = por %p78, %p79
      %p81 = scmp.ne.s32.totalorder %s70, %s71
      %p82 = scmp.eq.s32.totalorder %s24, 0
      %p83 = por %p81, %p82
      %p84 = scmp.ne.s32.totalorder %s70, %s71
      %p85 = scmp.eq.s32.totalorder %s25, 1
      %p86 = por %p84, %p85
      %p88 = scmp.ne.s32.totalorder %s71, %s87
      %p89 = scmp.eq.s32.totalorder %s25, 0
      %p90 = por %p88, %p89
      %s92 = sadd.s32 %s91, 1
      %p95 = scmp.eq.s32.totalorder %s19, 1
      %p96 = scmp.ne.s32.totalorder %s91, %s93
      %p97 = scmp.eq.s32.totalorder %s19, 0
      %p98 = por %p96, %p97
      %p99 = scmp.ne.s32.totalorder %s91, %s93
      %p100 = scmp.eq.s32.totalorder %s24, 1
      %p101 = por %p99, %p100
      %p102 = scmp.ne.s32.totalorder %s93, %s94
      %p103 = scmp.eq.s32.totalorder %s24, 0
      %p104 = por %p102, %p103
      %p105 = scmp.ne.s32.totalorder %s93, %s94
      %p106 = scmp.eq.s32.totalorder %s25, 1
      %p107 = por %p105, %p106
      %p109 = scmp.ne.s32.totalorder %s94, %s108
      %p110 = scmp.eq.s32.totalorder %s25, 0
      %p111 = por %p109, %p110
      %s113 = sadd.s32 %s112, 1
      %p116 = scmp.eq.s32.totalorder %s19, 1
      %p117 = scmp.ne.s32.totalorder %s112, %s114
      %p118 = scmp.eq.s32.totalorder %s19, 0
      %p119 = por %p117, %p118
      %p120 = scmp.ne.s32.totalorder %s112, %s114
      %p121 = scmp.eq.s32.totalorder %s24, 1
      %p122 = por %p120, %p121
      %p123 = scmp.ne.s32.totalorder %s114, %s115
      %p124 = scmp.eq.s32.totalorder %s24, 0
      %p125 = por %p123, %p124
      %p126 = scmp.ne.s32.totalorder %s114, %s115
      %p127 = scmp.eq.s32.totalorder %s25, 1
      %p128 = por %p126, %p127
      %p130 = scmp.ne.s32.totalorder %s115, %s129
      %p131 = scmp.eq.s32.totalorder %s25, 0
      %p132 = por %p130, %p131
      %s134 = sadd.s32 %s133, 1
      %p137 = scmp.eq.s32.totalorder %s19, 1
      %p138 = scmp.ne.s32.totalorder %s133, %s135
      %p139 = scmp.eq.s32.totalorder %s19, 0
      %p140 = por %p138, %p139
      %p141 = scmp.ne.s32.totalorder %s133, %s135
      %p142 = scmp.eq.s32.totalorder %s24, 1
      %p143 = por %p141, %p142
      %p144 = scmp.ne.s32.totalorder %s135, %s136
      %p145 = scmp.eq.s32.totalorder %s24, 0
      %p146 = por %p144, %p145
      %p147 = scmp.ne.s32.totalorder %s135, %s136
      %p148 = scmp.eq.s32.totalorder %s25, 1
      %p149 = por %p147, %p148
      %p151 = scmp.ne.s32.totalorder %s136, %s150
      %p152 = scmp.eq.s32.totalorder %s25, 0
      %p153 = por %p151, %p152
      %s155 = sadd.s32 %s154, 1
      %p158 = scmp.eq.s32.totalorder %s19, 1
      %p159 = scmp.ne.s32.totalorder %s154, %s156
      %p160 = scmp.eq.s32.totalorder %s19, 0
      %p161 = por %p159, %p160
      %p162 = scmp.ne.s32.totalorder %s154, %s156
      %p163 = scmp.eq.s32.totalorder %s24, 1
      %p164 = por %p162, %p163
      %p165 = scmp.ne.s32.totalorder %s156, %s157
      %p166 = scmp.eq.s32.totalorder %s24, 0
      %p167 = por %p165, %p166
      %p168 = scmp.ne.s32.totalorder %s156, %s157
      %p169 = scmp.eq.s32.totalorder %s25, 1
      %p170 = por %p168, %p169
      %p172 = scmp.ne.s32.totalorder %s157, %s171
      %p173 = scmp.eq.s32.totalorder %s25, 0
      %p174 = por %p172, %p173
      %s176 = sadd.s32 %s175, 1
      %p179 = scmp.eq.s32.totalorder %s19, 1
      %p180 = scmp.ne.s32.totalorder %s175, %s177
      %p181 = scmp.eq.s32.totalorder %s19, 0
      %p182 = por %p180, %p181
      %p183 = scmp.ne.s32.totalorder %s175, %s177
      %p184 = scmp.eq.s32.totalorder %s24, 1
      %p185 = por %p183, %p184
      %p186 = scmp.ne.s32.totalorder %s177, %s178
      %p187 = scmp.eq.s32.totalorder %s24, 0
      %p188 = por %p186, %p187
      %p189 = scmp.ne.s32.totalorder %s177, %s178
      %p190 = scmp.eq.s32.totalorder %s25, 1
      %p191 = por %p189, %p190
      %p193 = scmp.ne.s32.totalorder %s178, %s192
      %p194 = scmp.eq.s32.totalorder %s25, 0
      %p195 = por %p193, %p194
      %s197 = sadd.s32 %s196, 1
      %p200 = scmp.eq.s32.totalorder %s19, 1
      %p201 = scmp.ne.s32.totalorder %s196, %s198
      %p202 = scmp.eq.s32.totalorder %s19, 0
      %p203 = por %p201, %p202
      %p204 = scmp.ne.s32.totalorder %s196, %s198
      %p205 = scmp.eq.s32.totalorder %s24, 1
      %p206 = por %p204, %p205
      %p207 = scmp.ne.s32.totalorder %s198, %s199
      %p208 = scmp.eq.s32.totalorder %s24, 0
      %p209 = por %p207, %p208
      %p210 = scmp.ne.s32.totalorder %s198, %s199
      %p211 = scmp.eq.s32.totalorder %s25, 1
      %p212 = por %p210, %p211
      %p214 = scmp.ne.s32.totalorder %s199, %s213
      %p215 = scmp.eq.s32.totalorder %s25, 0
      %p216 = por %p214, %p215
      %s218 = sadd.s32 %s217, 1
      %p221 = scmp.eq.s32.totalorder %s19, 1
      %p222 = scmp.ne.s32.totalorder %s217, %s219
      %p223 = scmp.eq.s32.totalorder %s19, 0
      %p224 = por %p222, %p223
      %p225 = scmp.ne.s32.totalorder %s217, %s219
      %p226 = scmp.eq.s32.totalorder %s24, 1
      %p227 = por %p225, %p226
      %p228 = scmp.ne.s32.totalorder %s219, %s220
      %p229 = scmp.eq.s32.totalorder %s24, 0
      %p230 = por %p228, %p229
      %p231 = scmp.ne.s32.totalorder %s219, %s220
      %p232 = scmp.eq.s32.totalorder %s25, 1
      %p233 = por %p231, %p232
      %p235 = scmp.ne.s32.totalorder %s220, %s234
      %p236 = scmp.eq.s32.totalorder %s25, 0
      %p237 = por %p235, %p236
      %s239 = sadd.s32 %s238, 1
      %p242 = scmp.eq.s32.totalorder %s19, 1
      %p243 = scmp.ne.s32.totalorder %s238, %s240
      %p244 = scmp.eq.s32.totalorder %s19, 0
      %p245 = por %p243, %p244
      %p246 = scmp.ne.s32.totalorder %s238, %s240
      %p247 = scmp.eq.s32.totalorder %s24, 1
      %p248 = por %p246, %p247
      %p249 = scmp.ne.s32.totalorder %s240, %s241
      %p250 = scmp.eq.s32.totalorder %s24, 0
      %p251 = por %p249, %p250
      %p252 = scmp.ne.s32.totalorder %s240, %s241
      %p253 = scmp.eq.s32.totalorder %s25, 1
      %p254 = por %p252, %p253
      %p256 = scmp.ne.s32.totalorder %s241, %s255
      %p257 = scmp.eq.s32.totalorder %s25, 0
      %p258 = por %p256, %p257
      %s260 = sadd.s32 %s259, 1
      %p263 = scmp.eq.s32.totalorder %s19, 1
      %p264 = scmp.ne.s32.totalorder %s259, %s261
      %p265 = scmp.eq.s32.totalorder %s19, 0
      %p266 = por %p264, %p265
      %p267 = scmp.ne.s32.totalorder %s259, %s261
      %p268 = scmp.eq.s32.totalorder %s24, 1
      %p269 = por %p267, %p268
      %p270 = scmp.ne.s32.totalorder %s261, %s262
      %p271 = scmp.eq.s32.totalorder %s24, 0
      %p272 = por %p270, %p271
      %p273 = scmp.ne.s32.totalorder %s261, %s262
      %p274 = scmp.eq.s32.totalorder %s25, 1
      %p275 = por %p273, %p274
      %p277 = scmp.ne.s32.totalorder %s262, %s276
      %p278 = scmp.eq.s32.totalorder %s25, 0
      %p279 = por %p277, %p278
      %s280 = ssub.s32 %s27, %s34
      %s281 = ssub.s32 %s26, %s38
      %s282 = sor.u32 %s280, %s281
      %p283 = scmp.eq.s32.totalorder %s282, 0
      %s285 = sadd.s32 %s284, 1
      %s286 = scalar_select %p283, %s284, %s285
      %p289 = pneg %p283
      %p290 = scmp.eq.s32.totalorder %s19, 1
      %p291 = por %p289, %p290
      %p292 = scmp.ne.s32.totalorder %s284, %s287
      %p293 = scmp.eq.s32.totalorder %s19, 0
      %p294 = por %p292, %p293
      %p295 = scmp.ne.s32.totalorder %s284, %s287
      %p296 = scmp.eq.s32.totalorder %s24, 1
      %p297 = por %p295, %p296
      %p298 = scmp.ne.s32.totalorder %s287, %s288
      %p299 = scmp.eq.s32.totalorder %s24, 0
      %p300 = por %p298, %p299
      %p301 = scmp.ne.s32.totalorder %s287, %s288
      %p302 = scmp.eq.s32.totalorder %s25, 1
      %p303 = por %p301, %p302
      %p305 = scmp.ne.s32.totalorder %s288, %s304
      %p306 = scmp.eq.s32.totalorder %s25, 0
      %p307 = por %p305, %p306
      %p308 = scmp.le.s32.totalorder 1, %s19
      %p309 = scmp.lt.s32.totalorder %s19, 3
      %p310 = pnand %p308, %p309
      %p311 = pneg %p310
      // Predicated region
      $region9: #{tpu_custom_call.1} parent=5 // pred_check
        _
      $region10: #{tpu_custom_call.1} parent=5 // pred_check_branch
        %313 = sbr.rel (%p310) target = $region12
      $region11: #{tpu_custom_call.1} parent=5 // pred_region
        %s314 = ssub.s32 %s19, 1
        // Predicated region
        $region13: #{tpu_custom_call.1} parent=11 // pred_check
          %p315 = pneg %p57
        $region14: #{tpu_custom_call.1} parent=11 // pred_check_branch
          %317 = sbr.rel (%p315) target = $region16
        $region15: #{tpu_custom_call.1} parent=11 // pred_region
          %s318 = smul.u32 16, %s28
          %p319 = scmp.lt.s32.totalorder %s318, 15
          %s320 = scalar_select %p319, %s318, 15
          %s321 = smul.addr %s320, 8
          %s322 = scalar_lea.vmem %s0, %s321
          %s323 = smul.u32 16, %s28
        $region16: #{tpu_custom_call.1} parent=11 // pred_fallthru
          _
        // Predicated region
        $region17: #{tpu_custom_call.1} parent=11 // pred_check
          %p324 = pneg %p104
        $region18: #{tpu_custom_call.1} parent=11 // pred_check_branch
          %326 = sbr.rel (%p324) target = $region20
        $region19: #{tpu_custom_call.1} parent=11 // pred_region
          %s328 = ssub.s32 1024, 1024
          %329 = vsyncadd [#allocation3], %s328
          %s330 = sshll.u32 [#allocation2], 4
          %s331 = int_to_ptr.vmem [resolvable:$true] %s330
          %336 = dma.hbm_to_vmem [thread:$0]  %s2, 1024, %s331, [#allocation3], 64, 64, 4
        $region20: #{tpu_custom_call.1} parent=11 // pred_fallthru
          _
        // Predicated region
        $region21: #{tpu_custom_call.1} parent=11 // pred_check
          %p337 = pneg %p125
        $region22: #{tpu_custom_call.1} parent=11 // pred_check_branch
          %339 = sbr.rel (%p337) target = $region24
        $region23: #{tpu_custom_call.1} parent=11 // pred_region
          _
        $region24: #{tpu_custom_call.1} parent=11 // pred_fallthru
          _
        // Predicated region
        $region25: #{tpu_custom_call.1} parent=11 // pred_check
          %p340 = pneg %p146
        $region26: #{tpu_custom_call.1} parent=11 // pred_check_branch
          %342 = sbr.rel (%p340) target = $region28
        $region27: #{tpu_custom_call.1} parent=11 // pred_region
          _
        $region28: #{tpu_custom_call.1} parent=11 // pred_fallthru
          _
        // Predicated region
        $region29: #{tpu_custom_call.1} parent=11 // pred_check
          %p343 = pneg %p167
        $region30: #{tpu_custom_call.1} parent=11 // pred_check_branch
          %345 = sbr.rel (%p343) target = $region32
        $region31: #{tpu_custom_call.1} parent=11 // pred_region
          _
        $region32: #{tpu_custom_call.1} parent=11 // pred_fallthru
          _
        // Predicated region
        $region33: #{tpu_custom_call.1} parent=11 // pred_check
          %p346 = pneg %p188
        $region34: #{tpu_custom_call.1} parent=11 // pred_check_branch
          %348 = sbr.rel (%p346) target = $region36
        $region35: #{tpu_custom_call.1} parent=11 // pred_region
          _
        $region36: #{tpu_custom_call.1} parent=11 // pred_fallthru
          _
        // Predicated region
        $region37: #{tpu_custom_call.1} parent=11 // pred_check
          %p349 = pneg %p209
        $region38: #{tpu_custom_call.1} parent=11 // pred_check_branch
          %351 = sbr.rel (%p349) target = $region40
        $region39: #{tpu_custom_call.1} parent=11 // pred_region
          %s353 = ssub.s32 1024, 1024
          %354 = vsyncadd [#allocation5], %s353
          %s355 = sshll.u32 [#allocation4], 4
          %s356 = int_to_ptr.vmem [resolvable:$true] %s355
          %361 = dma.hbm_to_vmem [thread:$0]  %s7, 1024, %s356, [#allocation5], 64, 64, 4
        $region40: #{tpu_custom_call.1} parent=11 // pred_fallthru
          _
        // Predicated region
        $region41: #{tpu_custom_call.1} parent=11 // pred_check
          %p362 = pneg %p230
        $region42: #{tpu_custom_call.1} parent=11 // pred_check_branch
          %364 = sbr.rel (%p362) target = $region44
        $region43: #{tpu_custom_call.1} parent=11 // pred_region
          _
        $region44: #{tpu_custom_call.1} parent=11 // pred_fallthru
          _
        // Predicated region
        $region45: #{tpu_custom_call.1} parent=11 // pred_check
          %p365 = pneg %p251
        $region46: #{tpu_custom_call.1} parent=11 // pred_check_branch
          %367 = sbr.rel (%p365) target = $region48
        $region47: #{tpu_custom_call.1} parent=11 // pred_region
          _
        $region48: #{tpu_custom_call.1} parent=11 // pred_fallthru
          _
        // Predicated region
        $region49: #{tpu_custom_call.1} parent=11 // pred_check
          %p368 = pneg %p272
        $region50: #{tpu_custom_call.1} parent=11 // pred_check_branch
          %370 = sbr.rel (%p368) target = $region52
        $region51: #{tpu_custom_call.1} parent=11 // pred_region
          _
        $region52: #{tpu_custom_call.1} parent=11 // pred_fallthru
          _
      $region12: #{tpu_custom_call.1} parent=5 // pred_fallthru
        _
      %p371 = scmp.lt.s32.totalorder %s19, 2
      // Predicated region
      $region53: #{tpu_custom_call.1} parent=5 // pred_check
        %p372 = pneg %p371
      $region54: #{tpu_custom_call.1} parent=5 // pred_check_branch
        %374 = sbr.rel (%p372) target = $region56
      $region55: #{tpu_custom_call.1} parent=5 // pred_region
        // Predicated region
        $region57: #{tpu_custom_call.1} parent=55 // pred_check
          %p375 = pneg %p77
        $region58: #{tpu_custom_call.1} parent=55 // pred_check_branch
          %377 = sbr.rel (%p375) target = $region60
        $region59: #{tpu_custom_call.1} parent=55 // pred_region
          %p378 = scmp.lt.s32.totalorder %s27, 1
          %s379 = scalar_select %p378, %s27, 1
          %s380 = smul.addr %s379, 2
          %s381 = scalar_lea.vmem %s1, %s380
        $region60: #{tpu_custom_call.1} parent=55 // pred_fallthru
          _
      $region56: #{tpu_custom_call.1} parent=5 // pred_fallthru
        _
      %p382 = scmp.le.s32.totalorder 1, %s19
      %p383 = scmp.lt.s32.totalorder %s19, 3
      %p384 = pnand %p382, %p383
      %p385 = pneg %p384
      // Predicated region
      $region61: #{tpu_custom_call.1} parent=5 // pred_check
        _
      $region62: #{tpu_custom_call.1} parent=5 // pred_check_branch
        %387 = sbr.rel (%p384) target = $region64
      $region63: #{tpu_custom_call.1} parent=5 // pred_region
        %s388 = ssub.s32 %s19, 1
        // Predicated region
        $region65: #{tpu_custom_call.1} parent=63 // pred_check
          %p389 = pneg %p104
        $region66: #{tpu_custom_call.1} parent=63 // pred_check_branch
          %391 = sbr.rel (%p389) target = $region68
        $region67: #{tpu_custom_call.1} parent=63 // pred_region
          %392 = dma.done [#allocation3], 1024
        $region68: #{tpu_custom_call.1} parent=63 // pred_fallthru
          _
        // Predicated region
        $region69: #{tpu_custom_call.1} parent=63 // pred_check
          %p393 = pneg %p209
        $region70: #{tpu_custom_call.1} parent=63 // pred_check_branch
          %395 = sbr.rel (%p393) target = $region72
        $region71: #{tpu_custom_call.1} parent=63 // pred_region
          %396 = dma.done [#allocation5], 1024
        $region72: #{tpu_custom_call.1} parent=63 // pred_fallthru
          _
        %s397 = smul.u32 16, %s28
        %p398 = scmp.lt.s32.totalorder %s397, 15
        %s399 = scalar_select %p398, %s397, 15
        %s400 = smul.addr %s399, 8
        %s401 = scalar_lea.vmem %s0, %s400
        %p402 = pneg %p57
        %p403 = pneg %p54
        %p404 = scmp.lt.s32.totalorder %s29, 1
        %s405 = scalar_select %p404, %s29, 1
        %s406 = smul.addr %s405, 2
        %s407 = scalar_lea.vmem %s1, %s406
        %p408 = pneg %p83
        %p409 = pneg %p80
        %p410 = pneg %p104
        %p411 = pneg %p101
        %p412 = pneg %p125
        %p413 = pneg %p122
        %p414 = pneg %p146
        %p415 = pneg %p143
        %p416 = pneg %p167
        %p417 = pneg %p164
        %p418 = pneg %p188
        %p419 = pneg %p185
        %p420 = pneg %p209
        %p421 = pneg %p206
        %p422 = pneg %p230
        %p423 = pneg %p227
        %p424 = pneg %p251
        %p425 = pneg %p248
        %p426 = pneg %p272
        %p427 = pneg %p269
        %p428 = pneg %p300
        %p429 = pneg %p297
        %p430 = scmp.lt.s32.totalorder %s29, 1
        %s431 = scalar_select %p430, %s29, 1
        %p432 = scmp.lt.s32.totalorder %s28, 0
        %s433 = scalar_select %p432, %s28, 0
        %s434 = sadd.s32 %s433, %s431
        %s435 = smul.addr %s434, 4
        %s436 = scalar_lea.vmem %s11, %s435
        %s437 = smul.u32 16, %s28
        %p438 = scmp.lt.s32.totalorder %s437, 15
        %s439 = scalar_select %p438, %s437, 15
        %s440 = smul.addr %s439, 8
        %s441 = scalar_lea.vmem %s0, %s440
        %s442 = smul.u32 16, %s28
        %p443 = scmp.lt.s32.totalorder %s29, 1
        %s444 = scalar_select %p443, %s29, 1
        %s445 = smul.addr %s444, 2
        %s446 = scalar_lea.vmem %s1, %s445
        %p447 = scmp.lt.s32.totalorder %s29, 1
        %s448 = scalar_select %p447, %s29, 1
        %p449 = scmp.lt.s32.totalorder %s28, 0
        %s450 = scalar_select %p449, %s28, 0
        %s451 = sadd.s32 %s450, %s448
        %s452 = smul.addr %s451, 4
        %s453 = scalar_lea.vmem %s11, %s452
        %v455 = vld [vmem:[%s446] sm:$0x3]
        %v456 = vld [vmem:[%s441] sm:$0xff]
        %v457 = vld [vmem:[%s441 + $0x8] sm:$0xff]
        %v458 = vld [vmem:[%s441 + $0x10] sm:$0xff]
        %v459 = vld [vmem:[%s441 + $0x18] sm:$0xff]
        %v460 = vld [vmem:[%s441 + $0x20] sm:$0xff]
        %v461 = vld [vmem:[%s441 + $0x28] sm:$0xff]
        %v462 = vld [vmem:[%s441 + $0x30] sm:$0xff]
        %v463 = vld [vmem:[%s441 + $0x38] sm:$0xff]
        %v464 = vld [vmem:[%s441 + $0x40] sm:$0xff]
        %v465 = vld [vmem:[%s441 + $0x48] sm:$0xff]
        %v466 = vld [vmem:[%s441 + $0x50] sm:$0xff]
        %v467 = vld [vmem:[%s441 + $0x58] sm:$0xff]
        %v468 = vld [vmem:[%s441 + $0x60] sm:$0xff]
        %v469 = vld [vmem:[%s441 + $0x68] sm:$0xff]
        %v470 = vld [vmem:[%s441 + $0x70] sm:$0xff]
        %v471 = vld [vmem:[%s441 + $0x78] sm:$0xff]
        %v472 = vlaneseq
        %v473 = vshrl.u32 %v472, 7
        %v474 = vsub.s32 0, %v473
        %v475 = vrot.slane %v455, %v474
        %v476 = vadd.f32 %v456, %v475
        %v477 = vadd.f32 %v457, %v475
        %v478 = vadd.f32 %v458, %v475
        %v479 = vadd.f32 %v459, %v475
        %v480 = vadd.f32 %v460, %v475
        %v481 = vadd.f32 %v461, %v475
        %v482 = vadd.f32 %v462, %v475
        %v483 = vadd.f32 %v463, %v475
        %v484 = vadd.f32 %v464, %v475
        %v485 = vadd.f32 %v465, %v475
        %v486 = vadd.f32 %v466, %v475
        %v487 = vadd.f32 %v467, %v475
        %v488 = vadd.f32 %v468, %v475
        %v489 = vadd.f32 %v469, %v475
        %v490 = vadd.f32 %v470, %v475
        %v491 = vadd.f32 %v471, %v475
        %v492 = vmax.f32 %v476, 0.0
        %v493 = vmax.f32 %v477, 0.0
        %v494 = vmax.f32 %v478, 0.0
        %v495 = vmax.f32 %v479, 0.0
        %v496 = vmax.f32 %v480, 0.0
        %v497 = vmax.f32 %v481, 0.0
        %v498 = vmax.f32 %v482, 0.0
        %v499 = vmax.f32 %v483, 0.0
        %v500 = vmax.f32 %v484, 0.0
        %v501 = vmax.f32 %v485, 0.0
        %v502 = vmax.f32 %v486, 0.0
        %v503 = vmax.f32 %v487, 0.0
        %v504 = vmax.f32 %v488, 0.0
        %v505 = vmax.f32 %v489, 0.0
        %v506 = vmax.f32 %v490, 0.0
        %v507 = vmax.f32 %v491, 0.0
        %v508 = vpack.c.bf16 %v493, %v492
        %v509 = vpack.c.bf16 %v495, %v494
        %v510 = vpack.c.bf16 %v497, %v496
        %v511 = vpack.c.bf16 %v499, %v498
        %v512 = vpack.c.bf16 %v501, %v500
        %v513 = vpack.c.bf16 %v503, %v502
        %v514 = vpack.c.bf16 %v505, %v504
        %v515 = vpack.c.bf16 %v507, %v506
        %v516 = vld [vmem:[#allocation2] sm:$0xf]
        %v517 = vld [vmem:[#allocation2 + $0x4] sm:$0xf]
        %v518 = vld [vmem:[#allocation2 + $0x8] sm:$0xf]
        %v519 = vld [vmem:[#allocation2 + $0xc] sm:$0xf]
        %v520 = vld [vmem:[#allocation2 + $0x10] sm:$0xf]
        %v521 = vld [vmem:[#allocation2 + $0x14] sm:$0xf]
        %v522 = vld [vmem:[#allocation2 + $0x18] sm:$0xf]
        %v523 = vld [vmem:[#allocation2 + $0x1c] sm:$0xf]
        %v524 = vld [vmem:[#allocation2 + $0x20] sm:$0xf]
        %v525 = vld [vmem:[#allocation2 + $0x24] sm:$0xf]
        %v526 = vld [vmem:[#allocation2 + $0x28] sm:$0xf]
        %v527 = vld [vmem:[#allocation2 + $0x2c] sm:$0xf]
        %v528 = vld [vmem:[#allocation2 + $0x30] sm:$0xf]
        %v529 = vld [vmem:[#allocation2 + $0x34] sm:$0xf]
        %v530 = vld [vmem:[#allocation2 + $0x38] sm:$0xf]
        %v531 = vld [vmem:[#allocation2 + $0x3c] sm:$0xf]
        %v532 = vld [vmem:[%s3] sm:$0x1]
        %v534 = vlaneseq
        %v535 = vshrl.u32 %v534, 7
        %v536 = vsub.s32 0, %v535
        %v537 = vrot.slane %v532, %v536
        %v555 = vunpack.c.l.b16 %v516
        %v556 = vunpack.c.l.b16 %v517
        %v557 = vunpack.c.l.b16 %v518
        %v558 = vunpack.c.l.b16 %v519
        %v559 = vunpack.c.l.b16 %v520
        %v560 = vunpack.c.l.b16 %v521
        %v561 = vunpack.c.l.b16 %v522
        %v562 = vunpack.c.l.b16 %v523
        %v563 = vunpack.c.l.b16 %v524
        %v564 = vunpack.c.l.b16 %v525
        %v565 = vunpack.c.l.b16 %v526
        %v566 = vunpack.c.l.b16 %v527
        %v567 = vunpack.c.l.b16 %v528
        %v568 = vunpack.c.l.b16 %v529
        %v569 = vunpack.c.l.b16 %v530
        %v570 = vunpack.c.l.b16 %v531
        %v571 = vpack.c.b16 %v556, %v555
        %v572 = vpack.c.b16 %v558, %v557
        %v573 = vpack.c.b16 %v560, %v559
        %v574 = vpack.c.b16 %v562, %v561
        %v575 = vpack.c.b16 %v564, %v563
        %v576 = vpack.c.b16 %v566, %v565
        %v577 = vpack.c.b16 %v568, %v567
        %v578 = vpack.c.b16 %v570, %v569
        %587 = vmatprep.subr.bf16.mxu0 0
        %588 = vmatpush1.bf16.msra.mxu0 %v571
        %589 = vmatprep.subr.bf16.mxu0 0
        %590 = vmatpush1.bf16.msra.mxu0 %v572
        %591 = vmatprep.subr.bf16.mxu0 0
        %592 = vmatpush1.bf16.msra.mxu0 %v573
        %593 = vmatprep.subr.bf16.mxu0 0
        %594 = vmatpush1.bf16.msra.mxu0 %v574
        %595 = vmatprep.subr.bf16.mxu0 0
        %596 = vmatpush1.bf16.msra.mxu0 %v575
        %597 = vmatprep.subr.bf16.mxu0 0
        %598 = vmatpush1.bf16.msra.mxu0 %v576
        %599 = vmatprep.subr.bf16.mxu0 0
        %600 = vmatpush1.bf16.msra.mxu0 %v577
        %601 = vmatprep.subr.bf16.mxu0 0
        %602 = vmatpush1.bf16.msra.mxu0 %v578
        %603 = vmatprep.subr.bf16.mxu0 0
        %604 = vmatpush1.bf16.msra.mxu0 0
        %605 = vmatprep.subr.bf16.mxu0 0
        %606 = vmatpush1.bf16.msra.mxu0 0
        %607 = vmatprep.subr.bf16.mxu0 0
        %608 = vmatpush1.bf16.msra.mxu0 0
        %609 = vmatprep.subr.bf16.mxu0 0
        %610 = vmatpush1.bf16.msra.mxu0 0
        %611 = vmatprep.subr.bf16.mxu0 0
        %612 = vmatpush1.bf16.msra.mxu0 0
        %613 = vmatprep.subr.bf16.mxu0 0
        %614 = vmatpush1.bf16.msra.mxu0 0
        %615 = vmatprep.subr.bf16.mxu0 0
        %616 = vmatpush1.bf16.msra.mxu0 0
        %617 = vmatprep.subr.bf16.mxu0 0
        %618 = vmatpush1.bf16.msra.mxu0 0
        %619 = vmatprep.mubr.bf16.mxu0 0
        %620 = vmatmul.mubr.bf16.gmra.mrb[0].mxu0 %v508
        %v621 = vpop.f32.mrb[0].mxu0
        %v622 = vadd.f32 %v537, %v621
        %v623 = vpop.f32.mrb[0].mxu0
        %v624 = vpop.f32.mrb[0].mxu0
        %v625 = vadd.f32 %v537, %v624
        %v626 = vpop.f32.mrb[0].mxu0
        %627 = vmatprep.mubr.bf16.mxu0 0
        %628 = vmatmul.mubr.bf16.gmra.mrb[0].mxu0 %v509
        %v629 = vpop.f32.mrb[0].mxu0
        %v630 = vadd.f32 %v537, %v629
        %v631 = vpop.f32.mrb[0].mxu0
        %v632 = vpop.f32.mrb[0].mxu0
        %v633 = vadd.f32 %v537, %v632
        %v634 = vpop.f32.mrb[0].mxu0
        %635 = vmatprep.mubr.bf16.mxu0 0
        %636 = vmatmul.mubr.bf16.gmra.mrb[0].mxu0 %v510
        %v637 = vpop.f32.mrb[0].mxu0
        %v638 = vadd.f32 %v537, %v637
        %v639 = vpop.f32.mrb[0].mxu0
        %v640 = vpop.f32.mrb[0].mxu0
        %v641 = vadd.f32 %v537, %v640
        %v642 = vpop.f32.mrb[0].mxu0
        %643 = vmatprep.mubr.bf16.mxu0 0
        %644 = vmatmul.mubr.bf16.gmra.mrb[0].mxu0 %v511
        %v645 = vpop.f32.mrb[0].mxu0
        %v646 = vadd.f32 %v537, %v645
        %v647 = vpop.f32.mrb[0].mxu0
        %v648 = vpop.f32.mrb[0].mxu0
        %v649 = vadd.f32 %v537, %v648
        %v650 = vpop.f32.mrb[0].mxu0
        %651 = vmatprep.mubr.bf16.mxu0 0
        %652 = vmatmul.mubr.bf16.gmra.mrb[0].mxu0 %v512
        %v653 = vpop.f32.mrb[0].mxu0
        %v654 = vadd.f32 %v537, %v653
        %v655 = vpop.f32.mrb[0].mxu0
        %v656 = vpop.f32.mrb[0].mxu0
        %v657 = vadd.f32 %v537, %v656
        %v658 = vpop.f32.mrb[0].mxu0
        %659 = vmatprep.mubr.bf16.mxu0 0
        %660 = vmatmul.mubr.bf16.gmra.mrb[0].mxu0 %v513
        %v661 = vpop.f32.mrb[0].mxu0
        %v662 = vadd.f32 %v537, %v661
        %v663 = vpop.f32.mrb[0].mxu0
        %v664 = vpop.f32.mrb[0].mxu0
        %v665 = vadd.f32 %v537, %v664
        %v666 = vpop.f32.mrb[0].mxu0
        %667 = vmatprep.mubr.bf16.mxu0 0
        %668 = vmatmul.mubr.bf16.gmra.mrb[0].mxu0 %v514
        %v669 = vpop.f32.mrb[0].mxu0
        %v670 = vadd.f32 %v537, %v669
        %v671 = vpop.f32.mrb[0].mxu0
        %v672 = vpop.f32.mrb[0].mxu0
        %v673 = vadd.f32 %v537, %v672
        %v674 = vpop.f32.mrb[0].mxu0
        %675 = vmatprep.mubr.bf16.mxu0 0
        %676 = vmatmul.mubr.bf16.gmra.mrb[0].mxu0 %v515
        %v677 = vpop.f32.mrb[0].mxu0
        %v678 = vadd.f32 %v537, %v677
        %v679 = vpop.f32.mrb[0].mxu0
        %v680 = vpop.f32.mrb[0].mxu0
        %v681 = vadd.f32 %v537, %v680
        %v682 = vpop.f32.mrb[0].mxu0
        %683 = vdwg.mxu0
        %v684 = vmax.f32 %v622, 0.0
        %v685 = vmax.f32 %v625, 0.0
        %v686 = vmax.f32 %v630, 0.0
        %v687 = vmax.f32 %v633, 0.0
        %v688 = vmax.f32 %v638, 0.0
        %v689 = vmax.f32 %v641, 0.0
        %v690 = vmax.f32 %v646, 0.0
        %v691 = vmax.f32 %v649, 0.0
        %v692 = vmax.f32 %v654, 0.0
        %v693 = vmax.f32 %v657, 0.0
        %v694 = vmax.f32 %v662, 0.0
        %v695 = vmax.f32 %v665, 0.0
        %v696 = vmax.f32 %v670, 0.0
        %v697 = vmax.f32 %v673, 0.0
        %v698 = vmax.f32 %v678, 0.0
        %v699 = vmax.f32 %v681, 0.0
        %v700 = vld [vmem:[%s4] sm:$0xff]
        %v701 = vld [vmem:[%s4 + $0x8] sm:$0xff]
        %v702 = vld [vmem:[%s4 + $0x10] sm:$0xff]
        %v703 = vld [vmem:[%s4 + $0x18] sm:$0xff]
        %v704 = vld [vmem:[%s4 + $0x20] sm:$0xff]
        %v705 = vld [vmem:[%s4 + $0x28] sm:$0xff]
        %v706 = vld [vmem:[%s4 + $0x30] sm:$0xff]
        %v707 = vld [vmem:[%s4 + $0x38] sm:$0xff]
        %v708 = vld [vmem:[%s4 + $0x40] sm:$0xff]
        %v709 = vld [vmem:[%s4 + $0x48] sm:$0xff]
        %v710 = vld [vmem:[%s4 + $0x50] sm:$0xff]
        %v711 = vld [vmem:[%s4 + $0x58] sm:$0xff]
        %v712 = vld [vmem:[%s4 + $0x60] sm:$0xff]
        %v713 = vld [vmem:[%s4 + $0x68] sm:$0xff]
        %v714 = vld [vmem:[%s4 + $0x70] sm:$0xff]
        %v715 = vld [vmem:[%s4 + $0x78] sm:$0xff]
        %v716 = vld [vmem:[%s5] sm:$0x1]
        %v718 = vlaneseq
        %v719 = vshrl.u32 %v718, 7
        %v720 = vsub.s32 0, %v719
        %v721 = vrot.slane %v716, %v720
        %723 = vmatprep.subr.mxu0 0.0
        %724 = vmatpush1.msra.mxu0 %v700
        %725 = vmatprep.subr.mxu0 0.0
        %726 = vmatpush1.msra.mxu0 %v701
        %727 = vmatprep.subr.mxu0 0.0
        %728 = vmatpush1.msra.mxu0 %v702
        %729 = vmatprep.subr.mxu0 0.0
        %730 = vmatpush1.msra.mxu0 %v703
        %731 = vmatprep.subr.mxu0 0.0
        %732 = vmatpush1.msra.mxu0 %v704
        %733 = vmatprep.subr.mxu0 0.0
        %734 = vmatpush1.msra.mxu0 %v705
        %735 = vmatprep.subr.mxu0 0.0
        %736 = vmatpush1.msra.mxu0 %v706
        %737 = vmatprep.subr.mxu0 0.0
        %738 = vmatpush1.msra.mxu0 %v707
        %739 = vmatprep.subr.mxu0 0.0
        %740 = vmatpush1.msra.mxu0 %v708
        %741 = vmatprep.subr.mxu0 0.0
        %742 = vmatpush1.msra.mxu0 %v709
        %743 = vmatprep.subr.mxu0 0.0
        %744 = vmatpush1.msra.mxu0 %v710
        %745 = vmatprep.subr.mxu0 0.0
        %746 = vmatpush1.msra.mxu0 %v711
        %747 = vmatprep.subr.mxu0 0.0
        %748 = vmatpush1.msra.mxu0 %v712
        %749 = vmatprep.subr.mxu0 0.0
        %750 = vmatpush1.msra.mxu0 %v713
        %751 = vmatprep.subr.mxu0 0.0
        %752 = vmatpush1.msra.mxu0 %v714
        %753 = vmatprep.subr.mxu0 0.0
        %754 = vmatpush1.msra.mxu0 %v715
        %755 = vmatprep.subr.mxu0 0.0
        %756 = vmatpush1.msra.mxu0 0.0
        %757 = vmatprep.subr.mxu0 0.0
        %758 = vmatpush1.msra.mxu0 0.0
        %759 = vmatprep.subr.mxu0 0.0
        %760 = vmatpush1.msra.mxu0 0.0
        %761 = vmatprep.subr.mxu0 0.0
        %762 = vmatpush1.msra.mxu0 0.0
        %763 = vmatprep.subr.mxu0 0.0
        %764 = vmatpush1.msra.mxu0 0.0
        %765 = vmatprep.subr.mxu0 0.0
        %766 = vmatpush1.msra.mxu0 0.0
        %767 = vmatprep.subr.mxu0 0.0
        %768 = vmatpush1.msra.mxu0 0.0
        %769 = vmatprep.subr.mxu0 0.0
        %770 = vmatpush1.msra.mxu0 0.0
        %771 = vmatprep.subr.mxu0 0.0
        %772 = vmatpush1.msra.mxu0 0.0
        %773 = vmatprep.subr.mxu0 0.0
        %774 = vmatpush1.msra.mxu0 0.0
        %775 = vmatprep.subr.mxu0 0.0
        %776 = vmatpush1.msra.mxu0 0.0
        %777 = vmatprep.subr.mxu0 0.0
        %778 = vmatpush1.msra.mxu0 0.0
        %779 = vmatprep.subr.mxu0 0.0
        %780 = vmatpush1.msra.mxu0 0.0
        %781 = vmatprep.subr.mxu0 0.0
        %782 = vmatpush1.msra.mxu0 0.0
        %783 = vmatprep.subr.mxu0 0.0
        %784 = vmatpush1.msra.mxu0 0.0
        %785 = vmatprep.subr.mxu0 0.0
        %786 = vmatpush1.msra.mxu0 0.0
        %787 = vmatprep.mubr.f32.mxu0 0.0
        %788 = vmatmul.mubr.f32.gmra.mrb[0].mxu0 %v684
        %v789 = vpop.f32.mrb[0].mxu0
        %v790 = vadd.f32 %v721, %v789
        %v791 = vpop.f32.mrb[0].mxu0
        %792 = vmatprep.mubr.f32.mxu0 0.0
        %793 = vmatmul.mubr.f32.gmra.mrb[0].mxu0 %v685
        %v794 = vpop.f32.mrb[0].mxu0
        %v795 = vadd.f32 %v721, %v794
        %v796 = vpop.f32.mrb[0].mxu0
        %797 = vmatprep.mubr.f32.mxu0 0.0
        %798 = vmatmul.mubr.f32.gmra.mrb[0].mxu0 %v686
        %v799 = vpop.f32.mrb[0].mxu0
        %v800 = vadd.f32 %v721, %v799
        %v801 = vpop.f32.mrb[0].mxu0
        %802 = vmatprep.mubr.f32.mxu0 0.0
        %803 = vmatmul.mubr.f32.gmra.mrb[0].mxu0 %v687
        %v804 = vpop.f32.mrb[0].mxu0
        %v805 = vadd.f32 %v721, %v804
        %v806 = vpop.f32.mrb[0].mxu0
        %807 = vmatprep.mubr.f32.mxu0 0.0
        %808 = vmatmul.mubr.f32.gmra.mrb[0].mxu0 %v688
        %v809 = vpop.f32.mrb[0].mxu0
        %v810 = vadd.f32 %v721, %v809
        %v811 = vpop.f32.mrb[0].mxu0
        %812 = vmatprep.mubr.f32.mxu0 0.0
        %813 = vmatmul.mubr.f32.gmra.mrb[0].mxu0 %v689
        %v814 = vpop.f32.mrb[0].mxu0
        %v815 = vadd.f32 %v721, %v814
        %v816 = vpop.f32.mrb[0].mxu0
        %817 = vmatprep.mubr.f32.mxu0 0.0
        %818 = vmatmul.mubr.f32.gmra.mrb[0].mxu0 %v690
        %v819 = vpop.f32.mrb[0].mxu0
        %v820 = vadd.f32 %v721, %v819
        %v821 = vpop.f32.mrb[0].mxu0
        %822 = vmatprep.mubr.f32.mxu0 0.0
        %823 = vmatmul.mubr.f32.gmra.mrb[0].mxu0 %v691
        %v824 = vpop.f32.mrb[0].mxu0
        %v825 = vadd.f32 %v721, %v824
        %v826 = vpop.f32.mrb[0].mxu0
        %827 = vmatprep.mubr.f32.mxu0 0.0
        %828 = vmatmul.mubr.f32.gmra.mrb[0].mxu0 %v692
        %v829 = vpop.f32.mrb[0].mxu0
        %v830 = vadd.f32 %v721, %v829
        %v831 = vpop.f32.mrb[0].mxu0
        %832 = vmatprep.mubr.f32.mxu0 0.0
        %833 = vmatmul.mubr.f32.gmra.mrb[0].mxu0 %v693
        %v834 = vpop.f32.mrb[0].mxu0
        %v835 = vadd.f32 %v721, %v834
        %v836 = vpop.f32.mrb[0].mxu0
        %837 = vmatprep.mubr.f32.mxu0 0.0
        %838 = vmatmul.mubr.f32.gmra.mrb[0].mxu0 %v694
        %v839 = vpop.f32.mrb[0].mxu0
        %v840 = vadd.f32 %v721, %v839
        %v841 = vpop.f32.mrb[0].mxu0
        %842 = vmatprep.mubr.f32.mxu0 0.0
        %843 = vmatmul.mubr.f32.gmra.mrb[0].mxu0 %v695
        %v844 = vpop.f32.mrb[0].mxu0
        %v845 = vadd.f32 %v721, %v844
        %v846 = vpop.f32.mrb[0].mxu0
        %847 = vmatprep.mubr.f32.mxu0 0.0
        %848 = vmatmul.mubr.f32.gmra.mrb[0].mxu0 %v696
        %v849 = vpop.f32.mrb[0].mxu0
        %v850 = vadd.f32 %v721, %v849
        %v851 = vpop.f32.mrb[0].mxu0
        %852 = vmatprep.mubr.f32.mxu0 0.0
        %853 = vmatmul.mubr.f32.gmra.mrb[0].mxu0 %v697
        %v854 = vpop.f32.mrb[0].mxu0
        %v855 = vadd.f32 %v721, %v854
        %v856 = vpop.f32.mrb[0].mxu0
        %857 = vmatprep.mubr.f32.mxu0 0.0
        %858 = vmatmul.mubr.f32.gmra.mrb[0].mxu0 %v698
        %v859 = vpop.f32.mrb[0].mxu0
        %v860 = vadd.f32 %v721, %v859
        %v861 = vpop.f32.mrb[0].mxu0
        %862 = vmatprep.mubr.f32.mxu0 0.0
        %863 = vmatmul.mubr.f32.gmra.mrb[0].mxu0 %v699
        %v864 = vpop.f32.mrb[0].mxu0
        %v865 = vadd.f32 %v721, %v864
        %v866 = vpop.f32.mrb[0].mxu0
        %867 = vdwg.mxu0
        %v868 = vld [vmem:[%s6] sm:$0x7]
        %870 = vset.pattern.permute.xlu0 0
        %871 = vperm.xlu0 %870, %v790
        %v872 = vpop.permute.xlu0 %871
        %875 = vset.pattern.permute.xlu0 0
        %876 = vperm.xlu0 %875, %v795
        %v877 = vpop.permute.xlu0 %876
        %880 = vset.pattern.permute.xlu0 0
        %881 = vperm.xlu0 %880, %v800
        %v882 = vpop.permute.xlu0 %881
        %885 = vset.pattern.permute.xlu0 0
        %886 = vperm.xlu0 %885, %v805
        %v887 = vpop.permute.xlu0 %886
        %890 = vset.pattern.permute.xlu0 0
        %891 = vperm.xlu0 %890, %v810
        %v892 = vpop.permute.xlu0 %891
        %895 = vset.pattern.permute.xlu0 0
        %896 = vperm.xlu0 %895, %v815
        %v897 = vpop.permute.xlu0 %896
        %900 = vset.pattern.permute.xlu0 0
        %901 = vperm.xlu0 %900, %v820
        %v902 = vpop.permute.xlu0 %901
        %905 = vset.pattern.permute.xlu0 0
        %906 = vperm.xlu0 %905, %v825
        %v907 = vpop.permute.xlu0 %906
        %910 = vset.pattern.permute.xlu0 0
        %911 = vperm.xlu0 %910, %v830
        %v912 = vpop.permute.xlu0 %911
        %915 = vset.pattern.permute.xlu0 0
        %916 = vperm.xlu0 %915, %v835
        %v917 = vpop.permute.xlu0 %916
        %920 = vset.pattern.permute.xlu0 0
        %921 = vperm.xlu0 %920, %v840
        %v922 = vpop.permute.xlu0 %921
        %925 = vset.pattern.permute.xlu0 0
        %926 = vperm.xlu0 %925, %v845
        %v927 = vpop.permute.xlu0 %926
        %930 = vset.pattern.permute.xlu0 0
        %931 = vperm.xlu0 %930, %v850
        %v932 = vpop.permute.xlu0 %931
        %935 = vset.pattern.permute.xlu0 0
        %936 = vperm.xlu0 %935, %v855
        %v937 = vpop.permute.xlu0 %936
        %940 = vset.pattern.permute.xlu0 0
        %941 = vperm.xlu0 %940, %v860
        %v942 = vpop.permute.xlu0 %941
        %945 = vset.pattern.permute.xlu0 0
        %946 = vperm.xlu0 %945, %v865
        %v947 = vpop.permute.xlu0 %946
        %v949 = vlaneseq
        %v950 = vshrl.u32 %v949, 7
        %v951 = vsub.s32 0, %v950
        %v952 = vrot.slane %v868, %v951
        %v953 = vmul.f32 %v872, %v952
        %v954 = vmul.f32 %v877, %v952
        %v955 = vmul.f32 %v882, %v952
        %v956 = vmul.f32 %v887, %v952
        %v957 = vmul.f32 %v892, %v952
        %v958 = vmul.f32 %v897, %v952
        %v959 = vmul.f32 %v902, %v952
        %v960 = vmul.f32 %v907, %v952
        %v961 = vmul.f32 %v912, %v952
        %v962 = vmul.f32 %v917, %v952
        %v963 = vmul.f32 %v922, %v952
        %v964 = vmul.f32 %v927, %v952
        %v965 = vmul.f32 %v932, %v952
        %v966 = vmul.f32 %v937, %v952
        %v967 = vmul.f32 %v942, %v952
        %v968 = vmul.f32 %v947, %v952
        %969 = vset.pattern.permute.xlu0 1
        %970 = vperm.xlu0 %969, %v790
        %v971 = vpop.permute.xlu0 %970
        %973 = vset.pattern.permute.xlu0 1
        %974 = vperm.xlu0 %973, %v795
        %v975 = vpop.permute.xlu0 %974
        %977 = vset.pattern.permute.xlu0 1
        %978 = vperm.xlu0 %977, %v800
        %v979 = vpop.permute.xlu0 %978
        %981 = vset.pattern.permute.xlu0 1
        %982 = vperm.xlu0 %981, %v805
        %v983 = vpop.permute.xlu0 %982
        %985 = vset.pattern.permute.xlu0 1
        %986 = vperm.xlu0 %985, %v810
        %v987 = vpop.permute.xlu0 %986
        %989 = vset.pattern.permute.xlu0 1
        %990 = vperm.xlu0 %989, %v815
        %v991 = vpop.permute.xlu0 %990
        %993 = vset.pattern.permute.xlu0 1
        %994 = vperm.xlu0 %993, %v820
        %v995 = vpop.permute.xlu0 %994
        %997 = vset.pattern.permute.xlu0 1
        %998 = vperm.xlu0 %997, %v825
        %v999 = vpop.permute.xlu0 %998
        %1001 = vset.pattern.permute.xlu0 1
        %1002 = vperm.xlu0 %1001, %v830
        %v1003 = vpop.permute.xlu0 %1002
        %1005 = vset.pattern.permute.xlu0 1
        %1006 = vperm.xlu0 %1005, %v835
        %v1007 = vpop.permute.xlu0 %1006
        %1009 = vset.pattern.permute.xlu0 1
        %1010 = vperm.xlu0 %1009, %v840
        %v1011 = vpop.permute.xlu0 %1010
        %1013 = vset.pattern.permute.xlu0 1
        %1014 = vperm.xlu0 %1013, %v845
        %v1015 = vpop.permute.xlu0 %1014
        %1017 = vset.pattern.permute.xlu0 1
        %1018 = vperm.xlu0 %1017, %v850
        %v1019 = vpop.permute.xlu0 %1018
        %1021 = vset.pattern.permute.xlu0 1
        %1022 = vperm.xlu0 %1021, %v855
        %v1023 = vpop.permute.xlu0 %1022
        %1025 = vset.pattern.permute.xlu0 1
        %1026 = vperm.xlu0 %1025, %v860
        %v1027 = vpop.permute.xlu0 %1026
        %1029 = vset.pattern.permute.xlu0 1
        %1030 = vperm.xlu0 %1029, %v865
        %v1031 = vpop.permute.xlu0 %1030
        %v1033 = vlaneseq
        %v1034 = vshrl.u32 %v1033, 7
        %v1035 = vsub.s32 1, %v1034
        %v1036 = vrot.slane %v868, %v1035
        %v1037 = vmul.f32 %v971, %v1036
        %v1038 = vmul.f32 %v975, %v1036
        %v1039 = vmul.f32 %v979, %v1036
        %v1040 = vmul.f32 %v983, %v1036
        %v1041 = vmul.f32 %v987, %v1036
        %v1042 = vmul.f32 %v991, %v1036
        %v1043 = vmul.f32 %v995, %v1036
        %v1044 = vmul.f32 %v999, %v1036
        %v1045 = vmul.f32 %v1003, %v1036
        %v1046 = vmul.f32 %v1007, %v1036
        %v1047 = vmul.f32 %v1011, %v1036
        %v1048 = vmul.f32 %v1015, %v1036
        %v1049 = vmul.f32 %v1019, %v1036
        %v1050 = vmul.f32 %v1023, %v1036
        %v1051 = vmul.f32 %v1027, %v1036
        %v1052 = vmul.f32 %v1031, %v1036
        %v1053 = vadd.f32 %v953, %v1037
        %v1054 = vadd.f32 %v954, %v1038
        %v1055 = vadd.f32 %v955, %v1039
        %v1056 = vadd.f32 %v956, %v1040
        %v1057 = vadd.f32 %v957, %v1041
        %v1058 = vadd.f32 %v958, %v1042
        %v1059 = vadd.f32 %v959, %v1043
        %v1060 = vadd.f32 %v960, %v1044
        %v1061 = vadd.f32 %v961, %v1045
        %v1062 = vadd.f32 %v962, %v1046
        %v1063 = vadd.f32 %v963, %v1047
        %v1064 = vadd.f32 %v964, %v1048
        %v1065 = vadd.f32 %v965, %v1049
        %v1066 = vadd.f32 %v966, %v1050
        %v1067 = vadd.f32 %v967, %v1051
        %v1068 = vadd.f32 %v968, %v1052
        %1069 = vset.pattern.permute.xlu0 2
        %1070 = vperm.xlu0 %1069, %v790
        %v1071 = vpop.permute.xlu0 %1070
        %1073 = vset.pattern.permute.xlu0 2
        %1074 = vperm.xlu0 %1073, %v795
        %v1075 = vpop.permute.xlu0 %1074
        %1077 = vset.pattern.permute.xlu0 2
        %1078 = vperm.xlu0 %1077, %v800
        %v1079 = vpop.permute.xlu0 %1078
        %1081 = vset.pattern.permute.xlu0 2
        %1082 = vperm.xlu0 %1081, %v805
        %v1083 = vpop.permute.xlu0 %1082
        %1085 = vset.pattern.permute.xlu0 2
        %1086 = vperm.xlu0 %1085, %v810
        %v1087 = vpop.permute.xlu0 %1086
        %1089 = vset.pattern.permute.xlu0 2
        %1090 = vperm.xlu0 %1089, %v815
        %v1091 = vpop.permute.xlu0 %1090
        %1093 = vset.pattern.permute.xlu0 2
        %1094 = vperm.xlu0 %1093, %v820
        %v1095 = vpop.permute.xlu0 %1094
        %1097 = vset.pattern.permute.xlu0 2
        %1098 = vperm.xlu0 %1097, %v825
        %v1099 = vpop.permute.xlu0 %1098
        %1101 = vset.pattern.permute.xlu0 2
        %1102 = vperm.xlu0 %1101, %v830
        %v1103 = vpop.permute.xlu0 %1102
        %1105 = vset.pattern.permute.xlu0 2
        %1106 = vperm.xlu0 %1105, %v835
        %v1107 = vpop.permute.xlu0 %1106
        %1109 = vset.pattern.permute.xlu0 2
        %1110 = vperm.xlu0 %1109, %v840
        %v1111 = vpop.permute.xlu0 %1110
        %1113 = vset.pattern.permute.xlu0 2
        %1114 = vperm.xlu0 %1113, %v845
        %v1115 = vpop.permute.xlu0 %1114
        %1117 = vset.pattern.permute.xlu0 2
        %1118 = vperm.xlu0 %1117, %v850
        %v1119 = vpop.permute.xlu0 %1118
        %1121 = vset.pattern.permute.xlu0 2
        %1122 = vperm.xlu0 %1121, %v855
        %v1123 = vpop.permute.xlu0 %1122
        %1125 = vset.pattern.permute.xlu0 2
        %1126 = vperm.xlu0 %1125, %v860
        %v1127 = vpop.permute.xlu0 %1126
        %1129 = vset.pattern.permute.xlu0 2
        %1130 = vperm.xlu0 %1129, %v865
        %v1131 = vpop.permute.xlu0 %1130
        %v1133 = vlaneseq
        %v1134 = vshrl.u32 %v1133, 7
        %v1135 = vsub.s32 2, %v1134
        %v1136 = vrot.slane %v868, %v1135
        %v1137 = vmul.f32 %v1071, %v1136
        %v1138 = vmul.f32 %v1075, %v1136
        %v1139 = vmul.f32 %v1079, %v1136
        %v1140 = vmul.f32 %v1083, %v1136
        %v1141 = vmul.f32 %v1087, %v1136
        %v1142 = vmul.f32 %v1091, %v1136
        %v1143 = vmul.f32 %v1095, %v1136
        %v1144 = vmul.f32 %v1099, %v1136
        %v1145 = vmul.f32 %v1103, %v1136
        %v1146 = vmul.f32 %v1107, %v1136
        %v1147 = vmul.f32 %v1111, %v1136
        %v1148 = vmul.f32 %v1115, %v1136
        %v1149 = vmul.f32 %v1119, %v1136
        %v1150 = vmul.f32 %v1123, %v1136
        %v1151 = vmul.f32 %v1127, %v1136
        %v1152 = vmul.f32 %v1131, %v1136
        %v1153 = vadd.f32 %v1053, %v1137
        %v1154 = vadd.f32 %v1054, %v1138
        %v1155 = vadd.f32 %v1055, %v1139
        %v1156 = vadd.f32 %v1056, %v1140
        %v1157 = vadd.f32 %v1057, %v1141
        %v1158 = vadd.f32 %v1058, %v1142
        %v1159 = vadd.f32 %v1059, %v1143
        %v1160 = vadd.f32 %v1060, %v1144
        %v1161 = vadd.f32 %v1061, %v1145
        %v1162 = vadd.f32 %v1062, %v1146
        %v1163 = vadd.f32 %v1063, %v1147
        %v1164 = vadd.f32 %v1064, %v1148
        %v1165 = vadd.f32 %v1065, %v1149
        %v1166 = vadd.f32 %v1066, %v1150
        %v1167 = vadd.f32 %v1067, %v1151
        %v1168 = vadd.f32 %v1068, %v1152
        %v1169 = vlaneseq
        %v1170 = vshrl.u32 %v1169, 7
        %v1171 = vsub.s32 1, %v1170
        %v1172 = vrot.slane %v455, %v1171
        %v1173 = vadd.f32 %v1153, %v1172
        %v1174 = vadd.f32 %v1154, %v1172
        %v1175 = vadd.f32 %v1155, %v1172
        %v1176 = vadd.f32 %v1156, %v1172
        %v1177 = vadd.f32 %v1157, %v1172
        %v1178 = vadd.f32 %v1158, %v1172
        %v1179 = vadd.f32 %v1159, %v1172
        %v1180 = vadd.f32 %v1160, %v1172
        %v1181 = vadd.f32 %v1161, %v1172
        %v1182 = vadd.f32 %v1162, %v1172
        %v1183 = vadd.f32 %v1163, %v1172
        %v1184 = vadd.f32 %v1164, %v1172
        %v1185 = vadd.f32 %v1165, %v1172
        %v1186 = vadd.f32 %v1166, %v1172
        %v1187 = vadd.f32 %v1167, %v1172
        %v1188 = vadd.f32 %v1168, %v1172
        %v1189 = vmax.f32 %v1173, 0.0
        %v1190 = vmax.f32 %v1174, 0.0
        %v1191 = vmax.f32 %v1175, 0.0
        %v1192 = vmax.f32 %v1176, 0.0
        %v1193 = vmax.f32 %v1177, 0.0
        %v1194 = vmax.f32 %v1178, 0.0
        %v1195 = vmax.f32 %v1179, 0.0
        %v1196 = vmax.f32 %v1180, 0.0
        %v1197 = vmax.f32 %v1181, 0.0
        %v1198 = vmax.f32 %v1182, 0.0
        %v1199 = vmax.f32 %v1183, 0.0
        %v1200 = vmax.f32 %v1184, 0.0
        %v1201 = vmax.f32 %v1185, 0.0
        %v1202 = vmax.f32 %v1186, 0.0
        %v1203 = vmax.f32 %v1187, 0.0
        %v1204 = vmax.f32 %v1188, 0.0
        %v1205 = vpack.c.bf16 %v1190, %v1189
        %v1206 = vpack.c.bf16 %v1192, %v1191
        %v1207 = vpack.c.bf16 %v1194, %v1193
        %v1208 = vpack.c.bf16 %v1196, %v1195
        %v1209 = vpack.c.bf16 %v1198, %v1197
        %v1210 = vpack.c.bf16 %v1200, %v1199
        %v1211 = vpack.c.bf16 %v1202, %v1201
        %v1212 = vpack.c.bf16 %v1204, %v1203
        %v1213 = vld [vmem:[#allocation4] sm:$0xf]
        %v1214 = vld [vmem:[#allocation4 + $0x4] sm:$0xf]
        %v1215 = vld [vmem:[#allocation4 + $0x8] sm:$0xf]
        %v1216 = vld [vmem:[#allocation4 + $0xc] sm:$0xf]
        %v1217 = vld [vmem:[#allocation4 + $0x10] sm:$0xf]
        %v1218 = vld [vmem:[#allocation4 + $0x14] sm:$0xf]
        %v1219 = vld [vmem:[#allocation4 + $0x18] sm:$0xf]
        %v1220 = vld [vmem:[#allocation4 + $0x1c] sm:$0xf]
        %v1221 = vld [vmem:[#allocation4 + $0x20] sm:$0xf]
        %v1222 = vld [vmem:[#allocation4 + $0x24] sm:$0xf]
        %v1223 = vld [vmem:[#allocation4 + $0x28] sm:$0xf]
        %v1224 = vld [vmem:[#allocation4 + $0x2c] sm:$0xf]
        %v1225 = vld [vmem:[#allocation4 + $0x30] sm:$0xf]
        %v1226 = vld [vmem:[#allocation4 + $0x34] sm:$0xf]
        %v1227 = vld [vmem:[#allocation4 + $0x38] sm:$0xf]
        %v1228 = vld [vmem:[#allocation4 + $0x3c] sm:$0xf]
        %v1229 = vld [vmem:[%s8] sm:$0x1]
        %v1231 = vlaneseq
        %v1232 = vshrl.u32 %v1231, 7
        %v1233 = vsub.s32 0, %v1232
        %v1234 = vrot.slane %v1229, %v1233
        %v1252 = vunpack.c.l.b16 %v1213
        %v1253 = vunpack.c.l.b16 %v1214
        %v1254 = vunpack.c.l.b16 %v1215
        %v1255 = vunpack.c.l.b16 %v1216
        %v1256 = vunpack.c.l.b16 %v1217
        %v1257 = vunpack.c.l.b16 %v1218
        %v1258 = vunpack.c.l.b16 %v1219
        %v1259 = vunpack.c.l.b16 %v1220
        %v1260 = vunpack.c.l.b16 %v1221
        %v1261 = vunpack.c.l.b16 %v1222
        %v1262 = vunpack.c.l.b16 %v1223
        %v1263 = vunpack.c.l.b16 %v1224
        %v1264 = vunpack.c.l.b16 %v1225
        %v1265 = vunpack.c.l.b16 %v1226
        %v1266 = vunpack.c.l.b16 %v1227
        %v1267 = vunpack.c.l.b16 %v1228
        %v1268 = vpack.c.b16 %v1253, %v1252
        %v1269 = vpack.c.b16 %v1255, %v1254
        %v1270 = vpack.c.b16 %v1257, %v1256
        %v1271 = vpack.c.b16 %v1259, %v1258
        %v1272 = vpack.c.b16 %v1261, %v1260
        %v1273 = vpack.c.b16 %v1263, %v1262
        %v1274 = vpack.c.b16 %v1265, %v1264
        %v1275 = vpack.c.b16 %v1267, %v1266
        %1284 = vmatprep.subr.bf16.mxu0 0
        %1285 = vmatpush1.bf16.msra.mxu0 %v1268
        %1286 = vmatprep.subr.bf16.mxu0 0
        %1287 = vmatpush1.bf16.msra.mxu0 %v1269
        %1288 = vmatprep.subr.bf16.mxu0 0
        %1289 = vmatpush1.bf16.msra.mxu0 %v1270
        %1290 = vmatprep.subr.bf16.mxu0 0
        %1291 = vmatpush1.bf16.msra.mxu0 %v1271
        %1292 = vmatprep.subr.bf16.mxu0 0
        %1293 = vmatpush1.bf16.msra.mxu0 %v1272
        %1294 = vmatprep.subr.bf16.mxu0 0
        %1295 = vmatpush1.bf16.msra.mxu0 %v1273
        %1296 = vmatprep.subr.bf16.mxu0 0
        %1297 = vmatpush1.bf16.msra.mxu0 %v1274
        %1298 = vmatprep.subr.bf16.mxu0 0
        %1299 = vmatpush1.bf16.msra.mxu0 %v1275
        %1300 = vmatprep.subr.bf16.mxu0 0
        %1301 = vmatpush1.bf16.msra.mxu0 0
        %1302 = vmatprep.subr.bf16.mxu0 0
        %1303 = vmatpush1.bf16.msra.mxu0 0
        %1304 = vmatprep.subr.bf16.mxu0 0
        %1305 = vmatpush1.bf16.msra.mxu0 0
        %1306 = vmatprep.subr.bf16.mxu0 0
        %1307 = vmatpush1.bf16.msra.mxu0 0
        %1308 = vmatprep.subr.bf16.mxu0 0
        %1309 = vmatpush1.bf16.msra.mxu0 0
        %1310 = vmatprep.subr.bf16.mxu0 0
        %1311 = vmatpush1.bf16.msra.mxu0 0
        %1312 = vmatprep.subr.bf16.mxu0 0
        %1313 = vmatpush1.bf16.msra.mxu0 0
        %1314 = vmatprep.subr.bf16.mxu0 0
        %1315 = vmatpush1.bf16.msra.mxu0 0
        %1316 = vmatprep.mubr.bf16.mxu0 0
        %1317 = vmatmul.mubr.bf16.gmra.mrb[0].mxu0 %v1205
        %v1318 = vpop.f32.mrb[0].mxu0
        %v1319 = vadd.f32 %v1234, %v1318
        %v1320 = vpop.f32.mrb[0].mxu0
        %v1321 = vpop.f32.mrb[0].mxu0
        %v1322 = vadd.f32 %v1234, %v1321
        %v1323 = vpop.f32.mrb[0].mxu0
        %1324 = vmatprep.mubr.bf16.mxu0 0
        %1325 = vmatmul.mubr.bf16.gmra.mrb[0].mxu0 %v1206
        %v1326 = vpop.f32.mrb[0].mxu0
        %v1327 = vadd.f32 %v1234, %v1326
        %v1328 = vpop.f32.mrb[0].mxu0
        %v1329 = vpop.f32.mrb[0].mxu0
        %v1330 = vadd.f32 %v1234, %v1329
        %v1331 = vpop.f32.mrb[0].mxu0
        %1332 = vmatprep.mubr.bf16.mxu0 0
        %1333 = vmatmul.mubr.bf16.gmra.mrb[0].mxu0 %v1207
        %v1334 = vpop.f32.mrb[0].mxu0
        %v1335 = vadd.f32 %v1234, %v1334
        %v1336 = vpop.f32.mrb[0].mxu0
        %v1337 = vpop.f32.mrb[0].mxu0
        %v1338 = vadd.f32 %v1234, %v1337
        %v1339 = vpop.f32.mrb[0].mxu0
        %1340 = vmatprep.mubr.bf16.mxu0 0
        %1341 = vmatmul.mubr.bf16.gmra.mrb[0].mxu0 %v1208
        %v1342 = vpop.f32.mrb[0].mxu0
        %v1343 = vadd.f32 %v1234, %v1342
        %v1344 = vpop.f32.mrb[0].mxu0
        %v1345 = vpop.f32.mrb[0].mxu0
        %v1346 = vadd.f32 %v1234, %v1345
        %v1347 = vpop.f32.mrb[0].mxu0
        %1348 = vmatprep.mubr.bf16.mxu0 0
        %1349 = vmatmul.mubr.bf16.gmra.mrb[0].mxu0 %v1209
        %v1350 = vpop.f32.mrb[0].mxu0
        %v1351 = vadd.f32 %v1234, %v1350
        %v1352 = vpop.f32.mrb[0].mxu0
        %v1353 = vpop.f32.mrb[0].mxu0
        %v1354 = vadd.f32 %v1234, %v1353
        %v1355 = vpop.f32.mrb[0].mxu0
        %1356 = vmatprep.mubr.bf16.mxu0 0
        %1357 = vmatmul.mubr.bf16.gmra.mrb[0].mxu0 %v1210
        %v1358 = vpop.f32.mrb[0].mxu0
        %v1359 = vadd.f32 %v1234, %v1358
        %v1360 = vpop.f32.mrb[0].mxu0
        %v1361 = vpop.f32.mrb[0].mxu0
        %v1362 = vadd.f32 %v1234, %v1361
        %v1363 = vpop.f32.mrb[0].mxu0
        %1364 = vmatprep.mubr.bf16.mxu0 0
        %1365 = vmatmul.mubr.bf16.gmra.mrb[0].mxu0 %v1211
        %v1366 = vpop.f32.mrb[0].mxu0
        %v1367 = vadd.f32 %v1234, %v1366
        %v1368 = vpop.f32.mrb[0].mxu0
        %v1369 = vpop.f32.mrb[0].mxu0
        %v1370 = vadd.f32 %v1234, %v1369
        %v1371 = vpop.f32.mrb[0].mxu0
        %1372 = vmatprep.mubr.bf16.mxu0 0
        %1373 = vmatmul.mubr.bf16.gmra.mrb[0].mxu0 %v1212
        %v1374 = vpop.f32.mrb[0].mxu0
        %v1375 = vadd.f32 %v1234, %v1374
        %v1376 = vpop.f32.mrb[0].mxu0
        %v1377 = vpop.f32.mrb[0].mxu0
        %v1378 = vadd.f32 %v1234, %v1377
        %v1379 = vpop.f32.mrb[0].mxu0
        %1380 = vdwg.mxu0
        %v1381 = vmax.f32 %v1319, 0.0
        %v1382 = vmax.f32 %v1322, 0.0
        %v1383 = vmax.f32 %v1327, 0.0
        %v1384 = vmax.f32 %v1330, 0.0
        %v1385 = vmax.f32 %v1335, 0.0
        %v1386 = vmax.f32 %v1338, 0.0
        %v1387 = vmax.f32 %v1343, 0.0
        %v1388 = vmax.f32 %v1346, 0.0
        %v1389 = vmax.f32 %v1351, 0.0
        %v1390 = vmax.f32 %v1354, 0.0
        %v1391 = vmax.f32 %v1359, 0.0
        %v1392 = vmax.f32 %v1362, 0.0
        %v1393 = vmax.f32 %v1367, 0.0
        %v1394 = vmax.f32 %v1370, 0.0
        %v1395 = vmax.f32 %v1375, 0.0
        %v1396 = vmax.f32 %v1378, 0.0
        %v1397 = vld [vmem:[%s9] sm:$0x7]
        %v1398 = vld [vmem:[%s10] sm:$0x7]
        %1400 = vset.pattern.permute.xlu0 0
        %1401 = vperm.xlu0 %1400, %v1398
        %v1402 = vpop.permute.xlu0 %1401
        %1404 = vmatprep.subr.mxu0 0.0
        %1405 = vmatpush1.xpose.msra.mxu0 %v1381
        %1406 = vmatprep.subr.mxu0 0.0
        %1407 = vmatpush1.xpose.msra.mxu0 %v1382
        %1408 = vmatprep.subr.mxu0 0.0
        %1409 = vmatpush1.xpose.msra.mxu0 %v1383
        %1410 = vmatprep.subr.mxu0 0.0
        %1411 = vmatpush1.xpose.msra.mxu0 %v1384
        %1412 = vmatprep.subr.mxu0 0.0
        %1413 = vmatpush1.xpose.msra.mxu0 %v1385
        %1414 = vmatprep.subr.mxu0 0.0
        %1415 = vmatpush1.xpose.msra.mxu0 %v1386
        %1416 = vmatprep.subr.mxu0 0.0
        %1417 = vmatpush1.xpose.msra.mxu0 %v1387
        %1418 = vmatprep.subr.mxu0 0.0
        %1419 = vmatpush1.xpose.msra.mxu0 %v1388
        %1420 = vmatprep.subr.mxu0 0.0
        %1421 = vmatpush1.xpose.msra.mxu0 %v1389
        %1422 = vmatprep.subr.mxu0 0.0
        %1423 = vmatpush1.xpose.msra.mxu0 %v1390
        %1424 = vmatprep.subr.mxu0 0.0
        %1425 = vmatpush1.xpose.msra.mxu0 %v1391
        %1426 = vmatprep.subr.mxu0 0.0
        %1427 = vmatpush1.xpose.msra.mxu0 %v1392
        %1428 = vmatprep.subr.mxu0 0.0
        %1429 = vmatpush1.xpose.msra.mxu0 %v1393
        %1430 = vmatprep.subr.mxu0 0.0
        %1431 = vmatpush1.xpose.msra.mxu0 %v1394
        %1432 = vmatprep.subr.mxu0 0.0
        %1433 = vmatpush1.xpose.msra.mxu0 %v1395
        %1434 = vmatprep.subr.mxu0 0.0
        %1435 = vmatpush1.xpose.msra.mxu0 %v1396
        %1436 = vmatprep.subr.mxu0 0.0
        %1437 = vmatpush1.xpose.msra.mxu0 0.0
        %1438 = vmatprep.subr.mxu0 0.0
        %1439 = vmatpush1.xpose.msra.mxu0 0.0
        %1440 = vmatprep.subr.mxu0 0.0
        %1441 = vmatpush1.xpose.msra.mxu0 0.0
        %1442 = vmatprep.subr.mxu0 0.0
        %1443 = vmatpush1.xpose.msra.mxu0 0.0
        %1444 = vmatprep.subr.mxu0 0.0
        %1445 = vmatpush1.xpose.msra.mxu0 0.0
        %1446 = vmatprep.subr.mxu0 0.0
        %1447 = vmatpush1.xpose.msra.mxu0 0.0
        %1448 = vmatprep.subr.mxu0 0.0
        %1449 = vmatpush1.xpose.msra.mxu0 0.0
        %1450 = vmatprep.subr.mxu0 0.0
        %1451 = vmatpush1.xpose.msra.mxu0 0.0
        %1452 = vmatprep.subr.mxu0 0.0
        %1453 = vmatpush1.xpose.msra.mxu0 0.0
        %1454 = vmatprep.subr.mxu0 0.0
        %1455 = vmatpush1.xpose.msra.mxu0 0.0
        %1456 = vmatprep.subr.mxu0 0.0
        %1457 = vmatpush1.xpose.msra.mxu0 0.0
        %1458 = vmatprep.subr.mxu0 0.0
        %1459 = vmatpush1.xpose.msra.mxu0 0.0
        %1460 = vmatprep.subr.mxu0 0.0
        %1461 = vmatpush1.xpose.msra.mxu0 0.0
        %1462 = vmatprep.subr.mxu0 0.0
        %1463 = vmatpush1.xpose.msra.mxu0 0.0
        %1464 = vmatprep.subr.mxu0 0.0
        %1465 = vmatpush1.xpose.msra.mxu0 0.0
        %1466 = vmatprep.subr.mxu0 0.0
        %1467 = vmatpush1.xpose.msra.mxu0 0.0
        %1468 = vmatprep.mubr.f32.mxu0 0.0
        %1469 = vmatmul.mubr.f32.gmra.mrb[0].mxu0 %v1397
        %v1470 = vpop.f32.mrb[0].mxu0
        %v1471 = vadd.f32 %v1402, %v1470
        %v1472 = vpop.f32.mrb[0].mxu0
        %1473 = vdwg.mxu0
        %1474 = vst [vmem:[%s453] sm:$0x7] %v1471
        %p1475 = scmp.lt.s32.totalorder %s29, 1
        %s1476 = scalar_select %p1475, %s29, 1
        %p1477 = scmp.lt.s32.totalorder %s28, 0
        %s1478 = scalar_select %p1477, %s28, 0
        %s1479 = sadd.s32 %s1478, %s1476
        %s1480 = smul.addr %s1479, 4
        %s1481 = scalar_lea.vmem %s11, %s1480
        // Predicated region
        $region73: #{tpu_custom_call.1} parent=63 // pred_check
          %p1482 = pneg %p297
        $region74: #{tpu_custom_call.1} parent=63 // pred_check_branch
          %1484 = sbr.rel (%p1482) target = $region76
        $region75: #{tpu_custom_call.1} parent=63 // pred_region
          _
        $region76: #{tpu_custom_call.1} parent=63 // pred_fallthru
          _
      $region64: #{tpu_custom_call.1} parent=5 // pred_fallthru
        _
      %p1485 = scmp.le.s32.totalorder 2, %s19
      // Predicated region
      $region77: #{tpu_custom_call.1} parent=5 // pred_check
        %p1486 = pneg %p1485
      $region78: #{tpu_custom_call.1} parent=5 // pred_check_branch
        %1488 = sbr.rel (%p1486) target = $region80
      $region79: #{tpu_custom_call.1} parent=5 // pred_region
        %s1489 = ssub.s32 %s19, 2
        // Predicated region
        $region81: #{tpu_custom_call.1} parent=79 // pred_check
          %p1490 = pneg %p303
        $region82: #{tpu_custom_call.1} parent=79 // pred_check_branch
          %1492 = sbr.rel (%p1490) target = $region84
        $region83: #{tpu_custom_call.1} parent=79 // pred_region
          %p1493 = scmp.lt.s32.totalorder %s31, 1
          %s1494 = scalar_select %p1493, %s31, 1
          %p1495 = scmp.lt.s32.totalorder %s30, 0
          %s1496 = scalar_select %p1495, %s30, 0
          %s1497 = sadd.s32 %s1496, %s1494
          %s1498 = smul.addr %s1497, 4
          %s1499 = scalar_lea.vmem %s11, %s1498
        $region84: #{tpu_custom_call.1} parent=79 // pred_fallthru
          _
      $region80: #{tpu_custom_call.1} parent=5 // pred_fallthru
        _
    $region6: #{tpu_custom_call.1} parent=1 // loop_footer
      %s23 = sadd.s32 1, %s19
    $region7: #{tpu_custom_call.1} parent=1 // loop_footer_branch
      %18 = sbr.rel target = $region3
    $region8: #{tpu_custom_call.1} parent=1 // loop_exit
      _
    %1500 = vsyncpa [#allocation3], 1
    %s1501 = scalar_lea.sflag [#allocation3], 1
    %1502 = vsyncpa %s1501, 1
    %1503 = vsyncpa [#allocation5], 1

</llo_original>
